<compile_context>
chip_gen: v5e
topology: v5e:2x2
jax: 0.10.0
libtpu: 0.0.40
codegen_flags: <defaults>
</compile_context>

<pallas_src>
import functools

import jax
import jax.numpy as jnp
from jax import lax
from jax.experimental import pallas as pl
from jax.experimental.pallas import tpu as pltpu

# Architecture constants implied by the torch module.
C_IN = 161
C1, C2, C3 = 64, 32, 64
S1, S2, S3 = 3, 5, 7                 # spatial size after conv1 / conv2 / conv3
FC1_OUT = 500
FC1_OUT_PAD = 512                    # lane-dense fc1 output (multiple of 128)
FC1_K = S2 * S2 * C3                 # 1600 "live" fc1 inputs (border folded into bias)
N_STEPS = 2                          # grid: fc1 N-halves / fc2 K-halves
FC1_TN = FC1_OUT_PAD // N_STEPS      # 256


# -----------------------------------------------------------------------------
# Fused Pallas kernel: whole forward pass, grid = (2,) over fc1's output halves.
# -----------------------------------------------------------------------------
def _fused_kernel(x_ref, w1_ref, b1_ref, w2_ref, b2_ref, w3_ref, b3_ref,
                  wfc1_ref, bfc1_ref, wfc2_ref, bfc2_ref,
                  o_ref, y3_scr, acc_scr):
    k = pl.program_id(0)
    f32, bf16 = jnp.float32, jnp.bfloat16

    # Step 0: full conv stack; conv3 activations go to VMEM scratch (persists across
    # steps).  Overlaps with the DMA of the second wfc1 / wfc2 tile.
    @pl.when(k == 0)
    def _conv_stack():
        acc_scr[...] = jnp.zeros_like(acc_scr)

        # conv1: exact compact matmul (input spatial is 1x1).
        x = x_ref[...].astype(bf16)                                       # (B, 161)
        y1 = jnp.maximum(
            jnp.dot(x, w1_ref[...], preferred_element_type=f32) + b1_ref[...], 0.0
        ).astype(bf16)                                                    # (B, 9*64)

        w2 = w2_ref[...]                                                  # (64, 9*32) bf16
        b2 = b2_ref[...]                                                  # (1, 32)  f32
        w3 = w3_ref[...]                                                  # (32, 64) bf16
        b3 = b3_ref[...]                                                  # (1, 64)  f32

        # conv2 as 9 taps: one dot per conv1 output position against all stacked taps.
        contrib = [
            jnp.dot(y1[:, p * C1:(p + 1) * C1], w2, preferred_element_type=f32)
            for p in range(S1 * S1)                                       # 9 x (B, 288)
        ]

        # Per conv2 output position: sum the valid tap contributions (lane-slice adds),
        # ReLU, apply the conv3 1x1 mixer, and store straight into the y3 scratch.
        for oy in range(S2):
            for ox in range(S2):
                acc = b2
                for ky in range(3):
                    iy = oy + ky - 2
                    if not 0 <= iy < S1:
                        continue
                    for kx in range(3):
                        ix = ox + kx - 2
                        if not 0 <= ix < S1:
                            continue
                        p = iy * S1 + ix
                        t = ky * 3 + kx
                        acc = acc + contrib[p][:, t * C2:(t + 1) * C2]
                y2_s = jnp.maximum(acc, 0.0).astype(bf16)                 # (B, 32)
                y3_s = jnp.maximum(
                    jnp.dot(y2_s, w3, preferred_element_type=f32) + b3, 0.0)  # (B, 64)
                s = oy * S2 + ox
                y3_scr[:, s * C3:(s + 1) * C3] = y3_s

    # Every step: one 256-column half of fc1 and the matching 256-row slice of fc2.
    y3 = y3_scr[...].astype(bf16)                                         # (B, 1600)
    h = jnp.maximum(
        jnp.dot(y3, wfc1_ref[...], preferred_element_type=f32) + bfc1_ref[...], 0.0)
    acc_scr[...] += jnp.dot(h.astype(bf16), wfc2_ref[...],
                            preferred_element_type=f32)                   # (B, nout)

    @pl.when(k == pl.num_programs(0) - 1)
    def _finalize():
        o_ref[...] = (acc_scr[...] + bfc2_ref[...]).astype(o_ref.dtype)


def _fused_pallas(x2d, p):
    B = x2d.shape[0]
    nout = p["wfc2"].shape[1]
    const = lambda k: (0, 0)
    return pl.pallas_call(
        _fused_kernel,
        out_shape=jax.ShapeDtypeStruct((B, nout), jnp.float32),
        grid_spec=pltpu.PrefetchScalarGridSpec(
            num_scalar_prefetch=0,
            grid=(N_STEPS,),
            in_specs=[
                pl.BlockSpec((B, C_IN), const),                       # x
                pl.BlockSpec((C_IN, S1 * S1 * C1), const),            # conv1 packed map (bf16)
                pl.BlockSpec((1, S1 * S1 * C1), const),               # conv1 bias (tiled, f32)
                pl.BlockSpec((C1, 9 * C2), const),                    # conv2 stacked taps (bf16)
                pl.BlockSpec((1, C2), const),                         # conv2 bias
                pl.BlockSpec((C2, C3), const),                        # conv3 1x1 mixer (bf16)
                pl.BlockSpec((1, C3), const),                         # conv3 bias
                pl.BlockSpec((FC1_K, FC1_TN), lambda k: (0, k)),      # fc1 weight, N-tiled (bf16)
                pl.BlockSpec((1, FC1_TN), lambda k: (0, k)),          # fc1 bias (+ border fold)
                pl.BlockSpec((FC1_TN, nout), lambda k: (k, 0)),       # fc2 weight, K-tiled (bf16)
                pl.BlockSpec((1, nout), const),                       # fc2 bias
            ],
            out_specs=pl.BlockSpec((B, nout), const),
            scratch_shapes=[
                pltpu.VMEM((B, FC1_K), jnp.float32),                  # conv3 activations
                pltpu.VMEM((B, nout), jnp.float32),                   # fc2 accumulator
            ],
        ),
        compiler_params=pltpu.CompilerParams(
            # Step 1 depends on step 0's scratch -> sequential.
            dimension_semantics=("arbitrary",),
        ),
    )(x2d, p["w1"], p["b1"], p["w2"], p["b2"], p["w3"], p["b3"],
      p["wfc1"], p["bfc1"], p["wfc2"], p["bfc2"])


def binary_coding_forward(x, packed, *, num_binary):
    """x: (B, 161, 1, 1) NCHW float32 -> (B, num_binary) float32."""
    if x.shape[1:] != (C_IN, 1, 1):
        raise ValueError(
            f"binaryCoding expects (B, {C_IN}, 1, 1) input (so the conv stack ends at "
            f"7x7 for Linear(64*7*7, 500)); got {x.shape}")
    if packed["wfc2"].shape[1] != num_binary:
        raise ValueError("packed params built for a different num_binary")
    B = x.shape[0]
    return _fused_pallas(x.reshape(B, C_IN), packed)


# -----------------------------------------------------------------------------
# Parameter init (mirrors kaiming_normal fan_out / xavier_uniform of the module)
# -----------------------------------------------------------------------------
def _kaiming_normal_fan_out(key, shape):
    oc, _, kh, kw = shape
    std = (2.0 / (oc * kh * kw)) ** 0.5
    return std * jax.random.normal(key, shape, dtype=jnp.float32)


def _xavier_uniform(key, shape):
    fan_out, fan_in = shape
    a = (6.0 / (fan_in + fan_out)) ** 0.5
    return jax.random.uniform(key, shape, minval=-a, maxval=a, dtype=jnp.float32)


def init_params(key, num_binary):
    ks = jax.random.split(key, 10)
    return {
        "c1_w": _kaiming_normal_fan_out(ks[0], (C1, C_IN, 3, 3)),
        "c1_b": 0.01 * jax.random.normal(ks[1], (C1,), dtype=jnp.float32),
        "c2_w": _kaiming_normal_fan_out(ks[2], (C2, C1, 3, 3)),
        "c2_b": 0.01 * jax.random.normal(ks[3], (C2,), dtype=jnp.float32),
        "c3_w": _kaiming_normal_fan_out(ks[4], (C3, C2, 1, 1)),
        "c3_b": 0.01 * jax.random.normal(ks[5], (C3,), dtype=jnp.float32),
        "fc1_w": _xavier_uniform(ks[6], (FC1_OUT, C3 * S3 * S3)),   # torch (out, in)
        "fc1_b": 0.01 * jax.random.normal(ks[7], (FC1_OUT,), dtype=jnp.float32),
        "fc2_w": _xavier_uniform(ks[8], (num_binary, FC1_OUT)),
        "fc2_b": 0.01 * jax.random.normal(ks[9], (num_binary,), dtype=jnp.float32),
    }


# -----------------------------------------------------------------------------
# One-time weight repack (pure JAX, runs once at init; nothing here is per-forward)
# -----------------------------------------------------------------------------
def pack_params(params):
    f32, bf16 = jnp.float32, jnp.bfloat16

    def conv_nchw(x, w, pad):
        return lax.conv_general_dilated(
            x, w, window_strides=(1, 1), padding=((pad, pad), (pad, pad)),
            dimension_numbers=("NCHW", "OIHW", "NCHW"))

    # conv1: 1x1 input spatial -> exact (161 -> 3*3*64) map via the channel basis.
    # Output column order: (oy, ox, oc).
    eye1 = jnp.eye(C_IN, dtype=f32).reshape(C_IN, C_IN, 1, 1)
    w1p = conv_nchw(eye1, params["c1_w"], 2)                       # (161, 64, 3, 3)
    w1p = w1p.transpose(0, 2, 3, 1).reshape(C_IN, S1 * S1 * C1)
    b1p = jnp.tile(params["c1_b"], S1 * S1).reshape(1, -1)

    # conv2: just the nine taps, stacked along columns as (ky, kx, out_c).
    w2s = params["c2_w"].transpose(1, 2, 3, 0).reshape(C1, 9 * C2)  # (64, 288)
    b2p = params["c2_b"].reshape(1, C2)

    # conv3 (1x1): pure channel mixer for the interior 5x5 of the 7x7 output.
    w3m = params["c3_w"].reshape(C3, C2).T                         # (32, 64)
    b3r = params["c3_b"].reshape(1, C3)

    # fc1: border positions of the 7x7 map are the constant relu(b3) -> fold their
    # contribution into the bias; keep only the 25*64 interior rows, permuted to the
    # kernel's (spatial-major, channel-minor) layout.
    fw = params["fc1_w"].reshape(FC1_OUT, C3, S3, S3)              # [n, c, oy, ox]
    w_int = fw[:, :, 1:1 + S2, 1:1 + S2]                           # (500, 64, 5, 5)
    wfc1 = w_int.transpose(2, 3, 1, 0).reshape(FC1_K, FC1_OUT)     # rows = s25*64 + c
    border = jnp.ones((S3, S3), f32).at[1:1 + S2, 1:1 + S2].set(0.0)
    relu_b3 = jnp.maximum(params["c3_b"], 0.0)
    bias_fold = jnp.einsum("nchw,hw->nc", fw, border) @ relu_b3    # (500,)
    bfc1 = params["fc1_b"] + bias_fold
    wfc1 = jnp.pad(wfc1, ((0, 0), (0, FC1_OUT_PAD - FC1_OUT)))     # lane-dense N: 500 -> 512
    bfc1 = jnp.pad(bfc1, (0, FC1_OUT_PAD - FC1_OUT)).reshape(1, FC1_OUT_PAD)

    # fc2: pre-transpose to (K, N); pad only K (500 -> 512, zero rows).  N stays at
    # num_binary -- no 4x padded weight stream.
    num_binary = params["fc2_w"].shape[0]
    wfc2 = jnp.pad(params["fc2_w"].T, ((0, FC1_OUT_PAD - FC1_OUT), (0, 0)))
    bfc2 = params["fc2_b"].reshape(1, num_binary)

    return dict(
        w1=w1p.astype(bf16), b1=b1p.astype(f32),
        w2=w2s.astype(bf16), b2=b2p.astype(f32),
        w3=w3m.astype(bf16), b3=b3r.astype(f32),
        wfc1=wfc1.astype(bf16), bfc1=bfc1.astype(f32),
        wfc2=wfc2.astype(bf16), bfc2=bfc2.astype(f32),
    )


# -----------------------------------------------------------------------------
# References for correctness checks
# -----------------------------------------------------------------------------
def packed_reference_forward(x2d, p):
    """Plain-JAX mirror of the kernel math on the SAME bf16-packed weights (tight check)."""
    f32, bf16 = jnp.float32, jnp.bfloat16
    y1 = jax.nn.relu(
        jnp.dot(x2d.astype(bf16), p["w1"], preferred_element_type=f32) + p["b1"]
    ).astype(bf16)
    contrib = [jnp.dot(y1[:, i * C1:(i + 1) * C1], p["w2"], preferred_element_type=f32)
               for i in range(S1 * S1)]
    parts = []
    for oy in range(S2):
        for ox in range(S2):
            acc = p["b2"]
            for ky in range(3):
                iy = oy + ky - 2
                if not 0 <= iy < S1:
                    continue
                for kx in range(3):
                    ix = ox + kx - 2
                    if not 0 <= ix < S1:
                        continue
                    t = ky * 3 + kx
                    acc = acc + contrib[iy * S1 + ix][:, t * C2:(t + 1) * C2]
            y2_s = jax.nn.relu(acc).astype(bf16)
            parts.append(jax.nn.relu(
                jnp.dot(y2_s, p["w3"], preferred_element_type=f32) + p["b3"]))
    y3 = jnp.concatenate(parts, axis=1).astype(bf16)               # (B, 1600)
    h = jax.nn.relu(jnp.dot(y3, p["wfc1"], preferred_element_type=f32) + p["bfc1"])
    return jnp.dot(h.astype(bf16), p["wfc2"], preferred_element_type=f32) + p["bfc2"]


def reference_forward(x, params):
    """Exact f32 semantics of the torch module (loose check; bf16 quantization error)."""
    def conv_relu(x, w, b, pad):
        y = lax.conv_general_dilated(
            x, w, (1, 1), ((pad, pad), (pad, pad)),
            dimension_numbers=("NCHW", "OIHW", "NCHW"))
        return jax.nn.relu(y + b[None, :, None, None])
    y = conv_relu(x, params["c1_w"], params["c1_b"], 2)
    y = conv_relu(y, params["c2_w"], params["c2_b"], 2)
    y = conv_relu(y, params["c3_w"], params["c3_b"], 1)
    y = y.reshape(y.shape[0], -1)                                  # NCHW flatten
    y = jax.nn.relu(y @ params["fc1_w"].T + params["fc1_b"])
    return y @ params["fc2_w"].T + params["fc2_b"]


if __name__ == "__main__":
    num_binary = 32
    batch = 2

    key = jax.random.PRNGKey(0)
    k_params, k_x = jax.random.split(key)
    params = init_params(k_params, num_binary)
    packed = pack_params(params)          # one-time repack, not part of the forward

    # Input implied by the module: (B, 161, 1, 1) NCHW, so the conv stack ends at
    # (B, 64, 7, 7) and matches Linear(64*7*7, 500).
    x = jax.random.normal(k_x, (batch, C_IN, 1, 1), dtype=jnp.float32)

    fwd = jax.jit(functools.partial(binary_coding_forward, num_binary=num_binary))
    out = jax.block_until_ready(fwd(x, packed))

    assert out.shape == (batch, num_binary), out.shape
    assert out.dtype == jnp.float32

    # Tight check vs. a plain-JAX mirror of the packed bf16 math: catches kernel,
    # BlockSpec and accumulation bugs without bf16 slack masking them.
    ref_p = packed_reference_forward(x.reshape(batch, C_IN), packed)
    assert jnp.allclose(out, ref_p, rtol=5e-4, atol=5e-4), \
        float(jnp.max(jnp.abs(out - ref_p)))

    # Loose check vs. the exact f32 module semantics: catches packing/layout bugs;
    # tolerance reflects the deliberate bf16 weight/activation quantization.
    ref = reference_forward(x, params)
    assert jnp.allclose(out, ref, rtol=6e-2, atol=6e-2), \
        float(jnp.max(jnp.abs(out - ref)))

    print("KERNEL_OK")
</pallas_src>

<mosaic_0001>
module attributes {stable_mosaic.version = 11 : i64} {
  func.func @_fused_kernel(%arg0: i32, %arg1: memref<2x161xf32, #tpu.memory_space<vmem>>, %arg2: memref<161x576xbf16, #tpu.memory_space<vmem>>, %arg3: memref<1x576xf32, #tpu.memory_space<vmem>>, %arg4: memref<64x288xbf16, #tpu.memory_space<vmem>>, %arg5: memref<1x32xf32, #tpu.memory_space<vmem>>, %arg6: memref<32x64xbf16, #tpu.memory_space<vmem>>, %arg7: memref<1x64xf32, #tpu.memory_space<vmem>>, %arg8: memref<1600x256xbf16, #tpu.memory_space<vmem>>, %arg9: memref<1x256xf32, #tpu.memory_space<vmem>>, %arg10: memref<256x32xbf16, #tpu.memory_space<vmem>>, %arg11: memref<1x32xf32, #tpu.memory_space<vmem>>, %arg12: memref<2x32xf32, #tpu.memory_space<vmem>>, %arg13: memref<2x1600xf32, #tpu.memory_space<vmem>>, %arg14: memref<2x32xf32, #tpu.memory_space<vmem>>) attributes {dimension_semantics = [#tpu.dimension_semantics<arbitrary>], iteration_bounds = array<i64: 2>, scalar_prefetch = 0 : i64, scratch_operands = 2 : i64, tpu.core_type = #tpu.core_type<tc>, window_params = [{pipeline_mode = #tpu.pipeline_mode<synchronous>, transform_indices = @transform_0, window_bounds = array<i64: 2, 161>}, {pipeline_mode = #tpu.pipeline_mode<synchronous>, transform_indices = @transform_1, window_bounds = array<i64: 161, 576>}, {pipeline_mode = #tpu.pipeline_mode<synchronous>, transform_indices = @transform_2, window_bounds = array<i64: 1, 576>}, {pipeline_mode = #tpu.pipeline_mode<synchronous>, transform_indices = @transform_3, window_bounds = array<i64: 64, 288>}, {pipeline_mode = #tpu.pipeline_mode<synchronous>, transform_indices = @transform_4, window_bounds = array<i64: 1, 32>}, {pipeline_mode = #tpu.pipeline_mode<synchronous>, transform_indices = @transform_5, window_bounds = array<i64: 32, 64>}, {pipeline_mode = #tpu.pipeline_mode<synchronous>, transform_indices = @transform_6, window_bounds = array<i64: 1, 64>}, {transform_indices = @transform_7, window_bounds = array<i64: 1600, 256>}, {transform_indices = @transform_8, window_bounds = array<i64: 1, 256>}, {transform_indices = @transform_9, window_bounds = array<i64: 256, 32>}, {pipeline_mode = #tpu.pipeline_mode<synchronous>, transform_indices = @transform_10, window_bounds = array<i64: 1, 32>}, {pipeline_mode = #tpu.pipeline_mode<synchronous>, transform_indices = @transform_11, window_bounds = array<i64: 2, 32>}]} {
    %c0_i32 = arith.constant 0 : i32
    %0 = arith.cmpi eq, %arg0, %c0_i32 : i32
    %1 = arith.extui %0 : i1 to i32
    %c0_i32_0 = arith.constant 0 : i32
    %2 = arith.cmpi ne, %1, %c0_i32_0 : i32
    scf.if %2 {
      %cst_15 = arith.constant 0.000000e+00 : f32
      %21 = vector.broadcast %cst_15 : f32 to vector<2x32xf32>
      %c0_16 = arith.constant 0 : index
      %c0_17 = arith.constant 0 : index
      %22 = vector.load %arg14[%c0_16, %c0_17] : memref<2x32xf32, #tpu.memory_space<vmem>>, vector<2x32xf32>
      tpu.vector_store %arg14[%c0_16, %c0_17], %21 {strides = array<i32>} : memref<2x32xf32, #tpu.memory_space<vmem>>, vector<2x32xf32>,
      %c0_18 = arith.constant 0 : index
      %c0_19 = arith.constant 0 : index
      %23 = vector.load %arg1[%c0_18, %c0_19] : memref<2x161xf32, #tpu.memory_space<vmem>>, vector<2x161xf32>
      %24 = arith.truncf %23 : vector<2x161xf32> to vector<2x161xbf16>
      %c0_20 = arith.constant 0 : index
      %c0_21 = arith.constant 0 : index
      %25 = vector.load %arg2[%c0_20, %c0_21] : memref<161x576xbf16, #tpu.memory_space<vmem>>, vector<161x576xbf16>
      %cst_22 = arith.constant dense<0.000000e+00> : vector<2x576xf32>
      %26 = tpu.matmul %24, %25, %cst_22 {dimension_numbers = #tpu.dot_dimension_numbers<[1], [0], [0], [1], [0, 0, 1, 1], [], []>} : vector<2x161xbf16>, vector<161x576xbf16>, vector<2x576xf32> -> vector<2x576xf32>
      %c0_23 = arith.constant 0 : index
      %c0_24 = arith.constant 0 : index
      %27 = vector.load %arg3[%c0_23, %c0_24] : memref<1x576xf32, #tpu.memory_space<vmem>>, vector<1x576xf32>
      %28 = vector.broadcast %27 : vector<1x576xf32> to vector<2x576xf32>
      %29 = arith.addf %26, %28 : vector<2x576xf32>
      %cst_25 = arith.constant 0.000000e+00 : f32
      %30 = vector.broadcast %cst_25 : f32 to vector<2x576xf32>
      %31 = arith.maximumf %29, %30 : vector<2x576xf32>
      %32 = arith.truncf %31 : vector<2x576xf32> to vector<2x576xbf16>
      %c0_26 = arith.constant 0 : index
      %c0_27 = arith.constant 0 : index
      %33 = vector.load %arg4[%c0_26, %c0_27] : memref<64x288xbf16, #tpu.memory_space<vmem>>, vector<64x288xbf16>
      %c0_28 = arith.constant 0 : index
      %c0_29 = arith.constant 0 : index
      %34 = vector.load %arg5[%c0_28, %c0_29] : memref<1x32xf32, #tpu.memory_space<vmem>>, vector<1x32xf32>
      %c0_30 = arith.constant 0 : index
      %c0_31 = arith.constant 0 : index
      %35 = vector.load %arg6[%c0_30, %c0_31] : memref<32x64xbf16, #tpu.memory_space<vmem>>, vector<32x64xbf16>
      %c0_32 = arith.constant 0 : index
      %c0_33 = arith.constant 0 : index
      %36 = vector.load %arg7[%c0_32, %c0_33] : memref<1x64xf32, #tpu.memory_space<vmem>>, vector<1x64xf32>
      %37 = vector.extract_strided_slice %32 {offsets = [0, 0], sizes = [2, 64], strides = [1, 1]} : vector<2x576xbf16> to vector<2x64xbf16>
      %cst_34 = arith.constant dense<0.000000e+00> : vector<2x288xf32>
      %38 = tpu.matmul %37, %33, %cst_34 {dimension_numbers = #tpu.dot_dimension_numbers<[1], [0], [0], [1], [0, 0, 1, 1], [], []>} : vector<2x64xbf16>, vector<64x288xbf16>, vector<2x288xf32> -> vector<2x288xf32>
      %39 = vector.extract_strided_slice %32 {offsets = [0, 64], sizes = [2, 64], strides = [1, 1]} : vector<2x576xbf16> to vector<2x64xbf16>
      %cst_35 = arith.constant dense<0.000000e+00> : vector<2x288xf32>
      %40 = tpu.matmul %39, %33, %cst_35 {dimension_numbers = #tpu.dot_dimension_numbers<[1], [0], [0], [1], [0, 0, 1, 1], [], []>} : vector<2x64xbf16>, vector<64x288xbf16>, vector<2x288xf32> -> vector<2x288xf32>
      %41 = vector.extract_strided_slice %32 {offsets = [0, 128], sizes = [2, 64], strides = [1, 1]} : vector<2x576xbf16> to vector<2x64xbf16>
      %cst_36 = arith.constant dense<0.000000e+00> : vector<2x288xf32>
      %42 = tpu.matmul %41, %33, %cst_36 {dimension_numbers = #tpu.dot_dimension_numbers<[1], [0], [0], [1], [0, 0, 1, 1], [], []>} : vector<2x64xbf16>, vector<64x288xbf16>, vector<2x288xf32> -> vector<2x288xf32>
      %43 = vector.extract_strided_slice %32 {offsets = [0, 192], sizes = [2, 64], strides = [1, 1]} : vector<2x576xbf16> to vector<2x64xbf16>
      %cst_37 = arith.constant dense<0.000000e+00> : vector<2x288xf32>
      %44 = tpu.matmul %43, %33, %cst_37 {dimension_numbers = #tpu.dot_dimension_numbers<[1], [0], [0], [1], [0, 0, 1, 1], [], []>} : vector<2x64xbf16>, vector<64x288xbf16>, vector<2x288xf32> -> vector<2x288xf32>
      %45 = vector.extract_strided_slice %32 {offsets = [0, 256], sizes = [2, 64], strides = [1, 1]} : vector<2x576xbf16> to vector<2x64xbf16>
      %cst_38 = arith.constant dense<0.000000e+00> : vector<2x288xf32>
      %46 = tpu.matmul %45, %33, %cst_38 {dimension_numbers = #tpu.dot_dimension_numbers<[1], [0], [0], [1], [0, 0, 1, 1], [], []>} : vector<2x64xbf16>, vector<64x288xbf16>, vector<2x288xf32> -> vector<2x288xf32>
      %47 = vector.extract_strided_slice %32 {offsets = [0, 320], sizes = [2, 64], strides = [1, 1]} : vector<2x576xbf16> to vector<2x64xbf16>
      %cst_39 = arith.constant dense<0.000000e+00> : vector<2x288xf32>
      %48 = tpu.matmul %47, %33, %cst_39 {dimension_numbers = #tpu.dot_dimension_numbers<[1], [0], [0], [1], [0, 0, 1, 1], [], []>} : vector<2x64xbf16>, vector<64x288xbf16>, vector<2x288xf32> -> vector<2x288xf32>
      %49 = vector.extract_strided_slice %32 {offsets = [0, 384], sizes = [2, 64], strides = [1, 1]} : vector<2x576xbf16> to vector<2x64xbf16>
      %cst_40 = arith.constant dense<0.000000e+00> : vector<2x288xf32>
      %50 = tpu.matmul %49, %33, %cst_40 {dimension_numbers = #tpu.dot_dimension_numbers<[1], [0], [0], [1], [0, 0, 1, 1], [], []>} : vector<2x64xbf16>, vector<64x288xbf16>, vector<2x288xf32> -> vector<2x288xf32>
      %51 = vector.extract_strided_slice %32 {offsets = [0, 448], sizes = [2, 64], strides = [1, 1]} : vector<2x576xbf16> to vector<2x64xbf16>
      %cst_41 = arith.constant dense<0.000000e+00> : vector<2x288xf32>
      %52 = tpu.matmul %51, %33, %cst_41 {dimension_numbers = #tpu.dot_dimension_numbers<[1], [0], [0], [1], [0, 0, 1, 1], [], []>} : vector<2x64xbf16>, vector<64x288xbf16>, vector<2x288xf32> -> vector<2x288xf32>
      %53 = vector.extract_strided_slice %32 {offsets = [0, 512], sizes = [2, 64], strides = [1, 1]} : vector<2x576xbf16> to vector<2x64xbf16>
      %cst_42 = arith.constant dense<0.000000e+00> : vector<2x288xf32>
      %54 = tpu.matmul %53, %33, %cst_42 {dimension_numbers = #tpu.dot_dimension_numbers<[1], [0], [0], [1], [0, 0, 1, 1], [], []>} : vector<2x64xbf16>, vector<64x288xbf16>, vector<2x288xf32> -> vector<2x288xf32>
      %55 = vector.extract_strided_slice %38 {offsets = [0, 256], sizes = [2, 32], strides = [1, 1]} : vector<2x288xf32> to vector<2x32xf32>
      %56 = vector.broadcast %34 : vector<1x32xf32> to vector<2x32xf32>
      %57 = arith.addf %56, %55 : vector<2x32xf32>
      %cst_43 = arith.constant 0.000000e+00 : f32
      %58 = vector.broadcast %cst_43 : f32 to vector<2x32xf32>
      %59 = arith.maximumf %57, %58 : vector<2x32xf32>
      %60 = arith.truncf %59 : vector<2x32xf32> to vector<2x32xbf16>
      %cst_44 = arith.constant dense<0.000000e+00> : vector<2x64xf32>
      %61 = tpu.matmul %60, %35, %cst_44 {dimension_numbers = #tpu.dot_dimension_numbers<[1], [0], [0], [1], [0, 0, 1, 1], [], []>} : vector<2x32xbf16>, vector<32x64xbf16>, vector<2x64xf32> -> vector<2x64xf32>
      %62 = vector.broadcast %36 : vector<1x64xf32> to vector<2x64xf32>
      %63 = arith.addf %61, %62 : vector<2x64xf32>
      %cst_45 = arith.constant 0.000000e+00 : f32
      %64 = vector.broadcast %cst_45 : f32 to vector<2x64xf32>
      %65 = arith.maximumf %63, %64 : vector<2x64xf32>
      %c0_46 = arith.constant 0 : index
      %c0_47 = arith.constant 0 : index
      %66 = vector.load %arg13[%c0_46, %c0_47] : memref<2x1600xf32, #tpu.memory_space<vmem>>, vector<2x64xf32>
      tpu.vector_store %arg13[%c0_46, %c0_47], %65 {strides = array<i32>} : memref<2x1600xf32, #tpu.memory_space<vmem>>, vector<2x64xf32>,
      %67 = vector.extract_strided_slice %38 {offsets = [0, 224], sizes = [2, 32], strides = [1, 1]} : vector<2x288xf32> to vector<2x32xf32>
      %68 = vector.broadcast %34 : vector<1x32xf32> to vector<2x32xf32>
      %69 = arith.addf %68, %67 : vector<2x32xf32>
      %70 = vector.extract_strided_slice %40 {offsets = [0, 256], sizes = [2, 32], strides = [1, 1]} : vector<2x288xf32> to vector<2x32xf32>
      %71 = arith.addf %69, %70 : vector<2x32xf32>
      %cst_48 = arith.constant 0.000000e+00 : f32
      %72 = vector.broadcast %cst_48 : f32 to vector<2x32xf32>
      %73 = arith.maximumf %71, %72 : vector<2x32xf32>
      %74 = arith.truncf %73 : vector<2x32xf32> to vector<2x32xbf16>
      %cst_49 = arith.constant dense<0.000000e+00> : vector<2x64xf32>
      %75 = tpu.matmul %74, %35, %cst_49 {dimension_numbers = #tpu.dot_dimension_numbers<[1], [0], [0], [1], [0, 0, 1, 1], [], []>} : vector<2x32xbf16>, vector<32x64xbf16>, vector<2x64xf32> -> vector<2x64xf32>
      %76 = vector.broadcast %36 : vector<1x64xf32> to vector<2x64xf32>
      %77 = arith.addf %75, %76 : vector<2x64xf32>
      %cst_50 = arith.constant 0.000000e+00 : f32
      %78 = vector.broadcast %cst_50 : f32 to vector<2x64xf32>
      %79 = arith.maximumf %77, %78 : vector<2x64xf32>
      %c0_51 = arith.constant 0 : index
      %c64 = arith.constant 64 : index
      %80 = vector.load %arg13[%c0_51, %c64] : memref<2x1600xf32, #tpu.memory_space<vmem>>, vector<2x64xf32>
      tpu.vector_store %arg13[%c0_51, %c64], %79 {strides = array<i32>} : memref<2x1600xf32, #tpu.memory_space<vmem>>, vector<2x64xf32>,
      %81 = vector.extract_strided_slice %38 {offsets = [0, 192], sizes = [2, 32], strides = [1, 1]} : vector<2x288xf32> to vector<2x32xf32>
      %82 = vector.broadcast %34 : vector<1x32xf32> to vector<2x32xf32>
      %83 = arith.addf %82, %81 : vector<2x32xf32>
      %84 = vector.extract_strided_slice %40 {offsets = [0, 224], sizes = [2, 32], strides = [1, 1]} : vector<2x288xf32> to vector<2x32xf32>
      %85 = arith.addf %83, %84 : vector<2x32xf32>
      %86 = vector.extract_strided_slice %42 {offsets = [0, 256], sizes = [2, 32], strides = [1, 1]} : vector<2x288xf32> to vector<2x32xf32>
      %87 = arith.addf %85, %86 : vector<2x32xf32>
      %cst_52 = arith.constant 0.000000e+00 : f32
      %88 = vector.broadcast %cst_52 : f32 to vector<2x32xf32>
      %89 = arith.maximumf %87, %88 : vector<2x32xf32>
      %90 = arith.truncf %89 : vector<2x32xf32> to vector<2x32xbf16>
      %cst_53 = arith.constant dense<0.000000e+00> : vector<2x64xf32>
      %91 = tpu.matmul %90, %35, %cst_53 {dimension_numbers = #tpu.dot_dimension_numbers<[1], [0], [0], [1], [0, 0, 1, 1], [], []>} : vector<2x32xbf16>, vector<32x64xbf16>, vector<2x64xf32> -> vector<2x64xf32>
      %92 = vector.broadcast %36 : vector<1x64xf32> to vector<2x64xf32>
      %93 = arith.addf %91, %92 : vector<2x64xf32>
      %cst_54 = arith.constant 0.000000e+00 : f32
      %94 = vector.broadcast %cst_54 : f32 to vector<2x64xf32>
      %95 = arith.maximumf %93, %94 : vector<2x64xf32>
      %c0_55 = arith.constant 0 : index
      %c128 = arith.constant 128 : index
      %96 = vector.load %arg13[%c0_55, %c128] : memref<2x1600xf32, #tpu.memory_space<vmem>>, vector<2x64xf32>
      tpu.vector_store %arg13[%c0_55, %c128], %95 {strides = array<i32>} : memref<2x1600xf32, #tpu.memory_space<vmem>>, vector<2x64xf32>,
      %97 = vector.extract_strided_slice %40 {offsets = [0, 192], sizes = [2, 32], strides = [1, 1]} : vector<2x288xf32> to vector<2x32xf32>
      %98 = vector.broadcast %34 : vector<1x32xf32> to vector<2x32xf32>
      %99 = arith.addf %98, %97 : vector<2x32xf32>
      %100 = vector.extract_strided_slice %42 {offsets = [0, 224], sizes = [2, 32], strides = [1, 1]} : vector<2x288xf32> to vector<2x32xf32>
      %101 = arith.addf %99, %100 : vector<2x32xf32>
      %cst_56 = arith.constant 0.000000e+00 : f32
      %102 = vector.broadcast %cst_56 : f32 to vector<2x32xf32>
      %103 = arith.maximumf %101, %102 : vector<2x32xf32>
      %104 = arith.truncf %103 : vector<2x32xf32> to vector<2x32xbf16>
      %cst_57 = arith.constant dense<0.000000e+00> : vector<2x64xf32>
      %105 = tpu.matmul %104, %35, %cst_57 {dimension_numbers = #tpu.dot_dimension_numbers<[1], [0], [0], [1], [0, 0, 1, 1], [], []>} : vector<2x32xbf16>, vector<32x64xbf16>, vector<2x64xf32> -> vector<2x64xf32>
      %106 = vector.broadcast %36 : vector<1x64xf32> to vector<2x64xf32>
      %107 = arith.addf %105, %106 : vector<2x64xf32>
      %cst_58 = arith.constant 0.000000e+00 : f32
      %108 = vector.broadcast %cst_58 : f32 to vector<2x64xf32>
      %109 = arith.maximumf %107, %108 : vector<2x64xf32>
      %c0_59 = arith.constant 0 : index
      %c192 = arith.constant 192 : index
      %110 = vector.load %arg13[%c0_59, %c192] : memref<2x1600xf32, #tpu.memory_space<vmem>>, vector<2x64xf32>
      tpu.vector_store %arg13[%c0_59, %c192], %109 {strides = array<i32>} : memref<2x1600xf32, #tpu.memory_space<vmem>>, vector<2x64xf32>,
      %111 = vector.extract_strided_slice %42 {offsets = [0, 192], sizes = [2, 32], strides = [1, 1]} : vector<2x288xf32> to vector<2x32xf32>
      %112 = vector.broadcast %34 : vector<1x32xf32> to vector<2x32xf32>
      %113 = arith.addf %112, %111 : vector<2x32xf32>
      %cst_60 = arith.constant 0.000000e+00 : f32
      %114 = vector.broadcast %cst_60 : f32 to vector<2x32xf32>
      %115 = arith.maximumf %113, %114 : vector<2x32xf32>
      %116 = arith.truncf %115 : vector<2x32xf32> to vector<2x32xbf16>
      %cst_61 = arith.constant dense<0.000000e+00> : vector<2x64xf32>
      %117 = tpu.matmul %116, %35, %cst_61 {dimension_numbers = #tpu.dot_dimension_numbers<[1], [0], [0], [1], [0, 0, 1, 1], [], []>} : vector<2x32xbf16>, vector<32x64xbf16>, vector<2x64xf32> -> vector<2x64xf32>
      %118 = vector.broadcast %36 : vector<1x64xf32> to vector<2x64xf32>
      %119 = arith.addf %117, %118 : vector<2x64xf32>
      %cst_62 = arith.constant 0.000000e+00 : f32
      %120 = vector.broadcast %cst_62 : f32 to vector<2x64xf32>
      %121 = arith.maximumf %119, %120 : vector<2x64xf32>
      %c0_63 = arith.constant 0 : index
      %c256 = arith.constant 256 : index
      %122 = vector.load %arg13[%c0_63, %c256] : memref<2x1600xf32, #tpu.memory_space<vmem>>, vector<2x64xf32>
      tpu.vector_store %arg13[%c0_63, %c256], %121 {strides = array<i32>} : memref<2x1600xf32, #tpu.memory_space<vmem>>, vector<2x64xf32>,
      %123 = vector.extract_strided_slice %38 {offsets = [0, 160], sizes = [2, 32], strides = [1, 1]} : vector<2x288xf32> to vector<2x32xf32>
      %124 = vector.broadcast %34 : vector<1x32xf32> to vector<2x32xf32>
      %125 = arith.addf %124, %123 : vector<2x32xf32>
      %126 = vector.extract_strided_slice %44 {offsets = [0, 256], sizes = [2, 32], strides = [1, 1]} : vector<2x288xf32> to vector<2x32xf32>
      %127 = arith.addf %125, %126 : vector<2x32xf32>
      %cst_64 = arith.constant 0.000000e+00 : f32
      %128 = vector.broadcast %cst_64 : f32 to vector<2x32xf32>
      %129 = arith.maximumf %127, %128 : vector<2x32xf32>
      %130 = arith.truncf %129 : vector<2x32xf32> to vector<2x32xbf16>
      %cst_65 = arith.constant dense<0.000000e+00> : vector<2x64xf32>
      %131 = tpu.matmul %130, %35, %cst_65 {dimension_numbers = #tpu.dot_dimension_numbers<[1], [0], [0], [1], [0, 0, 1, 1], [], []>} : vector<2x32xbf16>, vector<32x64xbf16>, vector<2x64xf32> -> vector<2x64xf32>
      %132 = vector.broadcast %36 : vector<1x64xf32> to vector<2x64xf32>
      %133 = arith.addf %131, %132 : vector<2x64xf32>
      %cst_66 = arith.constant 0.000000e+00 : f32
      %134 = vector.broadcast %cst_66 : f32 to vector<2x64xf32>
      %135 = arith.maximumf %133, %134 : vector<2x64xf32>
      %c0_67 = arith.constant 0 : index
      %c320 = arith.constant 320 : index
      %136 = vector.load %arg13[%c0_67, %c320] : memref<2x1600xf32, #tpu.memory_space<vmem>>, vector<2x64xf32>
      tpu.vector_store %arg13[%c0_67, %c320], %135 {strides = array<i32>} : memref<2x1600xf32, #tpu.memory_space<vmem>>, vector<2x64xf32>,
      %137 = vector.extract_strided_slice %38 {offsets = [0, 128], sizes = [2, 32], strides = [1, 1]} : vector<2x288xf32> to vector<2x32xf32>
      %138 = vector.broadcast %34 : vector<1x32xf32> to vector<2x32xf32>
      %139 = arith.addf %138, %137 : vector<2x32xf32>
      %140 = vector.extract_strided_slice %40 {offsets = [0, 160], sizes = [2, 32], strides = [1, 1]} : vector<2x288xf32> to vector<2x32xf32>
      %141 = arith.addf %139, %140 : vector<2x32xf32>
      %142 = vector.extract_strided_slice %44 {offsets = [0, 224], sizes = [2, 32], strides = [1, 1]} : vector<2x288xf32> to vector<2x32xf32>
      %143 = arith.addf %141, %142 : vector<2x32xf32>
      %144 = vector.extract_strided_slice %46 {offsets = [0, 256], sizes = [2, 32], strides = [1, 1]} : vector<2x288xf32> to vector<2x32xf32>
      %145 = arith.addf %143, %144 : vector<2x32xf32>
      %cst_68 = arith.constant 0.000000e+00 : f32
      %146 = vector.broadcast %cst_68 : f32 to vector<2x32xf32>
      %147 = arith.maximumf %145, %146 : vector<2x32xf32>
      %148 = arith.truncf %147 : vector<2x32xf32> to vector<2x32xbf16>
      %cst_69 = arith.constant dense<0.000000e+00> : vector<2x64xf32>
      %149 = tpu.matmul %148, %35, %cst_69 {dimension_numbers = #tpu.dot_dimension_numbers<[1], [0], [0], [1], [0, 0, 1, 1], [], []>} : vector<2x32xbf16>, vector<32x64xbf16>, vector<2x64xf32> -> vector<2x64xf32>
      %150 = vector.broadcast %36 : vector<1x64xf32> to vector<2x64xf32>
      %151 = arith.addf %149, %150 : vector<2x64xf32>
      %cst_70 = arith.constant 0.000000e+00 : f32
      %152 = vector.broadcast %cst_70 : f32 to vector<2x64xf32>
      %153 = arith.maximumf %151, %152 : vector<2x64xf32>
      %c0_71 = arith.constant 0 : index
      %c384 = arith.constant 384 : index
      %154 = vector.load %arg13[%c0_71, %c384] : memref<2x1600xf32, #tpu.memory_space<vmem>>, vector<2x64xf32>
      tpu.vector_store %arg13[%c0_71, %c384], %153 {strides = array<i32>} : memref<2x1600xf32, #tpu.memory_space<vmem>>, vector<2x64xf32>,
      %155 = vector.extract_strided_slice %38 {offsets = [0, 96], sizes = [2, 32], strides = [1, 1]} : vector<2x288xf32> to vector<2x32xf32>
      %156 = vector.broadcast %34 : vector<1x32xf32> to vector<2x32xf32>
      %157 = arith.addf %156, %155 : vector<2x32xf32>
      %158 = vector.extract_strided_slice %40 {offsets = [0, 128], sizes = [2, 32], strides = [1, 1]} : vector<2x288xf32> to vector<2x32xf32>
      %159 = arith.addf %157, %158 : vector<2x32xf32>
      %160 = vector.extract_strided_slice %42 {offsets = [0, 160], sizes = [2, 32], strides = [1, 1]} : vector<2x288xf32> to vector<2x32xf32>
      %161 = arith.addf %159, %160 : vector<2x32xf32>
      %162 = vector.extract_strided_slice %44 {offsets = [0, 192], sizes = [2, 32], strides = [1, 1]} : vector<2x288xf32> to vector<2x32xf32>
      %163 = arith.addf %161, %162 : vector<2x32xf32>
      %164 = vector.extract_strided_slice %46 {offsets = [0, 224], sizes = [2, 32], strides = [1, 1]} : vector<2x288xf32> to vector<2x32xf32>
      %165 = arith.addf %163, %164 : vector<2x32xf32>
      %166 = vector.extract_strided_slice %48 {offsets = [0, 256], sizes = [2, 32], strides = [1, 1]} : vector<2x288xf32> to vector<2x32xf32>
      %167 = arith.addf %165, %166 : vector<2x32xf32>
      %cst_72 = arith.constant 0.000000e+00 : f32
      %168 = vector.broadcast %cst_72 : f32 to vector<2x32xf32>
      %169 = arith.maximumf %167, %168 : vector<2x32xf32>
      %170 = arith.truncf %169 : vector<2x32xf32> to vector<2x32xbf16>
      %cst_73 = arith.constant dense<0.000000e+00> : vector<2x64xf32>
      %171 = tpu.matmul %170, %35, %cst_73 {dimension_numbers = #tpu.dot_dimension_numbers<[1], [0], [0], [1], [0, 0, 1, 1], [], []>} : vector<2x32xbf16>, vector<32x64xbf16>, vector<2x64xf32> -> vector<2x64xf32>
      %172 = vector.broadcast %36 : vector<1x64xf32> to vector<2x64xf32>
      %173 = arith.addf %171, %172 : vector<2x64xf32>
      %cst_74 = arith.constant 0.000000e+00 : f32
      %174 = vector.broadcast %cst_74 : f32 to vector<2x64xf32>
      %175 = arith.maximumf %173, %174 : vector<2x64xf32>
      %c0_75 = arith.constant 0 : index
      %c448 = arith.constant 448 : index
      %176 = vector.load %arg13[%c0_75, %c448] : memref<2x1600xf32, #tpu.memory_space<vmem>>, vector<2x64xf32>
      tpu.vector_store %arg13[%c0_75, %c448], %175 {strides = array<i32>} : memref<2x1600xf32, #tpu.memory_space<vmem>>, vector<2x64xf32>,
      %177 = vector.extract_strided_slice %40 {offsets = [0, 96], sizes = [2, 32], strides = [1, 1]} : vector<2x288xf32> to vector<2x32xf32>
      %178 = vector.broadcast %34 : vector<1x32xf32> to vector<2x32xf32>
      %179 = arith.addf %178, %177 : vector<2x32xf32>
      %180 = vector.extract_strided_slice %42 {offsets = [0, 128], sizes = [2, 32], strides = [1, 1]} : vector<2x288xf32> to vector<2x32xf32>
      %181 = arith.addf %179, %180 : vector<2x32xf32>
      %182 = vector.extract_strided_slice %46 {offsets = [0, 192], sizes = [2, 32], strides = [1, 1]} : vector<2x288xf32> to vector<2x32xf32>
      %183 = arith.addf %181, %182 : vector<2x32xf32>
      %184 = vector.extract_strided_slice %48 {offsets = [0, 224], sizes = [2, 32], strides = [1, 1]} : vector<2x288xf32> to vector<2x32xf32>
      %185 = arith.addf %183, %184 : vector<2x32xf32>
      %cst_76 = arith.constant 0.000000e+00 : f32
      %186 = vector.broadcast %cst_76 : f32 to vector<2x32xf32>
      %187 = arith.maximumf %185, %186 : vector<2x32xf32>
      %188 = arith.truncf %187 : vector<2x32xf32> to vector<2x32xbf16>
      %cst_77 = arith.constant dense<0.000000e+00> : vector<2x64xf32>
      %189 = tpu.matmul %188, %35, %cst_77 {dimension_numbers = #tpu.dot_dimension_numbers<[1], [0], [0], [1], [0, 0, 1, 1], [], []>} : vector<2x32xbf16>, vector<32x64xbf16>, vector<2x64xf32> -> vector<2x64xf32>
      %190 = vector.broadcast %36 : vector<1x64xf32> to vector<2x64xf32>
      %191 = arith.addf %189, %190 : vector<2x64xf32>
      %cst_78 = arith.constant 0.000000e+00 : f32
      %192 = vector.broadcast %cst_78 : f32 to vector<2x64xf32>
      %193 = arith.maximumf %191, %192 : vector<2x64xf32>
      %c0_79 = arith.constant 0 : index
      %c512 = arith.constant 512 : index
      %194 = vector.load %arg13[%c0_79, %c512] : memref<2x1600xf32, #tpu.memory_space<vmem>>, vector<2x64xf32>
      tpu.vector_store %arg13[%c0_79, %c512], %193 {strides = array<i32>} : memref<2x1600xf32, #tpu.memory_space<vmem>>, vector<2x64xf32>,
      %195 = vector.extract_strided_slice %42 {offsets = [0, 96], sizes = [2, 32], strides = [1, 1]} : vector<2x288xf32> to vector<2x32xf32>
      %196 = vector.broadcast %34 : vector<1x32xf32> to vector<2x32xf32>
      %197 = arith.addf %196, %195 : vector<2x32xf32>
      %198 = vector.extract_strided_slice %48 {offsets = [0, 192], sizes = [2, 32], strides = [1, 1]} : vector<2x288xf32> to vector<2x32xf32>
      %199 = arith.addf %197, %198 : vector<2x32xf32>
      %cst_80 = arith.constant 0.000000e+00 : f32
      %200 = vector.broadcast %cst_80 : f32 to vector<2x32xf32>
      %201 = arith.maximumf %199, %200 : vector<2x32xf32>
      %202 = arith.truncf %201 : vector<2x32xf32> to vector<2x32xbf16>
      %cst_81 = arith.constant dense<0.000000e+00> : vector<2x64xf32>
      %203 = tpu.matmul %202, %35, %cst_81 {dimension_numbers = #tpu.dot_dimension_numbers<[1], [0], [0], [1], [0, 0, 1, 1], [], []>} : vector<2x32xbf16>, vector<32x64xbf16>, vector<2x64xf32> -> vector<2x64xf32>
      %204 = vector.broadcast %36 : vector<1x64xf32> to vector<2x64xf32>
      %205 = arith.addf %203, %204 : vector<2x64xf32>
      %cst_82 = arith.constant 0.000000e+00 : f32
      %206 = vector.broadcast %cst_82 : f32 to vector<2x64xf32>
      %207 = arith.maximumf %205, %206 : vector<2x64xf32>
      %c0_83 = arith.constant 0 : index
      %c576 = arith.constant 576 : index
      %208 = vector.load %arg13[%c0_83, %c576] : memref<2x1600xf32, #tpu.memory_space<vmem>>, vector<2x64xf32>
      tpu.vector_store %arg13[%c0_83, %c576], %207 {strides = array<i32>} : memref<2x1600xf32, #tpu.memory_space<vmem>>, vector<2x64xf32>,
      %209 = vector.extract_strided_slice %38 {offsets = [0, 64], sizes = [2, 32], strides = [1, 1]} : vector<2x288xf32> to vector<2x32xf32>
      %210 = vector.broadcast %34 : vector<1x32xf32> to vector<2x32xf32>
      %211 = arith.addf %210, %209 : vector<2x32xf32>
      %212 = vector.extract_strided_slice %44 {offsets = [0, 160], sizes = [2, 32], strides = [1, 1]} : vector<2x288xf32> to vector<2x32xf32>
      %213 = arith.addf %211, %212 : vector<2x32xf32>
      %214 = vector.extract_strided_slice %50 {offsets = [0, 256], sizes = [2, 32], strides = [1, 1]} : vector<2x288xf32> to vector<2x32xf32>
      %215 = arith.addf %213, %214 : vector<2x32xf32>
      %cst_84 = arith.constant 0.000000e+00 : f32
      %216 = vector.broadcast %cst_84 : f32 to vector<2x32xf32>
      %217 = arith.maximumf %215, %216 : vector<2x32xf32>
      %218 = arith.truncf %217 : vector<2x32xf32> to vector<2x32xbf16>
      %cst_85 = arith.constant dense<0.000000e+00> : vector<2x64xf32>
      %219 = tpu.matmul %218, %35, %cst_85 {dimension_numbers = #tpu.dot_dimension_numbers<[1], [0], [0], [1], [0, 0, 1, 1], [], []>} : vector<2x32xbf16>, vector<32x64xbf16>, vector<2x64xf32> -> vector<2x64xf32>
      %220 = vector.broadcast %36 : vector<1x64xf32> to vector<2x64xf32>
      %221 = arith.addf %219, %220 : vector<2x64xf32>
      %cst_86 = arith.constant 0.000000e+00 : f32
      %222 = vector.broadcast %cst_86 : f32 to vector<2x64xf32>
      %223 = arith.maximumf %221, %222 : vector<2x64xf32>
      %c0_87 = arith.constant 0 : index
      %c640 = arith.constant 640 : index
      %224 = vector.load %arg13[%c0_87, %c640] : memref<2x1600xf32, #tpu.memory_space<vmem>>, vector<2x64xf32>
      tpu.vector_store %arg13[%c0_87, %c640], %223 {strides = array<i32>} : memref<2x1600xf32, #tpu.memory_space<vmem>>, vector<2x64xf32>,
      %225 = vector.extract_strided_slice %38 {offsets = [0, 32], sizes = [2, 32], strides = [1, 1]} : vector<2x288xf32> to vector<2x32xf32>
      %226 = vector.broadcast %34 : vector<1x32xf32> to vector<2x32xf32>
      %227 = arith.addf %226, %225 : vector<2x32xf32>
      %228 = vector.extract_strided_slice %40 {offsets = [0, 64], sizes = [2, 32], strides = [1, 1]} : vector<2x288xf32> to vector<2x32xf32>
      %229 = arith.addf %227, %228 : vector<2x32xf32>
      %230 = vector.extract_strided_slice %44 {offsets = [0, 128], sizes = [2, 32], strides = [1, 1]} : vector<2x288xf32> to vector<2x32xf32>
      %231 = arith.addf %229, %230 : vector<2x32xf32>
      %232 = vector.extract_strided_slice %46 {offsets = [0, 160], sizes = [2, 32], strides = [1, 1]} : vector<2x288xf32> to vector<2x32xf32>
      %233 = arith.addf %231, %232 : vector<2x32xf32>
      %234 = vector.extract_strided_slice %50 {offsets = [0, 224], sizes = [2, 32], strides = [1, 1]} : vector<2x288xf32> to vector<2x32xf32>
      %235 = arith.addf %233, %234 : vector<2x32xf32>
      %236 = vector.extract_strided_slice %52 {offsets = [0, 256], sizes = [2, 32], strides = [1, 1]} : vector<2x288xf32> to vector<2x32xf32>
      %237 = arith.addf %235, %236 : vector<2x32xf32>
      %cst_88 = arith.constant 0.000000e+00 : f32
      %238 = vector.broadcast %cst_88 : f32 to vector<2x32xf32>
      %239 = arith.maximumf %237, %238 : vector<2x32xf32>
      %240 = arith.truncf %239 : vector<2x32xf32> to vector<2x32xbf16>
      %cst_89 = arith.constant dense<0.000000e+00> : vector<2x64xf32>
      %241 = tpu.matmul %240, %35, %cst_89 {dimension_numbers = #tpu.dot_dimension_numbers<[1], [0], [0], [1], [0, 0, 1, 1], [], []>} : vector<2x32xbf16>, vector<32x64xbf16>, vector<2x64xf32> -> vector<2x64xf32>
      %242 = vector.broadcast %36 : vector<1x64xf32> to vector<2x64xf32>
      %243 = arith.addf %241, %242 : vector<2x64xf32>
      %cst_90 = arith.constant 0.000000e+00 : f32
      %244 = vector.broadcast %cst_90 : f32 to vector<2x64xf32>
      %245 = arith.maximumf %243, %244 : vector<2x64xf32>
      %c0_91 = arith.constant 0 : index
      %c704 = arith.constant 704 : index
      %246 = vector.load %arg13[%c0_91, %c704] : memref<2x1600xf32, #tpu.memory_space<vmem>>, vector<2x64xf32>
      tpu.vector_store %arg13[%c0_91, %c704], %245 {strides = array<i32>} : memref<2x1600xf32, #tpu.memory_space<vmem>>, vector<2x64xf32>,
      %247 = vector.extract_strided_slice %38 {offsets = [0, 0], sizes = [2, 32], strides = [1, 1]} : vector<2x288xf32> to vector<2x32xf32>
      %248 = vector.broadcast %34 : vector<1x32xf32> to vector<2x32xf32>
      %249 = arith.addf %248, %247 : vector<2x32xf32>
      %250 = vector.extract_strided_slice %40 {offsets = [0, 32], sizes = [2, 32], strides = [1, 1]} : vector<2x288xf32> to vector<2x32xf32>
      %251 = arith.addf %249, %250 : vector<2x32xf32>
      %252 = vector.extract_strided_slice %42 {offsets = [0, 64], sizes = [2, 32], strides = [1, 1]} : vector<2x288xf32> to vector<2x32xf32>
      %253 = arith.addf %251, %252 : vector<2x32xf32>
      %254 = vector.extract_strided_slice %44 {offsets = [0, 96], sizes = [2, 32], strides = [1, 1]} : vector<2x288xf32> to vector<2x32xf32>
      %255 = arith.addf %253, %254 : vector<2x32xf32>
      %256 = vector.extract_strided_slice %46 {offsets = [0, 128], sizes = [2, 32], strides = [1, 1]} : vector<2x288xf32> to vector<2x32xf32>
      %257 = arith.addf %255, %256 : vector<2x32xf32>
      %258 = vector.extract_strided_slice %48 {offsets = [0, 160], sizes = [2, 32], strides = [1, 1]} : vector<2x288xf32> to vector<2x32xf32>
      %259 = arith.addf %257, %258 : vector<2x32xf32>
      %260 = vector.extract_strided_slice %50 {offsets = [0, 192], sizes = [2, 32], strides = [1, 1]} : vector<2x288xf32> to vector<2x32xf32>
      %261 = arith.addf %259, %260 : vector<2x32xf32>
      %262 = vector.extract_strided_slice %52 {offsets = [0, 224], sizes = [2, 32], strides = [1, 1]} : vector<2x288xf32> to vector<2x32xf32>
      %263 = arith.addf %261, %262 : vector<2x32xf32>
      %264 = vector.extract_strided_slice %54 {offsets = [0, 256], sizes = [2, 32], strides = [1, 1]} : vector<2x288xf32> to vector<2x32xf32>
      %265 = arith.addf %263, %264 : vector<2x32xf32>
      %cst_92 = arith.constant 0.000000e+00 : f32
      %266 = vector.broadcast %cst_92 : f32 to vector<2x32xf32>
      %267 = arith.maximumf %265, %266 : vector<2x32xf32>
      %268 = arith.truncf %267 : vector<2x32xf32> to vector<2x32xbf16>
      %cst_93 = arith.constant dense<0.000000e+00> : vector<2x64xf32>
      %269 = tpu.matmul %268, %35, %cst_93 {dimension_numbers = #tpu.dot_dimension_numbers<[1], [0], [0], [1], [0, 0, 1, 1], [], []>} : vector<2x32xbf16>, vector<32x64xbf16>, vector<2x64xf32> -> vector<2x64xf32>
      %270 = vector.broadcast %36 : vector<1x64xf32> to vector<2x64xf32>
      %271 = arith.addf %269, %270 : vector<2x64xf32>
      %cst_94 = arith.constant 0.000000e+00 : f32
      %272 = vector.broadcast %cst_94 : f32 to vector<2x64xf32>
      %273 = arith.maximumf %271, %272 : vector<2x64xf32>
      %c0_95 = arith.constant 0 : index
      %c768 = arith.constant 768 : index
      %274 = vector.load %arg13[%c0_95, %c768] : memref<2x1600xf32, #tpu.memory_space<vmem>>, vector<2x64xf32>
      tpu.vector_store %arg13[%c0_95, %c768], %273 {strides = array<i32>} : memref<2x1600xf32, #tpu.memory_space<vmem>>, vector<2x64xf32>,
      %275 = vector.extract_strided_slice %40 {offsets = [0, 0], sizes = [2, 32], strides = [1, 1]} : vector<2x288xf32> to vector<2x32xf32>
      %276 = vector.broadcast %34 : vector<1x32xf32> to vector<2x32xf32>
      %277 = arith.addf %276, %275 : vector<2x32xf32>
      %278 = vector.extract_strided_slice %42 {offsets = [0, 32], sizes = [2, 32], strides = [1, 1]} : vector<2x288xf32> to vector<2x32xf32>
      %279 = arith.addf %277, %278 : vector<2x32xf32>
      %280 = vector.extract_strided_slice %46 {offsets = [0, 96], sizes = [2, 32], strides = [1, 1]} : vector<2x288xf32> to vector<2x32xf32>
      %281 = arith.addf %279, %280 : vector<2x32xf32>
      %282 = vector.extract_strided_slice %48 {offsets = [0, 128], sizes = [2, 32], strides = [1, 1]} : vector<2x288xf32> to vector<2x32xf32>
      %283 = arith.addf %281, %282 : vector<2x32xf32>
      %284 = vector.extract_strided_slice %52 {offsets = [0, 192], sizes = [2, 32], strides = [1, 1]} : vector<2x288xf32> to vector<2x32xf32>
      %285 = arith.addf %283, %284 : vector<2x32xf32>
      %286 = vector.extract_strided_slice %54 {offsets = [0, 224], sizes = [2, 32], strides = [1, 1]} : vector<2x288xf32> to vector<2x32xf32>
      %287 = arith.addf %285, %286 : vector<2x32xf32>
      %cst_96 = arith.constant 0.000000e+00 : f32
      %288 = vector.broadcast %cst_96 : f32 to vector<2x32xf32>
      %289 = arith.maximumf %287, %288 : vector<2x32xf32>
      %290 = arith.truncf %289 : vector<2x32xf32> to vector<2x32xbf16>
      %cst_97 = arith.constant dense<0.000000e+00> : vector<2x64xf32>
      %291 = tpu.matmul %290, %35, %cst_97 {dimension_numbers = #tpu.dot_dimension_numbers<[1], [0], [0], [1], [0, 0, 1, 1], [], []>} : vector<2x32xbf16>, vector<32x64xbf16>, vector<2x64xf32> -> vector<2x64xf32>
      %292 = vector.broadcast %36 : vector<1x64xf32> to vector<2x64xf32>
      %293 = arith.addf %291, %292 : vector<2x64xf32>
      %cst_98 = arith.constant 0.000000e+00 : f32
      %294 = vector.broadcast %cst_98 : f32 to vector<2x64xf32>
      %295 = arith.maximumf %293, %294 : vector<2x64xf32>
      %c0_99 = arith.constant 0 : index
      %c832 = arith.constant 832 : index
      %296 = vector.load %arg13[%c0_99, %c832] : memref<2x1600xf32, #tpu.memory_space<vmem>>, vector<2x64xf32>
      tpu.vector_store %arg13[%c0_99, %c832], %295 {strides = array<i32>} : memref<2x1600xf32, #tpu.memory_space<vmem>>, vector<2x64xf32>,
      %297 = vector.extract_strided_slice %42 {offsets = [0, 0], sizes = [2, 32], strides = [1, 1]} : vector<2x288xf32> to vector<2x32xf32>
      %298 = vector.broadcast %34 : vector<1x32xf32> to vector<2x32xf32>
      %299 = arith.addf %298, %297 : vector<2x32xf32>
      %300 = vector.extract_strided_slice %48 {offsets = [0, 96], sizes = [2, 32], strides = [1, 1]} : vector<2x288xf32> to vector<2x32xf32>
      %301 = arith.addf %299, %300 : vector<2x32xf32>
      %302 = vector.extract_strided_slice %54 {offsets = [0, 192], sizes = [2, 32], strides = [1, 1]} : vector<2x288xf32> to vector<2x32xf32>
      %303 = arith.addf %301, %302 : vector<2x32xf32>
      %cst_100 = arith.constant 0.000000e+00 : f32
      %304 = vector.broadcast %cst_100 : f32 to vector<2x32xf32>
      %305 = arith.maximumf %303, %304 : vector<2x32xf32>
      %306 = arith.truncf %305 : vector<2x32xf32> to vector<2x32xbf16>
      %cst_101 = arith.constant dense<0.000000e+00> : vector<2x64xf32>
      %307 = tpu.matmul %306, %35, %cst_101 {dimension_numbers = #tpu.dot_dimension_numbers<[1], [0], [0], [1], [0, 0, 1, 1], [], []>} : vector<2x32xbf16>, vector<32x64xbf16>, vector<2x64xf32> -> vector<2x64xf32>
      %308 = vector.broadcast %36 : vector<1x64xf32> to vector<2x64xf32>
      %309 = arith.addf %307, %308 : vector<2x64xf32>
      %cst_102 = arith.constant 0.000000e+00 : f32
      %310 = vector.broadcast %cst_102 : f32 to vector<2x64xf32>
      %311 = arith.maximumf %309, %310 : vector<2x64xf32>
      %c0_103 = arith.constant 0 : index
      %c896 = arith.constant 896 : index
      %312 = vector.load %arg13[%c0_103, %c896] : memref<2x1600xf32, #tpu.memory_space<vmem>>, vector<2x64xf32>
      tpu.vector_store %arg13[%c0_103, %c896], %311 {strides = array<i32>} : memref<2x1600xf32, #tpu.memory_space<vmem>>, vector<2x64xf32>,
      %313 = vector.extract_strided_slice %44 {offsets = [0, 64], sizes = [2, 32], strides = [1, 1]} : vector<2x288xf32> to vector<2x32xf32>
      %314 = vector.broadcast %34 : vector<1x32xf32> to vector<2x32xf32>
      %315 = arith.addf %314, %313 : vector<2x32xf32>
      %316 = vector.extract_strided_slice %50 {offsets = [0, 160], sizes = [2, 32], strides = [1, 1]} : vector<2x288xf32> to vector<2x32xf32>
      %317 = arith.addf %315, %316 : vector<2x32xf32>
      %cst_104 = arith.constant 0.000000e+00 : f32
      %318 = vector.broadcast %cst_104 : f32 to vector<2x32xf32>
      %319 = arith.maximumf %317, %318 : vector<2x32xf32>
      %320 = arith.truncf %319 : vector<2x32xf32> to vector<2x32xbf16>
      %cst_105 = arith.constant dense<0.000000e+00> : vector<2x64xf32>
      %321 = tpu.matmul %320, %35, %cst_105 {dimension_numbers = #tpu.dot_dimension_numbers<[1], [0], [0], [1], [0, 0, 1, 1], [], []>} : vector<2x32xbf16>, vector<32x64xbf16>, vector<2x64xf32> -> vector<2x64xf32>
      %322 = vector.broadcast %36 : vector<1x64xf32> to vector<2x64xf32>
      %323 = arith.addf %321, %322 : vector<2x64xf32>
      %cst_106 = arith.constant 0.000000e+00 : f32
      %324 = vector.broadcast %cst_106 : f32 to vector<2x64xf32>
      %325 = arith.maximumf %323, %324 : vector<2x64xf32>
      %c0_107 = arith.constant 0 : index
      %c960 = arith.constant 960 : index
      %326 = vector.load %arg13[%c0_107, %c960] : memref<2x1600xf32, #tpu.memory_space<vmem>>, vector<2x64xf32>
      tpu.vector_store %arg13[%c0_107, %c960], %325 {strides = array<i32>} : memref<2x1600xf32, #tpu.memory_space<vmem>>, vector<2x64xf32>,
      %327 = vector.extract_strided_slice %44 {offsets = [0, 32], sizes = [2, 32], strides = [1, 1]} : vector<2x288xf32> to vector<2x32xf32>
      %328 = vector.broadcast %34 : vector<1x32xf32> to vector<2x32xf32>
      %329 = arith.addf %328, %327 : vector<2x32xf32>
      %330 = vector.extract_strided_slice %46 {offsets = [0, 64], sizes = [2, 32], strides = [1, 1]} : vector<2x288xf32> to vector<2x32xf32>
      %331 = arith.addf %329, %330 : vector<2x32xf32>
      %332 = vector.extract_strided_slice %50 {offsets = [0, 128], sizes = [2, 32], strides = [1, 1]} : vector<2x288xf32> to vector<2x32xf32>
      %333 = arith.addf %331, %332 : vector<2x32xf32>
      %334 = vector.extract_strided_slice %52 {offsets = [0, 160], sizes = [2, 32], strides = [1, 1]} : vector<2x288xf32> to vector<2x32xf32>
      %335 = arith.addf %333, %334 : vector<2x32xf32>
      %cst_108 = arith.constant 0.000000e+00 : f32
      %336 = vector.broadcast %cst_108 : f32 to vector<2x32xf32>
      %337 = arith.maximumf %335, %336 : vector<2x32xf32>
      %338 = arith.truncf %337 : vector<2x32xf32> to vector<2x32xbf16>
      %cst_109 = arith.constant dense<0.000000e+00> : vector<2x64xf32>
      %339 = tpu.matmul %338, %35, %cst_109 {dimension_numbers = #tpu.dot_dimension_numbers<[1], [0], [0], [1], [0, 0, 1, 1], [], []>} : vector<2x32xbf16>, vector<32x64xbf16>, vector<2x64xf32> -> vector<2x64xf32>
      %340 = vector.broadcast %36 : vector<1x64xf32> to vector<2x64xf32>
      %341 = arith.addf %339, %340 : vector<2x64xf32>
      %cst_110 = arith.constant 0.000000e+00 : f32
      %342 = vector.broadcast %cst_110 : f32 to vector<2x64xf32>
      %343 = arith.maximumf %341, %342 : vector<2x64xf32>
      %c0_111 = arith.constant 0 : index
      %c1024 = arith.constant 1024 : index
      %344 = vector.load %arg13[%c0_111, %c1024] : memref<2x1600xf32, #tpu.memory_space<vmem>>, vector<2x64xf32>
      tpu.vector_store %arg13[%c0_111, %c1024], %343 {strides = array<i32>} : memref<2x1600xf32, #tpu.memory_space<vmem>>, vector<2x64xf32>,
      %345 = vector.extract_strided_slice %44 {offsets = [0, 0], sizes = [2, 32], strides = [1, 1]} : vector<2x288xf32> to vector<2x32xf32>
      %346 = vector.broadcast %34 : vector<1x32xf32> to vector<2x32xf32>
      %347 = arith.addf %346, %345 : vector<2x32xf32>
      %348 = vector.extract_strided_slice %46 {offsets = [0, 32], sizes = [2, 32], strides = [1, 1]} : vector<2x288xf32> to vector<2x32xf32>
      %349 = arith.addf %347, %348 : vector<2x32xf32>
      %350 = vector.extract_strided_slice %48 {offsets = [0, 64], sizes = [2, 32], strides = [1, 1]} : vector<2x288xf32> to vector<2x32xf32>
      %351 = arith.addf %349, %350 : vector<2x32xf32>
      %352 = vector.extract_strided_slice %50 {offsets = [0, 96], sizes = [2, 32], strides = [1, 1]} : vector<2x288xf32> to vector<2x32xf32>
      %353 = arith.addf %351, %352 : vector<2x32xf32>
      %354 = vector.extract_strided_slice %52 {offsets = [0, 128], sizes = [2, 32], strides = [1, 1]} : vector<2x288xf32> to vector<2x32xf32>
      %355 = arith.addf %353, %354 : vector<2x32xf32>
      %356 = vector.extract_strided_slice %54 {offsets = [0, 160], sizes = [2, 32], strides = [1, 1]} : vector<2x288xf32> to vector<2x32xf32>
      %357 = arith.addf %355, %356 : vector<2x32xf32>
      %cst_112 = arith.constant 0.000000e+00 : f32
      %358 = vector.broadcast %cst_112 : f32 to vector<2x32xf32>
      %359 = arith.maximumf %357, %358 : vector<2x32xf32>
      %360 = arith.truncf %359 : vector<2x32xf32> to vector<2x32xbf16>
      %cst_113 = arith.constant dense<0.000000e+00> : vector<2x64xf32>
      %361 = tpu.matmul %360, %35, %cst_113 {dimension_numbers = #tpu.dot_dimension_numbers<[1], [0], [0], [1], [0, 0, 1, 1], [], []>} : vector<2x32xbf16>, vector<32x64xbf16>, vector<2x64xf32> -> vector<2x64xf32>
      %362 = vector.broadcast %36 : vector<1x64xf32> to vector<2x64xf32>
      %363 = arith.addf %361, %362 : vector<2x64xf32>
      %cst_114 = arith.constant 0.000000e+00 : f32
      %364 = vector.broadcast %cst_114 : f32 to vector<2x64xf32>
      %365 = arith.maximumf %363, %364 : vector<2x64xf32>
      %c0_115 = arith.constant 0 : index
      %c1088 = arith.constant 1088 : index
      %366 = vector.load %arg13[%c0_115, %c1088] : memref<2x1600xf32, #tpu.memory_space<vmem>>, vector<2x64xf32>
      tpu.vector_store %arg13[%c0_115, %c1088], %365 {strides = array<i32>} : memref<2x1600xf32, #tpu.memory_space<vmem>>, vector<2x64xf32>,
      %367 = vector.extract_strided_slice %46 {offsets = [0, 0], sizes = [2, 32], strides = [1, 1]} : vector<2x288xf32> to vector<2x32xf32>
      %368 = vector.broadcast %34 : vector<1x32xf32> to vector<2x32xf32>
      %369 = arith.addf %368, %367 : vector<2x32xf32>
      %370 = vector.extract_strided_slice %48 {offsets = [0, 32], sizes = [2, 32], strides = [1, 1]} : vector<2x288xf32> to vector<2x32xf32>
      %371 = arith.addf %369, %370 : vector<2x32xf32>
      %372 = vector.extract_strided_slice %52 {offsets = [0, 96], sizes = [2, 32], strides = [1, 1]} : vector<2x288xf32> to vector<2x32xf32>
      %373 = arith.addf %371, %372 : vector<2x32xf32>
      %374 = vector.extract_strided_slice %54 {offsets = [0, 128], sizes = [2, 32], strides = [1, 1]} : vector<2x288xf32> to vector<2x32xf32>
      %375 = arith.addf %373, %374 : vector<2x32xf32>
      %cst_116 = arith.constant 0.000000e+00 : f32
      %376 = vector.broadcast %cst_116 : f32 to vector<2x32xf32>
      %377 = arith.maximumf %375, %376 : vector<2x32xf32>
      %378 = arith.truncf %377 : vector<2x32xf32> to vector<2x32xbf16>
      %cst_117 = arith.constant dense<0.000000e+00> : vector<2x64xf32>
      %379 = tpu.matmul %378, %35, %cst_117 {dimension_numbers = #tpu.dot_dimension_numbers<[1], [0], [0], [1], [0, 0, 1, 1], [], []>} : vector<2x32xbf16>, vector<32x64xbf16>, vector<2x64xf32> -> vector<2x64xf32>
      %380 = vector.broadcast %36 : vector<1x64xf32> to vector<2x64xf32>
      %381 = arith.addf %379, %380 : vector<2x64xf32>
      %cst_118 = arith.constant 0.000000e+00 : f32
      %382 = vector.broadcast %cst_118 : f32 to vector<2x64xf32>
      %383 = arith.maximumf %381, %382 : vector<2x64xf32>
      %c0_119 = arith.constant 0 : index
      %c1152 = arith.constant 1152 : index
      %384 = vector.load %arg13[%c0_119, %c1152] : memref<2x1600xf32, #tpu.memory_space<vmem>>, vector<2x64xf32>
      tpu.vector_store %arg13[%c0_119, %c1152], %383 {strides = array<i32>} : memref<2x1600xf32, #tpu.memory_space<vmem>>, vector<2x64xf32>,
      %385 = vector.extract_strided_slice %48 {offsets = [0, 0], sizes = [2, 32], strides = [1, 1]} : vector<2x288xf32> to vector<2x32xf32>
      %386 = vector.broadcast %34 : vector<1x32xf32> to vector<2x32xf32>
      %387 = arith.addf %386, %385 : vector<2x32xf32>
      %388 = vector.extract_strided_slice %54 {offsets = [0, 96], sizes = [2, 32], strides = [1, 1]} : vector<2x288xf32> to vector<2x32xf32>
      %389 = arith.addf %387, %388 : vector<2x32xf32>
      %cst_120 = arith.constant 0.000000e+00 : f32
      %390 = vector.broadcast %cst_120 : f32 to vector<2x32xf32>
      %391 = arith.maximumf %389, %390 : vector<2x32xf32>
      %392 = arith.truncf %391 : vector<2x32xf32> to vector<2x32xbf16>
      %cst_121 = arith.constant dense<0.000000e+00> : vector<2x64xf32>
      %393 = tpu.matmul %392, %35, %cst_121 {dimension_numbers = #tpu.dot_dimension_numbers<[1], [0], [0], [1], [0, 0, 1, 1], [], []>} : vector<2x32xbf16>, vector<32x64xbf16>, vector<2x64xf32> -> vector<2x64xf32>
      %394 = vector.broadcast %36 : vector<1x64xf32> to vector<2x64xf32>
      %395 = arith.addf %393, %394 : vector<2x64xf32>
      %cst_122 = arith.constant 0.000000e+00 : f32
      %396 = vector.broadcast %cst_122 : f32 to vector<2x64xf32>
      %397 = arith.maximumf %395, %396 : vector<2x64xf32>
      %c0_123 = arith.constant 0 : index
      %c1216 = arith.constant 1216 : index
      %398 = vector.load %arg13[%c0_123, %c1216] : memref<2x1600xf32, #tpu.memory_space<vmem>>, vector<2x64xf32>
      tpu.vector_store %arg13[%c0_123, %c1216], %397 {strides = array<i32>} : memref<2x1600xf32, #tpu.memory_space<vmem>>, vector<2x64xf32>,
      %399 = vector.extract_strided_slice %50 {offsets = [0, 64], sizes = [2, 32], strides = [1, 1]} : vector<2x288xf32> to vector<2x32xf32>
      %400 = vector.broadcast %34 : vector<1x32xf32> to vector<2x32xf32>
      %401 = arith.addf %400, %399 : vector<2x32xf32>
      %cst_124 = arith.constant 0.000000e+00 : f32
      %402 = vector.broadcast %cst_124 : f32 to vector<2x32xf32>
      %403 = arith.maximumf %401, %402 : vector<2x32xf32>
      %404 = arith.truncf %403 : vector<2x32xf32> to vector<2x32xbf16>
      %cst_125 = arith.constant dense<0.000000e+00> : vector<2x64xf32>
      %405 = tpu.matmul %404, %35, %cst_125 {dimension_numbers = #tpu.dot_dimension_numbers<[1], [0], [0], [1], [0, 0, 1, 1], [], []>} : vector<2x32xbf16>, vector<32x64xbf16>, vector<2x64xf32> -> vector<2x64xf32>
      %406 = vector.broadcast %36 : vector<1x64xf32> to vector<2x64xf32>
      %407 = arith.addf %405, %406 : vector<2x64xf32>
      %cst_126 = arith.constant 0.000000e+00 : f32
      %408 = vector.broadcast %cst_126 : f32 to vector<2x64xf32>
      %409 = arith.maximumf %407, %408 : vector<2x64xf32>
      %c0_127 = arith.constant 0 : index
      %c1280 = arith.constant 1280 : index
      %410 = vector.load %arg13[%c0_127, %c1280] : memref<2x1600xf32, #tpu.memory_space<vmem>>, vector<2x64xf32>
      tpu.vector_store %arg13[%c0_127, %c1280], %409 {strides = array<i32>} : memref<2x1600xf32, #tpu.memory_space<vmem>>, vector<2x64xf32>,
      %411 = vector.extract_strided_slice %50 {offsets = [0, 32], sizes = [2, 32], strides = [1, 1]} : vector<2x288xf32> to vector<2x32xf32>
      %412 = vector.broadcast %34 : vector<1x32xf32> to vector<2x32xf32>
      %413 = arith.addf %412, %411 : vector<2x32xf32>
      %414 = vector.extract_strided_slice %52 {offsets = [0, 64], sizes = [2, 32], strides = [1, 1]} : vector<2x288xf32> to vector<2x32xf32>
      %415 = arith.addf %413, %414 : vector<2x32xf32>
      %cst_128 = arith.constant 0.000000e+00 : f32
      %416 = vector.broadcast %cst_128 : f32 to vector<2x32xf32>
      %417 = arith.maximumf %415, %416 : vector<2x32xf32>
      %418 = arith.truncf %417 : vector<2x32xf32> to vector<2x32xbf16>
      %cst_129 = arith.constant dense<0.000000e+00> : vector<2x64xf32>
      %419 = tpu.matmul %418, %35, %cst_129 {dimension_numbers = #tpu.dot_dimension_numbers<[1], [0], [0], [1], [0, 0, 1, 1], [], []>} : vector<2x32xbf16>, vector<32x64xbf16>, vector<2x64xf32> -> vector<2x64xf32>
      %420 = vector.broadcast %36 : vector<1x64xf32> to vector<2x64xf32>
      %421 = arith.addf %419, %420 : vector<2x64xf32>
      %cst_130 = arith.constant 0.000000e+00 : f32
      %422 = vector.broadcast %cst_130 : f32 to vector<2x64xf32>
      %423 = arith.maximumf %421, %422 : vector<2x64xf32>
      %c0_131 = arith.constant 0 : index
      %c1344 = arith.constant 1344 : index
      %424 = vector.load %arg13[%c0_131, %c1344] : memref<2x1600xf32, #tpu.memory_space<vmem>>, vector<2x64xf32>
      tpu.vector_store %arg13[%c0_131, %c1344], %423 {strides = array<i32>} : memref<2x1600xf32, #tpu.memory_space<vmem>>, vector<2x64xf32>,
      %425 = vector.extract_strided_slice %50 {offsets = [0, 0], sizes = [2, 32], strides = [1, 1]} : vector<2x288xf32> to vector<2x32xf32>
      %426 = vector.broadcast %34 : vector<1x32xf32> to vector<2x32xf32>
      %427 = arith.addf %426, %425 : vector<2x32xf32>
      %428 = vector.extract_strided_slice %52 {offsets = [0, 32], sizes = [2, 32], strides = [1, 1]} : vector<2x288xf32> to vector<2x32xf32>
      %429 = arith.addf %427, %428 : vector<2x32xf32>
      %430 = vector.extract_strided_slice %54 {offsets = [0, 64], sizes = [2, 32], strides = [1, 1]} : vector<2x288xf32> to vector<2x32xf32>
      %431 = arith.addf %429, %430 : vector<2x32xf32>
      %cst_132 = arith.constant 0.000000e+00 : f32
      %432 = vector.broadcast %cst_132 : f32 to vector<2x32xf32>
      %433 = arith.maximumf %431, %432 : vector<2x32xf32>
      %434 = arith.truncf %433 : vector<2x32xf32> to vector<2x32xbf16>
      %cst_133 = arith.constant dense<0.000000e+00> : vector<2x64xf32>
      %435 = tpu.matmul %434, %35, %cst_133 {dimension_numbers = #tpu.dot_dimension_numbers<[1], [0], [0], [1], [0, 0, 1, 1], [], []>} : vector<2x32xbf16>, vector<32x64xbf16>, vector<2x64xf32> -> vector<2x64xf32>
      %436 = vector.broadcast %36 : vector<1x64xf32> to vector<2x64xf32>
      %437 = arith.addf %435, %436 : vector<2x64xf32>
      %cst_134 = arith.constant 0.000000e+00 : f32
      %438 = vector.broadcast %cst_134 : f32 to vector<2x64xf32>
      %439 = arith.maximumf %437, %438 : vector<2x64xf32>
      %c0_135 = arith.constant 0 : index
      %c1408 = arith.constant 1408 : index
      %440 = vector.load %arg13[%c0_135, %c1408] : memref<2x1600xf32, #tpu.memory_space<vmem>>, vector<2x64xf32>
      tpu.vector_store %arg13[%c0_135, %c1408], %439 {strides = array<i32>} : memref<2x1600xf32, #tpu.memory_space<vmem>>, vector<2x64xf32>,
      %441 = vector.extract_strided_slice %52 {offsets = [0, 0], sizes = [2, 32], strides = [1, 1]} : vector<2x288xf32> to vector<2x32xf32>
      %442 = vector.broadcast %34 : vector<1x32xf32> to vector<2x32xf32>
      %443 = arith.addf %442, %441 : vector<2x32xf32>
      %444 = vector.extract_strided_slice %54 {offsets = [0, 32], sizes = [2, 32], strides = [1, 1]} : vector<2x288xf32> to vector<2x32xf32>
      %445 = arith.addf %443, %444 : vector<2x32xf32>
      %cst_136 = arith.constant 0.000000e+00 : f32
      %446 = vector.broadcast %cst_136 : f32 to vector<2x32xf32>
      %447 = arith.maximumf %445, %446 : vector<2x32xf32>
      %448 = arith.truncf %447 : vector<2x32xf32> to vector<2x32xbf16>
      %cst_137 = arith.constant dense<0.000000e+00> : vector<2x64xf32>
      %449 = tpu.matmul %448, %35, %cst_137 {dimension_numbers = #tpu.dot_dimension_numbers<[1], [0], [0], [1], [0, 0, 1, 1], [], []>} : vector<2x32xbf16>, vector<32x64xbf16>, vector<2x64xf32> -> vector<2x64xf32>
      %450 = vector.broadcast %36 : vector<1x64xf32> to vector<2x64xf32>
      %451 = arith.addf %449, %450 : vector<2x64xf32>
      %cst_138 = arith.constant 0.000000e+00 : f32
      %452 = vector.broadcast %cst_138 : f32 to vector<2x64xf32>
      %453 = arith.maximumf %451, %452 : vector<2x64xf32>
      %c0_139 = arith.constant 0 : index
      %c1472 = arith.constant 1472 : index
      %454 = vector.load %arg13[%c0_139, %c1472] : memref<2x1600xf32, #tpu.memory_space<vmem>>, vector<2x64xf32>
      tpu.vector_store %arg13[%c0_139, %c1472], %453 {strides = array<i32>} : memref<2x1600xf32, #tpu.memory_space<vmem>>, vector<2x64xf32>,
      %455 = vector.extract_strided_slice %54 {offsets = [0, 0], sizes = [2, 32], strides = [1, 1]} : vector<2x288xf32> to vector<2x32xf32>
      %456 = vector.broadcast %34 : vector<1x32xf32> to vector<2x32xf32>
      %457 = arith.addf %456, %455 : vector<2x32xf32>
      %cst_140 = arith.constant 0.000000e+00 : f32
      %458 = vector.broadcast %cst_140 : f32 to vector<2x32xf32>
      %459 = arith.maximumf %457, %458 : vector<2x32xf32>
      %460 = arith.truncf %459 : vector<2x32xf32> to vector<2x32xbf16>
      %cst_141 = arith.constant dense<0.000000e+00> : vector<2x64xf32>
      %461 = tpu.matmul %460, %35, %cst_141 {dimension_numbers = #tpu.dot_dimension_numbers<[1], [0], [0], [1], [0, 0, 1, 1], [], []>} : vector<2x32xbf16>, vector<32x64xbf16>, vector<2x64xf32> -> vector<2x64xf32>
      %462 = vector.broadcast %36 : vector<1x64xf32> to vector<2x64xf32>
      %463 = arith.addf %461, %462 : vector<2x64xf32>
      %cst_142 = arith.constant 0.000000e+00 : f32
      %464 = vector.broadcast %cst_142 : f32 to vector<2x64xf32>
      %465 = arith.maximumf %463, %464 : vector<2x64xf32>
      %c0_143 = arith.constant 0 : index
      %c1536 = arith.constant 1536 : index
      %466 = vector.load %arg13[%c0_143, %c1536] : memref<2x1600xf32, #tpu.memory_space<vmem>>, vector<2x64xf32>
      tpu.vector_store %arg13[%c0_143, %c1536], %465 {strides = array<i32>} : memref<2x1600xf32, #tpu.memory_space<vmem>>, vector<2x64xf32>,
    } else {
    }
    %c0 = arith.constant 0 : index
    %c0_1 = arith.constant 0 : index
    %3 = vector.load %arg13[%c0, %c0_1] : memref<2x1600xf32, #tpu.memory_space<vmem>>, vector<2x1600xf32>
    %4 = arith.truncf %3 : vector<2x1600xf32> to vector<2x1600xbf16>
    %c0_2 = arith.constant 0 : index
    %c0_3 = arith.constant 0 : index
    %5 = vector.load %arg8[%c0_2, %c0_3] : memref<1600x256xbf16, #tpu.memory_space<vmem>>, vector<1600x256xbf16>
    %cst = arith.constant dense<0.000000e+00> : vector<2x256xf32>
    %6 = tpu.matmul %4, %5, %cst {dimension_numbers = #tpu.dot_dimension_numbers<[1], [0], [0], [1], [0, 0, 1, 1], [], []>} : vector<2x1600xbf16>, vector<1600x256xbf16>, vector<2x256xf32> -> vector<2x256xf32>
    %c0_4 = arith.constant 0 : index
    %c0_5 = arith.constant 0 : index
    %7 = vector.load %arg9[%c0_4, %c0_5] : memref<1x256xf32, #tpu.memory_space<vmem>>, vector<1x256xf32>
    %8 = vector.broadcast %7 : vector<1x256xf32> to vector<2x256xf32>
    %9 = arith.addf %6, %8 : vector<2x256xf32>
    %cst_6 = arith.constant 0.000000e+00 : f32
    %10 = vector.broadcast %cst_6 : f32 to vector<2x256xf32>
    %11 = arith.maximumf %9, %10 : vector<2x256xf32>
    %c0_7 = arith.constant 0 : index
    %c0_8 = arith.constant 0 : index
    %12 = vector.load %arg14[%c0_7, %c0_8] : memref<2x32xf32, #tpu.memory_space<vmem>>, vector<2x32xf32>
    %13 = arith.truncf %11 : vector<2x256xf32> to vector<2x256xbf16>
    %c0_9 = arith.constant 0 : index
    %c0_10 = arith.constant 0 : index
    %14 = vector.load %arg10[%c0_9, %c0_10] : memref<256x32xbf16, #tpu.memory_space<vmem>>, vector<256x32xbf16>
    %cst_11 = arith.constant dense<0.000000e+00> : vector<2x32xf32>
    %15 = tpu.matmul %13, %14, %cst_11 {dimension_numbers = #tpu.dot_dimension_numbers<[1], [0], [0], [1], [0, 0, 1, 1], [], []>} : vector<2x256xbf16>, vector<256x32xbf16>, vector<2x32xf32> -> vector<2x32xf32>
    %16 = arith.addf %12, %15 : vector<2x32xf32>
    %c0_12 = arith.constant 0 : index
    %c0_13 = arith.constant 0 : index
    %17 = vector.load %arg14[%c0_12, %c0_13] : memref<2x32xf32, #tpu.memory_space<vmem>>, vector<2x32xf32>
    tpu.vector_store %arg14[%c0_12, %c0_13], %16 {strides = array<i32>} : memref<2x32xf32, #tpu.memory_space<vmem>>, vector<2x32xf32>,
    %c1_i32 = arith.constant 1 : i32
    %18 = arith.cmpi eq, %arg0, %c1_i32 : i32
    %19 = arith.extui %18 : i1 to i32
    %c0_i32_14 = arith.constant 0 : i32
    %20 = arith.cmpi ne, %19, %c0_i32_14 : i32
    scf.if %20 {
      %c0_15 = arith.constant 0 : index
      %c0_16 = arith.constant 0 : index
      %21 = vector.load %arg14[%c0_15, %c0_16] : memref<2x32xf32, #tpu.memory_space<vmem>>, vector<2x32xf32>
      %c0_17 = arith.constant 0 : index
      %c0_18 = arith.constant 0 : index
      %22 = vector.load %arg11[%c0_17, %c0_18] : memref<1x32xf32, #tpu.memory_space<vmem>>, vector<1x32xf32>
      %23 = vector.broadcast %22 : vector<1x32xf32> to vector<2x32xf32>
      %24 = arith.addf %21, %23 : vector<2x32xf32>
      %c0_19 = arith.constant 0 : index
      %c0_20 = arith.constant 0 : index
      %25 = vector.load %arg12[%c0_19, %c0_20] : memref<2x32xf32, #tpu.memory_space<vmem>>, vector<2x32xf32>
      tpu.vector_store %arg12[%c0_19, %c0_20], %24 {strides = array<i32>} : memref<2x32xf32, #tpu.memory_space<vmem>>, vector<2x32xf32>,
    } else {
    }
    return
  }
  func.func @transform_0(%arg0: i32) -> (i32, i32) {
    %c0_i32 = arith.constant 0 : i32
    %c0_i32_0 = arith.constant 0 : i32
    %c0_i32_1 = arith.constant 0 : i32
    return %c0_i32, %c0_i32_0 : i32, i32
  }
  func.func @transform_1(%arg0: i32) -> (i32, i32) {
    %c0_i32 = arith.constant 0 : i32
    %c0_i32_0 = arith.constant 0 : i32
    %c0_i32_1 = arith.constant 0 : i32
    return %c0_i32, %c0_i32_0 : i32, i32
  }
  func.func @transform_2(%arg0: i32) -> (i32, i32) {
    %c0_i32 = arith.constant 0 : i32
    %c0_i32_0 = arith.constant 0 : i32
    %c0_i32_1 = arith.constant 0 : i32
    return %c0_i32, %c0_i32_0 : i32, i32
  }
  func.func @transform_3(%arg0: i32) -> (i32, i32) {
    %c0_i32 = arith.constant 0 : i32
    %c0_i32_0 = arith.constant 0 : i32
    %c0_i32_1 = arith.constant 0 : i32
    return %c0_i32, %c0_i32_0 : i32, i32
  }
  func.func @transform_4(%arg0: i32) -> (i32, i32) {
    %c0_i32 = arith.constant 0 : i32
    %c0_i32_0 = arith.constant 0 : i32
    %c0_i32_1 = arith.constant 0 : i32
    return %c0_i32, %c0_i32_0 : i32, i32
  }
  func.func @transform_5(%arg0: i32) -> (i32, i32) {
    %c0_i32 = arith.constant 0 : i32
    %c0_i32_0 = arith.constant 0 : i32
    %c0_i32_1 = arith.constant 0 : i32
    return %c0_i32, %c0_i32_0 : i32, i32
  }
  func.func @transform_6(%arg0: i32) -> (i32, i32) {
    %c0_i32 = arith.constant 0 : i32
    %c0_i32_0 = arith.constant 0 : i32
    %c0_i32_1 = arith.constant 0 : i32
    return %c0_i32, %c0_i32_0 : i32, i32
  }
  func.func @transform_7(%arg0: i32) -> (i32, i32) {
    %c0_i32 = arith.constant 0 : i32
    %c0_i32_0 = arith.constant 0 : i32
    return %c0_i32, %arg0 : i32, i32
  }
  func.func @transform_8(%arg0: i32) -> (i32, i32) {
    %c0_i32 = arith.constant 0 : i32
    %c0_i32_0 = arith.constant 0 : i32
    return %c0_i32, %arg0 : i32, i32
  }
  func.func @transform_9(%arg0: i32) -> (i32, i32) {
    %c0_i32 = arith.constant 0 : i32
    %c0_i32_0 = arith.constant 0 : i32
    return %arg0, %c0_i32 : i32, i32
  }
  func.func @transform_10(%arg0: i32) -> (i32, i32) {
    %c0_i32 = arith.constant 0 : i32
    %c0_i32_0 = arith.constant 0 : i32
    %c0_i32_1 = arith.constant 0 : i32
    return %c0_i32, %c0_i32_0 : i32, i32
  }
  func.func @transform_11(%arg0: i32) -> (i32, i32) {
    %c0_i32 = arith.constant 0 : i32
    %c0_i32_0 = arith.constant 0 : i32
    %c0_i32_1 = arith.constant 0 : i32
    return %c0_i32, %c0_i32_0 : i32, i32
  }
}

</mosaic_0001>

<llo_original>
// kernel: binary_coding_forward.1
$region0: #{binary_coding_forward.1}
  #allocation0 [shape = 'u32[]', space=smem, size = 0x4, offset = 0x4, fixed_abs, tag = 'smem constant byte address 0x4 - core index']
  #allocation1 [shape = 'u32[72,128]{1,0:T(1,128)}', space=vmem, size = 0x9000, scoped, tag = 'internal scratch']
  #allocation2 [shape = 'f32[2,1600]{1,0:T(2,128)}', space=vmem, size = 0x3400, scoped, tag = 'scratch operand']
  #allocation3 [shape = 'f32[2,32]{1,0:T(2,128)}', space=vmem, size = 0x400, scoped, tag = 'scratch operand']
  %s0 = inlined_call_operand.vmem [shape: f32[2,161], index: 0, kind: input, shape index: {}]
  %s1 = inlined_call_operand.hbm [shape: bf16[161,576], index: 1, kind: input, shape index: {}]
  %s2 = inlined_call_operand.hbm [shape: f32[1,576], index: 2, kind: input, shape index: {}]
  %s3 = inlined_call_operand.hbm [shape: bf16[64,288], index: 3, kind: input, shape index: {}]
  %s4 = inlined_call_operand.hbm [shape: f32[1,32], index: 4, kind: input, shape index: {}]
  %s5 = inlined_call_operand.hbm [shape: bf16[32,64], index: 5, kind: input, shape index: {}]
  %s6 = inlined_call_operand.hbm [shape: f32[1,64], index: 6, kind: input, shape index: {}]
  %s7 = inlined_call_operand.hbm [shape: bf16[1600,512], index: 7, kind: input, shape index: {}]
  %s8 = inlined_call_operand.hbm [shape: f32[1,512], index: 8, kind: input, shape index: {}]
  %s9 = inlined_call_operand.vmem [shape: bf16[512,32], index: 9, kind: input, shape index: {}]
  %s10 = inlined_call_operand.hbm [shape: f32[1,32], index: 10, kind: input, shape index: {}]
  %s11 = inlined_call_operand.hbm [shape: f32[2,32], index: 11, kind: output, shape index: {}]
  %s12 = sld [smem:[#allocation0]]
  $region121: #{binary_coding_forward.1} parent=0
    _
  %s14 = ssub.s32 1, %s12
  %s15 = scalar_select 0, %s14, %s12
  $region1: #{binary_coding_forward.1} parent=0
    #allocation4 [shape = 'u8[215040]{0}', space=vmem, size = 0x34800, scoped, tag = 'input window, operand 1, single buffered']
    #allocation5 [shape = 's32[2]{0}', space=sflag, size = 0x8, scoped, tag = 'scoped memory for binary_coding_forward.1']
    #allocation6 [shape = 's32[2]{0}', space=sflag, size = 0x8, scoped, tag = 'scoped memory for binary_coding_forward.1']
    #allocation7 [shape = 'u8[2560]{0}', space=vmem, size = 0xc00, scoped, tag = 'input window, operand 2, single buffered']
    #allocation8 [shape = 's32[1]{0}', space=sflag, size = 0x4, scoped, tag = 'scoped memory for binary_coding_forward.1']
    #allocation9 [shape = 'u8[49152]{0}', space=vmem, size = 0xc000, scoped, tag = 'input window, operand 3, single buffered']
    #allocation10 [shape = 'u8[512]{0}', space=vmem, size = 0x400, scoped, tag = 'input window, operand 4, single buffered']
    #allocation11 [shape = 's32[1]{0}', space=sflag, size = 0x4, scoped, tag = 'scoped memory for binary_coding_forward.1']
    #allocation12 [shape = 'u8[8192]{0}', space=vmem, size = 0x2000, scoped, tag = 'input window, operand 5, single buffered']
    #allocation13 [shape = 'u8[512]{0}', space=vmem, size = 0x400, scoped, tag = 'input window, operand 6, single buffered']
    #allocation14 [shape = 's32[1]{0}', space=sflag, size = 0x4, scoped, tag = 'scoped memory for binary_coding_forward.1']
    #allocation15 [shape = 'u8[1638400]{0}', space=vmem, size = 0x190000, scoped, tag = 'input window, operand 7']
    #allocation16 [shape = 'u8[2048]{0}', space=vmem, size = 0x800, scoped, tag = 'input window, operand 8']
    #allocation17 [shape = 'u8[512]{0}', space=vmem, size = 0x400, scoped, tag = 'input window, operand 10, single buffered']
    #allocation18 [shape = 'u8[1024]{0}', space=vmem, size = 0x400, scoped, tag = 'output window, operand 0, single buffered']
    %16 = vsyncpa [#allocation5], 0
    %17 = vsyncpa [#allocation8], 0
    %18 = vsyncpa [#allocation11], 0
    %19 = vsyncpa [#allocation14], 0
    %20 = vsyncpa [#allocation6], 0
    loop: start=0, step=1, limit=4
    $region2: #{binary_coding_forward.1} parent=1 // loop_pre_header
      _
    $region3: #{binary_coding_forward.1} parent=1 // loop_header
      %s22 = sphi 0, %s26
      %p23 = scmp.ge.s32.totalorder %s22, 4
      %s30 = sphi 0, %s30
      %s32 = sphi 0, %s30
      %s33 = sphi 0, %s32
      %s47 = sphi 0, %s33
      %s51 = sphi 0, %s51
      %s53 = sphi 0, %s51
      %s54 = sphi 0, %s53
      %s68 = sphi 0, %s54
      %s72 = sphi 0, %s72
      %s74 = sphi 0, %s72
      %s75 = sphi 0, %s74
      %s89 = sphi 0, %s75
      %s93 = sphi 0, %s93
      %s95 = sphi 0, %s93
      %s96 = sphi 0, %s95
      %s110 = sphi 0, %s96
      %s114 = sphi 0, %s114
      %s116 = sphi 0, %s114
      %s117 = sphi 0, %s116
      %s131 = sphi 0, %s117
      %s135 = sphi 0, %s135
      %s137 = sphi 0, %s135
      %s138 = sphi 0, %s137
      %s152 = sphi 0, %s138
      %s156 = sphi 0, %s156
      %s158 = sphi 0, %s156
      %s159 = sphi 0, %s158
      %s173 = sphi 0, %s159
      %s179 = sphi 0, %s181
      %s182 = sphi 0, %s179
      %s183 = sphi 0, %s182
      %s199 = sphi 0, %s183
      %s205 = sphi 0, %s207
      %s208 = sphi 0, %s205
      %s209 = sphi 0, %s208
      %s225 = sphi 0, %s209
      %s231 = sphi 0, %s233
      %s234 = sphi 0, %s231
      %s235 = sphi 0, %s234
      %s251 = sphi 0, %s235
      %s255 = sphi 0, %s255
      %s257 = sphi 0, %s255
      %s258 = sphi 0, %s257
      %s272 = sphi 0, %s258
      %s276 = sphi 0, %s276
      %s278 = sphi 0, %s276
      %s279 = sphi 0, %s278
      %s293 = sphi 0, %s279
    $region4: #{binary_coding_forward.1} parent=1 // loop_header_branch
      %25 = sbr.rel (%p23) target = $region8
    $region5: #{binary_coding_forward.1} parent=1 // loop_body
      %s27 = ssub.s32 %s22, 1
      %s28 = ssub.s32 %s22, 2
      %s29 = sadd.s32 %s22, 1
      %s31 = sadd.s32 %s30, 1
      %p34 = scmp.eq.s32.totalorder %s22, 1
      %p35 = scmp.ne.s32.totalorder %s30, %s32
      %p36 = scmp.eq.s32.totalorder %s22, 0
      %p37 = por %p35, %p36
      %p38 = scmp.ne.s32.totalorder %s30, %s32
      %p39 = scmp.eq.s32.totalorder %s27, 1
      %p40 = por %p38, %p39
      %p41 = scmp.ne.s32.totalorder %s32, %s33
      %p42 = scmp.eq.s32.totalorder %s27, 0
      %p43 = por %p41, %p42
      %p44 = scmp.ne.s32.totalorder %s32, %s33
      %p45 = scmp.eq.s32.totalorder %s28, 1
      %p46 = por %p44, %p45
      %p48 = scmp.ne.s32.totalorder %s33, %s47
      %p49 = scmp.eq.s32.totalorder %s28, 0
      %p50 = por %p48, %p49
      %s52 = sadd.s32 %s51, 1
      %p55 = scmp.eq.s32.totalorder %s22, 1
      %p56 = scmp.ne.s32.totalorder %s51, %s53
      %p57 = scmp.eq.s32.totalorder %s22, 0
      %p58 = por %p56, %p57
      %p59 = scmp.ne.s32.totalorder %s51, %s53
      %p60 = scmp.eq.s32.totalorder %s27, 1
      %p61 = por %p59, %p60
      %p62 = scmp.ne.s32.totalorder %s53, %s54
      %p63 = scmp.eq.s32.totalorder %s27, 0
      %p64 = por %p62, %p63
      %p65 = scmp.ne.s32.totalorder %s53, %s54
      %p66 = scmp.eq.s32.totalorder %s28, 1
      %p67 = por %p65, %p66
      %p69 = scmp.ne.s32.totalorder %s54, %s68
      %p70 = scmp.eq.s32.totalorder %s28, 0
      %p71 = por %p69, %p70
      %s73 = sadd.s32 %s72, 1
      %p76 = scmp.eq.s32.totalorder %s22, 1
      %p77 = scmp.ne.s32.totalorder %s72, %s74
      %p78 = scmp.eq.s32.totalorder %s22, 0
      %p79 = por %p77, %p78
      %p80 = scmp.ne.s32.totalorder %s72, %s74
      %p81 = scmp.eq.s32.totalorder %s27, 1
      %p82 = por %p80, %p81
      %p83 = scmp.ne.s32.totalorder %s74, %s75
      %p84 = scmp.eq.s32.totalorder %s27, 0
      %p85 = por %p83, %p84
      %p86 = scmp.ne.s32.totalorder %s74, %s75
      %p87 = scmp.eq.s32.totalorder %s28, 1
      %p88 = por %p86, %p87
      %p90 = scmp.ne.s32.totalorder %s75, %s89
      %p91 = scmp.eq.s32.totalorder %s28, 0
      %p92 = por %p90, %p91
      %s94 = sadd.s32 %s93, 1
      %p97 = scmp.eq.s32.totalorder %s22, 1
      %p98 = scmp.ne.s32.totalorder %s93, %s95
      %p99 = scmp.eq.s32.totalorder %s22, 0
      %p100 = por %p98, %p99
      %p101 = scmp.ne.s32.totalorder %s93, %s95
      %p102 = scmp.eq.s32.totalorder %s27, 1
      %p103 = por %p101, %p102
      %p104 = scmp.ne.s32.totalorder %s95, %s96
      %p105 = scmp.eq.s32.totalorder %s27, 0
      %p106 = por %p104, %p105
      %p107 = scmp.ne.s32.totalorder %s95, %s96
      %p108 = scmp.eq.s32.totalorder %s28, 1
      %p109 = por %p107, %p108
      %p111 = scmp.ne.s32.totalorder %s96, %s110
      %p112 = scmp.eq.s32.totalorder %s28, 0
      %p113 = por %p111, %p112
      %s115 = sadd.s32 %s114, 1
      %p118 = scmp.eq.s32.totalorder %s22, 1
      %p119 = scmp.ne.s32.totalorder %s114, %s116
      %p120 = scmp.eq.s32.totalorder %s22, 0
      %p121 = por %p119, %p120
      %p122 = scmp.ne.s32.totalorder %s114, %s116
      %p123 = scmp.eq.s32.totalorder %s27, 1
      %p124 = por %p122, %p123
      %p125 = scmp.ne.s32.totalorder %s116, %s117
      %p126 = scmp.eq.s32.totalorder %s27, 0
      %p127 = por %p125, %p126
      %p128 = scmp.ne.s32.totalorder %s116, %s117
      %p129 = scmp.eq.s32.totalorder %s28, 1
      %p130 = por %p128, %p129
      %p132 = scmp.ne.s32.totalorder %s117, %s131
      %p133 = scmp.eq.s32.totalorder %s28, 0
      %p134 = por %p132, %p133
      %s136 = sadd.s32 %s135, 1
      %p139 = scmp.eq.s32.totalorder %s22, 1
      %p140 = scmp.ne.s32.totalorder %s135, %s137
      %p141 = scmp.eq.s32.totalorder %s22, 0
      %p142 = por %p140, %p141
      %p143 = scmp.ne.s32.totalorder %s135, %s137
      %p144 = scmp.eq.s32.totalorder %s27, 1
      %p145 = por %p143, %p144
      %p146 = scmp.ne.s32.totalorder %s137, %s138
      %p147 = scmp.eq.s32.totalorder %s27, 0
      %p148 = por %p146, %p147
      %p149 = scmp.ne.s32.totalorder %s137, %s138
      %p150 = scmp.eq.s32.totalorder %s28, 1
      %p151 = por %p149, %p150
      %p153 = scmp.ne.s32.totalorder %s138, %s152
      %p154 = scmp.eq.s32.totalorder %s28, 0
      %p155 = por %p153, %p154
      %s157 = sadd.s32 %s156, 1
      %p160 = scmp.eq.s32.totalorder %s22, 1
      %p161 = scmp.ne.s32.totalorder %s156, %s158
      %p162 = scmp.eq.s32.totalorder %s22, 0
      %p163 = por %p161, %p162
      %p164 = scmp.ne.s32.totalorder %s156, %s158
      %p165 = scmp.eq.s32.totalorder %s27, 1
      %p166 = por %p164, %p165
      %p167 = scmp.ne.s32.totalorder %s158, %s159
      %p168 = scmp.eq.s32.totalorder %s27, 0
      %p169 = por %p167, %p168
      %p170 = scmp.ne.s32.totalorder %s158, %s159
      %p171 = scmp.eq.s32.totalorder %s28, 1
      %p172 = por %p170, %p171
      %p174 = scmp.ne.s32.totalorder %s159, %s173
      %p175 = scmp.eq.s32.totalorder %s28, 0
      %p176 = por %p174, %p175
      %s177 = ssub.s32 %s22, %s29
      %p178 = scmp.eq.s32.totalorder %s177, 0
      %s180 = sadd.s32 %s179, 1
      %s181 = scalar_select %p178, %s179, %s180
      %p184 = pneg %p178
      %p185 = scmp.eq.s32.totalorder %s22, 1
      %p186 = por %p184, %p185
      %p187 = scmp.ne.s32.totalorder %s179, %s182
      %p188 = scmp.eq.s32.totalorder %s22, 0
      %p189 = por %p187, %p188
      %p190 = scmp.ne.s32.totalorder %s179, %s182
      %p191 = scmp.eq.s32.totalorder %s27, 1
      %p192 = por %p190, %p191
      %p193 = scmp.ne.s32.totalorder %s182, %s183
      %p194 = scmp.eq.s32.totalorder %s27, 0
      %p195 = por %p193, %p194
      %p196 = scmp.ne.s32.totalorder %s182, %s183
      %p197 = scmp.eq.s32.totalorder %s28, 1
      %p198 = por %p196, %p197
      %p200 = scmp.ne.s32.totalorder %s183, %s199
      %p201 = scmp.eq.s32.totalorder %s28, 0
      %p202 = por %p200, %p201
      %s203 = ssub.s32 %s22, %s29
      %p204 = scmp.eq.s32.totalorder %s203, 0
      %s206 = sadd.s32 %s205, 1
      %s207 = scalar_select %p204, %s205, %s206
      %p210 = pneg %p204
      %p211 = scmp.eq.s32.totalorder %s22, 1
      %p212 = por %p210, %p211
      %p213 = scmp.ne.s32.totalorder %s205, %s208
      %p214 = scmp.eq.s32.totalorder %s22, 0
      %p215 = por %p213, %p214
      %p216 = scmp.ne.s32.totalorder %s205, %s208
      %p217 = scmp.eq.s32.totalorder %s27, 1
      %p218 = por %p216, %p217
      %p219 = scmp.ne.s32.totalorder %s208, %s209
      %p220 = scmp.eq.s32.totalorder %s27, 0
      %p221 = por %p219, %p220
      %p222 = scmp.ne.s32.totalorder %s208, %s209
      %p223 = scmp.eq.s32.totalorder %s28, 1
      %p224 = por %p222, %p223
      %p226 = scmp.ne.s32.totalorder %s209, %s225
      %p227 = scmp.eq.s32.totalorder %s28, 0
      %p228 = por %p226, %p227
      %s229 = ssub.s32 %s22, %s29
      %p230 = scmp.eq.s32.totalorder %s229, 0
      %s232 = sadd.s32 %s231, 1
      %s233 = scalar_select %p230, %s231, %s232
      %p236 = pneg %p230
      %p237 = scmp.eq.s32.totalorder %s22, 1
      %p238 = por %p236, %p237
      %p239 = scmp.ne.s32.totalorder %s231, %s234
      %p240 = scmp.eq.s32.totalorder %s22, 0
      %p241 = por %p239, %p240
      %p242 = scmp.ne.s32.totalorder %s231, %s234
      %p243 = scmp.eq.s32.totalorder %s27, 1
      %p244 = por %p242, %p243
      %p245 = scmp.ne.s32.totalorder %s234, %s235
      %p246 = scmp.eq.s32.totalorder %s27, 0
      %p247 = por %p245, %p246
      %p248 = scmp.ne.s32.totalorder %s234, %s235
      %p249 = scmp.eq.s32.totalorder %s28, 1
      %p250 = por %p248, %p249
      %p252 = scmp.ne.s32.totalorder %s235, %s251
      %p253 = scmp.eq.s32.totalorder %s28, 0
      %p254 = por %p252, %p253
      %s256 = sadd.s32 %s255, 1
      %p259 = scmp.eq.s32.totalorder %s22, 1
      %p260 = scmp.ne.s32.totalorder %s255, %s257
      %p261 = scmp.eq.s32.totalorder %s22, 0
      %p262 = por %p260, %p261
      %p263 = scmp.ne.s32.totalorder %s255, %s257
      %p264 = scmp.eq.s32.totalorder %s27, 1
      %p265 = por %p263, %p264
      %p266 = scmp.ne.s32.totalorder %s257, %s258
      %p267 = scmp.eq.s32.totalorder %s27, 0
      %p268 = por %p266, %p267
      %p269 = scmp.ne.s32.totalorder %s257, %s258
      %p270 = scmp.eq.s32.totalorder %s28, 1
      %p271 = por %p269, %p270
      %p273 = scmp.ne.s32.totalorder %s258, %s272
      %p274 = scmp.eq.s32.totalorder %s28, 0
      %p275 = por %p273, %p274
      %s277 = sadd.s32 %s276, 1
      %p280 = scmp.eq.s32.totalorder %s22, 1
      %p281 = scmp.ne.s32.totalorder %s276, %s278
      %p282 = scmp.eq.s32.totalorder %s22, 0
      %p283 = por %p281, %p282
      %p284 = scmp.ne.s32.totalorder %s276, %s278
      %p285 = scmp.eq.s32.totalorder %s27, 1
      %p286 = por %p284, %p285
      %p287 = scmp.ne.s32.totalorder %s278, %s279
      %p288 = scmp.eq.s32.totalorder %s27, 0
      %p289 = por %p287, %p288
      %p290 = scmp.ne.s32.totalorder %s278, %s279
      %p291 = scmp.eq.s32.totalorder %s28, 1
      %p292 = por %p290, %p291
      %p294 = scmp.ne.s32.totalorder %s279, %s293
      %p295 = scmp.eq.s32.totalorder %s28, 0
      %p296 = por %p294, %p295
      %p297 = scmp.le.s32.totalorder 1, %s22
      %p298 = scmp.lt.s32.totalorder %s22, 3
      %p299 = pnand %p297, %p298
      %p300 = pneg %p299
      // Predicated region
      $region9: #{binary_coding_forward.1} parent=5 // pred_check
        _
      $region10: #{binary_coding_forward.1} parent=5 // pred_check_branch
        %302 = sbr.rel (%p299) target = $region12
      $region11: #{binary_coding_forward.1} parent=5 // pred_region
        %s303 = ssub.s32 %s22, 1
        // Predicated region
        $region13: #{binary_coding_forward.1} parent=11 // pred_check
          %p304 = pneg %p43
        $region14: #{binary_coding_forward.1} parent=11 // pred_check_branch
          %306 = sbr.rel (%p304) target = $region16
        $region15: #{binary_coding_forward.1} parent=11 // pred_region
          _
        $region16: #{binary_coding_forward.1} parent=11 // pred_fallthru
          _
        // Predicated region
        $region17: #{binary_coding_forward.1} parent=11 // pred_check
          %p307 = pneg %p64
        $region18: #{binary_coding_forward.1} parent=11 // pred_check_branch
          %309 = sbr.rel (%p307) target = $region20
        $region19: #{binary_coding_forward.1} parent=11 // pred_region
          %311 = vsyncadd [#allocation5], 0
          %s312 = sshll.u32 %s1, 4
          %s313 = int_to_ptr.hbm [resolvable:$true] %s312
          %s314 = sshll.u32 [#allocation4], 4
          %s315 = int_to_ptr.vmem [resolvable:$true] %s314
          %320 = dma.hbm_to_vmem [thread:$0]  %s313, 6720, %s315, [#allocation5], 320, 320, 20
        $region20: #{binary_coding_forward.1} parent=11 // pred_fallthru
          _
        // Predicated region
        $region21: #{binary_coding_forward.1} parent=11 // pred_check
          %p321 = pneg %p85
        $region22: #{binary_coding_forward.1} parent=11 // pred_check_branch
          %323 = sbr.rel (%p321) target = $region24
        $region23: #{binary_coding_forward.1} parent=11 // pred_region
          %325 = vsyncadd [#allocation8], 0
          %s327 = sshll.u32 %s2, 4
          %s328 = int_to_ptr.hbm [resolvable:$true] %s327
          %s329 = sshll.u32 [#allocation7], 4
          %s330 = int_to_ptr.vmem [resolvable:$true] %s329
          %332 = dma.hbm_to_vmem [thread:$0]  %s328, 80, %s330, [#allocation8]
        $region24: #{binary_coding_forward.1} parent=11 // pred_fallthru
          _
        // Predicated region
        $region25: #{binary_coding_forward.1} parent=11 // pred_check
          %p333 = pneg %p106
        $region26: #{binary_coding_forward.1} parent=11 // pred_check_branch
          %335 = sbr.rel (%p333) target = $region28
        $region27: #{binary_coding_forward.1} parent=11 // pred_region
          %337 = vsyncadd [#allocation8], 0
          %s338 = sshll.u32 %s3, 4
          %s339 = int_to_ptr.hbm [resolvable:$true] %s338
          %s340 = sshll.u32 [#allocation9], 4
          %s341 = int_to_ptr.vmem [resolvable:$true] %s340
          %346 = dma.hbm_to_vmem [thread:$0]  %s339, 1536, %s341, [#allocation8], 192, 192, 12
        $region28: #{binary_coding_forward.1} parent=11 // pred_fallthru
          _
        // Predicated region
        $region29: #{binary_coding_forward.1} parent=11 // pred_check
          %p347 = pneg %p127
        $region30: #{binary_coding_forward.1} parent=11 // pred_check_branch
          %349 = sbr.rel (%p347) target = $region32
        $region31: #{binary_coding_forward.1} parent=11 // pred_region
          %351 = vsyncadd [#allocation11], 0
          %s353 = sshll.u32 %s4, 4
          %s354 = int_to_ptr.hbm [resolvable:$true] %s353
          %s355 = sshll.u32 [#allocation10], 4
          %s356 = int_to_ptr.vmem [resolvable:$true] %s355
          %358 = dma.hbm_to_vmem [thread:$0]  %s354, 16, %s356, [#allocation11]
        $region32: #{binary_coding_forward.1} parent=11 // pred_fallthru
          _
        // Predicated region
        $region33: #{binary_coding_forward.1} parent=11 // pred_check
          %p359 = pneg %p148
        $region34: #{binary_coding_forward.1} parent=11 // pred_check_branch
          %361 = sbr.rel (%p359) target = $region36
        $region35: #{binary_coding_forward.1} parent=11 // pred_region
          %363 = vsyncadd [#allocation11], 0
          %s364 = sshll.u32 %s5, 4
          %s365 = int_to_ptr.hbm [resolvable:$true] %s364
          %s366 = sshll.u32 [#allocation12], 4
          %s367 = int_to_ptr.vmem [resolvable:$true] %s366
          %372 = dma.hbm_to_vmem [thread:$0]  %s365, 256, %s367, [#allocation11], 64, 64, 4
        $region36: #{binary_coding_forward.1} parent=11 // pred_fallthru
          _
        // Predicated region
        $region37: #{binary_coding_forward.1} parent=11 // pred_check
          %p373 = pneg %p169
        $region38: #{binary_coding_forward.1} parent=11 // pred_check_branch
          %375 = sbr.rel (%p373) target = $region40
        $region39: #{binary_coding_forward.1} parent=11 // pred_region
          %377 = vsyncadd [#allocation14], 0
          %s379 = sshll.u32 %s6, 4
          %s380 = int_to_ptr.hbm [resolvable:$true] %s379
          %s381 = sshll.u32 [#allocation13], 4
          %s382 = int_to_ptr.vmem [resolvable:$true] %s381
          %384 = dma.hbm_to_vmem [thread:$0]  %s380, 16, %s382, [#allocation14]
        $region40: #{binary_coding_forward.1} parent=11 // pred_fallthru
          _
        // Predicated region
        $region41: #{binary_coding_forward.1} parent=11 // pred_check
          %p385 = pneg %p268
        $region42: #{binary_coding_forward.1} parent=11 // pred_check_branch
          %387 = sbr.rel (%p385) target = $region44
        $region43: #{binary_coding_forward.1} parent=11 // pred_region
          %389 = vsyncadd [#allocation8], 0
          %s391 = sshll.u32 %s10, 4
          %s392 = int_to_ptr.hbm [resolvable:$true] %s391
          %s393 = sshll.u32 [#allocation17], 4
          %s394 = int_to_ptr.vmem [resolvable:$true] %s393
          %396 = dma.hbm_to_vmem [thread:$0]  %s392, 16, %s394, [#allocation8]
        $region44: #{binary_coding_forward.1} parent=11 // pred_fallthru
          _
      $region12: #{binary_coding_forward.1} parent=5 // pred_fallthru
        _
      %p397 = scmp.lt.s32.totalorder %s22, 2
      // Predicated region
      $region45: #{binary_coding_forward.1} parent=5 // pred_check
        %p398 = pneg %p397
      $region46: #{binary_coding_forward.1} parent=5 // pred_check_branch
        %400 = sbr.rel (%p398) target = $region48
      $region47: #{binary_coding_forward.1} parent=5 // pred_region
        // Predicated region
        $region49: #{binary_coding_forward.1} parent=47 // pred_check
          %p401 = pneg %p189
        $region50: #{binary_coding_forward.1} parent=47 // pred_check_branch
          %403 = sbr.rel (%p401) target = $region52
        $region51: #{binary_coding_forward.1} parent=47 // pred_region
          %s404 = sand.u32 %s22, 1
          %s405 = scalar_lea.sflag [#allocation5], %s404
          %s406 = sand.u32 %s179, 1
          %s407 = smul.addr %s406, 1600
          %s408 = scalar_lea.vmem [#allocation15], %s407
          %s409 = smul.u32 2, %s22
          %411 = vsyncadd %s405, 0
          %s412 = smul.addr %s409, 4
          %s413 = scalar_lea.hbm %s7, %s412
          %s414 = sshll.u32 %s413, 4
          %s415 = int_to_ptr.hbm [resolvable:$true] %s414
          %s416 = sshll.u32 %s408, 4
          %s417 = int_to_ptr.vmem [resolvable:$true] %s416
          %422 = dma.hbm_to_vmem [thread:$0]  %s415, 25600, %s417, %s405, 256, 128, 8
        $region52: #{binary_coding_forward.1} parent=47 // pred_fallthru
          _
        // Predicated region
        $region53: #{binary_coding_forward.1} parent=47 // pred_check
          %p423 = pneg %p215
        $region54: #{binary_coding_forward.1} parent=47 // pred_check_branch
          %425 = sbr.rel (%p423) target = $region56
        $region55: #{binary_coding_forward.1} parent=47 // pred_region
          %s426 = sand.u32 %s22, 1
          %s427 = scalar_lea.sflag [#allocation5], %s426
          %s428 = sand.u32 %s205, 1
          %s429 = smul.addr %s428, 2
          %s430 = scalar_lea.vmem [#allocation16], %s429
          %s431 = smul.u32 2, %s22
          %433 = vsyncadd %s427, 0
          %s434 = scalar_lea.hbm %s8, %s431
          %s436 = sshll.u32 %s434, 4
          %s437 = int_to_ptr.hbm [resolvable:$true] %s436
          %s438 = sshll.u32 %s430, 4
          %s439 = int_to_ptr.vmem [resolvable:$true] %s438
          %441 = dma.hbm_to_vmem [thread:$0]  %s437, 32, %s439, %s427
        $region56: #{binary_coding_forward.1} parent=47 // pred_fallthru
          _
        // Predicated region
        $region57: #{binary_coding_forward.1} parent=47 // pred_check
          %p442 = pneg %p241
        $region58: #{binary_coding_forward.1} parent=47 // pred_check_branch
          %444 = sbr.rel (%p442) target = $region60
        $region59: #{binary_coding_forward.1} parent=47 // pred_region
          %s445 = smul.u32 32, %s22
          %p446 = scmp.lt.s32.totalorder %s445, 63
          %s447 = scalar_select %p446, %s445, 63
          %s448 = smul.addr %s447, 4
          %s449 = scalar_lea.vmem %s9, %s448
          %s450 = smul.u32 32, %s22
        $region60: #{binary_coding_forward.1} parent=47 // pred_fallthru
          _
      $region48: #{binary_coding_forward.1} parent=5 // pred_fallthru
        _
      %p451 = scmp.le.s32.totalorder 1, %s22
      %p452 = scmp.lt.s32.totalorder %s22, 3
      %p453 = pnand %p451, %p452
      %p454 = pneg %p453
      // Predicated region
      $region61: #{binary_coding_forward.1} parent=5 // pred_check
        _
      $region62: #{binary_coding_forward.1} parent=5 // pred_check_branch
        %456 = sbr.rel (%p453) target = $region64
      $region63: #{binary_coding_forward.1} parent=5 // pred_region
        %s457 = ssub.s32 %s22, 1
        // Predicated region
        $region65: #{binary_coding_forward.1} parent=63 // pred_check
          %p458 = pneg %p64
        $region66: #{binary_coding_forward.1} parent=63 // pred_check_branch
          %460 = sbr.rel (%p458) target = $region68
        $region67: #{binary_coding_forward.1} parent=63 // pred_region
          %462 = dma.done [#allocation5], 6720
        $region68: #{binary_coding_forward.1} parent=63 // pred_fallthru
          _
        // Predicated region
        $region69: #{binary_coding_forward.1} parent=63 // pred_check
          %p463 = pneg %p85
        $region70: #{binary_coding_forward.1} parent=63 // pred_check_branch
          %465 = sbr.rel (%p463) target = $region72
        $region71: #{binary_coding_forward.1} parent=63 // pred_region
          %467 = dma.done [#allocation8], 80
        $region72: #{binary_coding_forward.1} parent=63 // pred_fallthru
          _
        // Predicated region
        $region73: #{binary_coding_forward.1} parent=63 // pred_check
          %p468 = pneg %p106
        $region74: #{binary_coding_forward.1} parent=63 // pred_check_branch
          %470 = sbr.rel (%p468) target = $region76
        $region75: #{binary_coding_forward.1} parent=63 // pred_region
          %472 = dma.done [#allocation8], 1536
        $region76: #{binary_coding_forward.1} parent=63 // pred_fallthru
          _
        // Predicated region
        $region77: #{binary_coding_forward.1} parent=63 // pred_check
          %p473 = pneg %p127
        $region78: #{binary_coding_forward.1} parent=63 // pred_check_branch
          %475 = sbr.rel (%p473) target = $region80
        $region79: #{binary_coding_forward.1} parent=63 // pred_region
          %477 = dma.done [#allocation11], 16
        $region80: #{binary_coding_forward.1} parent=63 // pred_fallthru
          _
        // Predicated region
        $region81: #{binary_coding_forward.1} parent=63 // pred_check
          %p478 = pneg %p148
        $region82: #{binary_coding_forward.1} parent=63 // pred_check_branch
          %480 = sbr.rel (%p478) target = $region84
        $region83: #{binary_coding_forward.1} parent=63 // pred_region
          %482 = dma.done [#allocation11], 256
        $region84: #{binary_coding_forward.1} parent=63 // pred_fallthru
          _
        // Predicated region
        $region85: #{binary_coding_forward.1} parent=63 // pred_check
          %p483 = pneg %p169
        $region86: #{binary_coding_forward.1} parent=63 // pred_check_branch
          %485 = sbr.rel (%p483) target = $region88
        $region87: #{binary_coding_forward.1} parent=63 // pred_region
          %487 = dma.done [#allocation14], 16
        $region88: #{binary_coding_forward.1} parent=63 // pred_fallthru
          _
        %s488 = sand.u32 %s27, 1
        %s489 = scalar_lea.sflag [#allocation5], %s488
        %s490 = sand.u32 %s182, 1
        %s491 = smul.addr %s490, 1600
        %s492 = scalar_lea.vmem [#allocation15], %s491
        // Predicated region
        $region89: #{binary_coding_forward.1} parent=63 // pred_check
          %p493 = pneg %p195
        $region90: #{binary_coding_forward.1} parent=63 // pred_check_branch
          %495 = sbr.rel (%p493) target = $region92
        $region91: #{binary_coding_forward.1} parent=63 // pred_region
          %497 = dma.done %s489, 25600
        $region92: #{binary_coding_forward.1} parent=63 // pred_fallthru
          _
        %s498 = sand.u32 %s27, 1
        %s499 = scalar_lea.sflag [#allocation5], %s498
        %s500 = sand.u32 %s208, 1
        %s501 = smul.addr %s500, 2
        %s502 = scalar_lea.vmem [#allocation16], %s501
        // Predicated region
        $region93: #{binary_coding_forward.1} parent=63 // pred_check
          %p503 = pneg %p221
        $region94: #{binary_coding_forward.1} parent=63 // pred_check_branch
          %505 = sbr.rel (%p503) target = $region96
        $region95: #{binary_coding_forward.1} parent=63 // pred_region
          %507 = dma.done %s499, 32
        $region96: #{binary_coding_forward.1} parent=63 // pred_fallthru
          _
        // Predicated region
        $region97: #{binary_coding_forward.1} parent=63 // pred_check
          %p508 = pneg %p268
        $region98: #{binary_coding_forward.1} parent=63 // pred_check_branch
          %510 = sbr.rel (%p508) target = $region100
        $region99: #{binary_coding_forward.1} parent=63 // pred_region
          %512 = dma.done [#allocation8], 16
        $region100: #{binary_coding_forward.1} parent=63 // pred_fallthru
          _
        %p513 = pneg %p43
        %p514 = pneg %p40
        %p515 = pneg %p64
        %p516 = pneg %p61
        %p517 = pneg %p85
        %p518 = pneg %p82
        %p519 = pneg %p106
        %p520 = pneg %p103
        %p521 = pneg %p127
        %p522 = pneg %p124
        %p523 = pneg %p148
        %p524 = pneg %p145
        %p525 = pneg %p169
        %p526 = pneg %p166
        %s527 = sand.u32 %s27, 1
        %s528 = scalar_lea.sflag [#allocation5], %s527
        %s529 = sand.u32 %s182, 1
        %s530 = smul.addr %s529, 1600
        %s531 = scalar_lea.vmem [#allocation15], %s530
        %p532 = pneg %p195
        %p533 = pneg %p192
        %s534 = sand.u32 %s27, 1
        %s535 = scalar_lea.sflag [#allocation5], %s534
        %s536 = sand.u32 %s208, 1
        %s537 = smul.addr %s536, 2
        %s538 = scalar_lea.vmem [#allocation16], %s537
        %p539 = pneg %p221
        %p540 = pneg %p218
        %s541 = smul.u32 32, %s27
        %p542 = scmp.lt.s32.totalorder %s541, 63
        %s543 = scalar_select %p542, %s541, 63
        %s544 = smul.addr %s543, 4
        %s545 = scalar_lea.vmem %s9, %s544
        %p546 = pneg %p247
        %p547 = pneg %p244
        %p548 = pneg %p268
        %p549 = pneg %p265
        %p550 = pneg %p289
        %p551 = pneg %p286
        %s552 = smul.u32 2, %s27
        %s553 = smul.u32 2, %s27
        %s554 = smul.u32 32, %s27
        %p555 = scmp.lt.s32.totalorder %s554, 63
        %s556 = scalar_select %p555, %s554, 63
        %s557 = smul.addr %s556, 4
        %s558 = scalar_lea.vmem %s9, %s557
        %s559 = smul.u32 32, %s27
        %p561 = scmp.eq.s32.totalorder %s27, 0
        // Predicated region
        $region101: #{binary_coding_forward.1} parent=63 // pred_check
          %p562 = pneg %p561
        $region102: #{binary_coding_forward.1} parent=63 // pred_check_branch
          %564 = sbr.rel (%p562) target = $region104
        $region103: #{binary_coding_forward.1} parent=63 // pred_region
          %vm565 = vcmask 254976
          %566 = vst.msk [vmem:[#allocation3] sm:$0x3] %vm565, 0.0
          %v567 = vld [vmem:[%s0] sm:$0xf]
          %569 = vst [vmem:[#allocation1] ss:$4 sm:$0xff] %v567
          %v570 = vld.sshfl [vmem:[#allocation1] sm:$0xff pattern:$0x73625140]
          %v571 = vld.sshfl [vmem:[#allocation1 + $0x8] sm:$0xff pattern:$0x73625140]
          %v574 = vpack.c.bf16 %v570, %v570
          %v575 = vpack.c.bf16 %v571, %v571
          %v576 = vld [vmem:[#allocation4] sm:$0xff]
          %v577 = vld [vmem:[#allocation4 + $0x8] sm:$0xff]
          %v578 = vld [vmem:[#allocation4 + $0x10] sm:$0xf]
          %v579 = vld [vmem:[#allocation4 + $0x14] sm:$0xff]
          %v580 = vld [vmem:[#allocation4 + $0x1c] sm:$0xff]
          %v581 = vld [vmem:[#allocation4 + $0x24] sm:$0xf]
          %v582 = vld [vmem:[#allocation4 + $0x28] sm:$0xff]
          %v583 = vld [vmem:[#allocation4 + $0x30] sm:$0xff]
          %v584 = vld [vmem:[#allocation4 + $0x38] sm:$0xf]
          %v585 = vld [vmem:[#allocation4 + $0x3c] sm:$0xff]
          %v586 = vld [vmem:[#allocation4 + $0x44] sm:$0xff]
          %v587 = vld [vmem:[#allocation4 + $0x4c] sm:$0xf]
          %v588 = vld [vmem:[#allocation4 + $0x50] sm:$0xff]
          %v589 = vld [vmem:[#allocation4 + $0x58] sm:$0xff]
          %v590 = vld [vmem:[#allocation4 + $0x60] sm:$0xf]
          %v591 = vld [vmem:[#allocation4 + $0x64] sm:$0xff]
          %v592 = vld [vmem:[#allocation4 + $0x6c] sm:$0xff]
          %v593 = vld [vmem:[#allocation4 + $0x74] sm:$0xf]
          %v594 = vld [vmem:[#allocation4 + $0x78] sm:$0xff]
          %v595 = vld [vmem:[#allocation4 + $0x80] sm:$0xff]
          %v596 = vld [vmem:[#allocation4 + $0x88] sm:$0xf]
          %v597 = vld [vmem:[#allocation4 + $0x8c] sm:$0xff]
          %v598 = vld [vmem:[#allocation4 + $0x94] sm:$0xff]
          %v599 = vld [vmem:[#allocation4 + $0x9c] sm:$0xf]
          %v600 = vld [vmem:[#allocation4 + $0xa0] sm:$0xff]
          %v601 = vld [vmem:[#allocation4 + $0xa8] sm:$0xff]
          %v602 = vld [vmem:[#allocation4 + $0xb0] sm:$0xf]
          %v603 = vld [vmem:[#allocation4 + $0xb4] sm:$0xff]
          %v604 = vld [vmem:[#allocation4 + $0xbc] sm:$0xff]
          %v605 = vld [vmem:[#allocation4 + $0xc4] sm:$0xf]
          %v606 = vld [vmem:[#allocation4 + $0xc8] sm:$0xff]
          %v607 = vld [vmem:[#allocation4 + $0xd0] sm:$0xff]
          %v608 = vld [vmem:[#allocation4 + $0xd8] sm:$0xf]
          %v609 = vld [vmem:[#allocation4 + $0xdc] sm:$0xff]
          %v610 = vld [vmem:[#allocation4 + $0xe4] sm:$0xff]
          %v611 = vld [vmem:[#allocation4 + $0xec] sm:$0xf]
          %v612 = vld [vmem:[#allocation4 + $0xf0] sm:$0xff]
          %v613 = vld [vmem:[#allocation4 + $0xf8] sm:$0xff]
          %v614 = vld [vmem:[#allocation4 + $0x100] sm:$0xf]
          %v615 = vld [vmem:[#allocation4 + $0x104] sm:$0xff]
          %v616 = vld [vmem:[#allocation4 + $0x10c] sm:$0xff]
          %v617 = vld [vmem:[#allocation4 + $0x114] sm:$0xf]
          %v618 = vld [vmem:[#allocation4 + $0x118] sm:$0xff]
          %v619 = vld [vmem:[#allocation4 + $0x120] sm:$0xff]
          %v620 = vld [vmem:[#allocation4 + $0x128] sm:$0xf]
          %v621 = vld [vmem:[#allocation4 + $0x12c] sm:$0xff]
          %v622 = vld [vmem:[#allocation4 + $0x134] sm:$0xff]
          %v623 = vld [vmem:[#allocation4 + $0x13c] sm:$0xf]
          %v624 = vld [vmem:[#allocation4 + $0x140] sm:$0xff]
          %v625 = vld [vmem:[#allocation4 + $0x148] sm:$0xff]
          %v626 = vld [vmem:[#allocation4 + $0x150] sm:$0xf]
          %v627 = vld [vmem:[#allocation4 + $0x154] sm:$0xff]
          %v628 = vld [vmem:[#allocation4 + $0x15c] sm:$0xff]
          %v629 = vld [vmem:[#allocation4 + $0x164] sm:$0xf]
          %v630 = vld [vmem:[#allocation4 + $0x168] sm:$0xff]
          %v631 = vld [vmem:[#allocation4 + $0x170] sm:$0xff]
          %v632 = vld [vmem:[#allocation4 + $0x178] sm:$0xf]
          %v633 = vld [vmem:[#allocation4 + $0x17c] sm:$0xff]
          %v634 = vld [vmem:[#allocation4 + $0x184] sm:$0xff]
          %v635 = vld [vmem:[#allocation4 + $0x18c] sm:$0xf]
          %v636 = vld [vmem:[#allocation4 + $0x190] sm:$0x11]
          %v637 = vld [vmem:[#allocation4 + $0x198] sm:$0x11]
          %v638 = vld [vmem:[#allocation4 + $0x1a0] sm:$0x1]
          %v639 = vld [vmem:[#allocation7] sm:$0x1f]
          %v641 = vperm.slane %v639, 0
          %v642 = vperm.slane %v639, 1
          %v643 = vperm.slane %v639, 2
          %v644 = vperm.slane %v639, 3
          %v645 = vperm.slane %v639, 4
          %v714 = vunpack.c.l.b16 %v576
          %v715 = vunpack.c.h.b16 %v576
          %v716 = vunpack.c.l.b16 %v577
          %v717 = vunpack.c.h.b16 %v577
          %v718 = vunpack.c.l.b16 %v578
          %v719 = vunpack.c.l.b16 %v579
          %v720 = vunpack.c.h.b16 %v579
          %v721 = vunpack.c.l.b16 %v580
          %v722 = vunpack.c.h.b16 %v580
          %v723 = vunpack.c.l.b16 %v581
          %v724 = vunpack.c.l.b16 %v582
          %v725 = vunpack.c.h.b16 %v582
          %v726 = vunpack.c.l.b16 %v583
          %v727 = vunpack.c.h.b16 %v583
          %v728 = vunpack.c.l.b16 %v584
          %v729 = vunpack.c.l.b16 %v585
          %v730 = vunpack.c.h.b16 %v585
          %v731 = vunpack.c.l.b16 %v586
          %v732 = vunpack.c.h.b16 %v586
          %v733 = vunpack.c.l.b16 %v587
          %v734 = vunpack.c.l.b16 %v588
          %v735 = vunpack.c.h.b16 %v588
          %v736 = vunpack.c.l.b16 %v589
          %v737 = vunpack.c.h.b16 %v589
          %v738 = vunpack.c.l.b16 %v590
          %v739 = vunpack.c.l.b16 %v591
          %v740 = vunpack.c.h.b16 %v591
          %v741 = vunpack.c.l.b16 %v592
          %v742 = vunpack.c.h.b16 %v592
          %v743 = vunpack.c.l.b16 %v593
          %v744 = vunpack.c.l.b16 %v594
          %v745 = vunpack.c.h.b16 %v594
          %v746 = vunpack.c.l.b16 %v595
          %v747 = vunpack.c.h.b16 %v595
          %v748 = vunpack.c.l.b16 %v596
          %v749 = vunpack.c.l.b16 %v597
          %v750 = vunpack.c.h.b16 %v597
          %v751 = vunpack.c.l.b16 %v598
          %v752 = vunpack.c.h.b16 %v598
          %v753 = vunpack.c.l.b16 %v599
          %v754 = vunpack.c.l.b16 %v600
          %v755 = vunpack.c.h.b16 %v600
          %v756 = vunpack.c.l.b16 %v601
          %v757 = vunpack.c.h.b16 %v601
          %v758 = vunpack.c.l.b16 %v602
          %v759 = vunpack.c.l.b16 %v603
          %v760 = vunpack.c.h.b16 %v603
          %v761 = vunpack.c.l.b16 %v604
          %v762 = vunpack.c.h.b16 %v604
          %v763 = vunpack.c.l.b16 %v605
          %v764 = vunpack.c.l.b16 %v606
          %v765 = vunpack.c.h.b16 %v606
          %v766 = vunpack.c.l.b16 %v607
          %v767 = vunpack.c.h.b16 %v607
          %v768 = vunpack.c.l.b16 %v608
          %v769 = vunpack.c.l.b16 %v609
          %v770 = vunpack.c.h.b16 %v609
          %v771 = vunpack.c.l.b16 %v610
          %v772 = vunpack.c.h.b16 %v610
          %v773 = vunpack.c.l.b16 %v611
          %v774 = vunpack.c.l.b16 %v612
          %v775 = vunpack.c.h.b16 %v612
          %v776 = vunpack.c.l.b16 %v613
          %v777 = vunpack.c.h.b16 %v613
          %v778 = vunpack.c.l.b16 %v614
          %v779 = vunpack.c.l.b16 %v615
          %v780 = vunpack.c.h.b16 %v615
          %v781 = vunpack.c.l.b16 %v616
          %v782 = vunpack.c.h.b16 %v616
          %v783 = vunpack.c.l.b16 %v617
          %v784 = vunpack.c.l.b16 %v618
          %v785 = vunpack.c.h.b16 %v618
          %v786 = vunpack.c.l.b16 %v619
          %v787 = vunpack.c.h.b16 %v619
          %v788 = vunpack.c.l.b16 %v620
          %v789 = vunpack.c.l.b16 %v621
          %v790 = vunpack.c.h.b16 %v621
          %v791 = vunpack.c.l.b16 %v622
          %v792 = vunpack.c.h.b16 %v622
          %v793 = vunpack.c.l.b16 %v623
          %v794 = vunpack.c.l.b16 %v624
          %v795 = vunpack.c.h.b16 %v624
          %v796 = vunpack.c.l.b16 %v625
          %v797 = vunpack.c.h.b16 %v625
          %v798 = vunpack.c.l.b16 %v626
          %v799 = vunpack.c.l.b16 %v627
          %v800 = vunpack.c.h.b16 %v627
          %v801 = vunpack.c.l.b16 %v628
          %v802 = vunpack.c.h.b16 %v628
          %v803 = vunpack.c.l.b16 %v629
          %v804 = vunpack.c.l.b16 %v630
          %v805 = vunpack.c.h.b16 %v630
          %v806 = vunpack.c.l.b16 %v631
          %v807 = vunpack.c.h.b16 %v631
          %v808 = vunpack.c.l.b16 %v632
          %v809 = vunpack.c.l.b16 %v633
          %v810 = vunpack.c.h.b16 %v633
          %v811 = vunpack.c.l.b16 %v634
          %v812 = vunpack.c.h.b16 %v634
          %v813 = vunpack.c.l.b16 %v635
          %v814 = vunpack.c.l.b16 %v636
          %v815 = vunpack.c.h.b16 %v636
          %v816 = vunpack.c.l.b16 %v637
          %v817 = vunpack.c.h.b16 %v637
          %v818 = vunpack.c.l.b16 %v638
          %v819 = vpack.c.b16 %v719, %v714
          %v820 = vpack.c.b16 %v720, %v715
          %v821 = vpack.c.b16 %v721, %v716
          %v822 = vpack.c.b16 %v722, %v717
          %v823 = vpack.c.b16 %v723, %v718
          %v824 = vpack.c.b16 %v729, %v724
          %v825 = vpack.c.b16 %v730, %v725
          %v826 = vpack.c.b16 %v731, %v726
          %v827 = vpack.c.b16 %v732, %v727
          %v828 = vpack.c.b16 %v733, %v728
          %v829 = vpack.c.b16 %v739, %v734
          %v830 = vpack.c.b16 %v740, %v735
          %v831 = vpack.c.b16 %v741, %v736
          %v832 = vpack.c.b16 %v742, %v737
          %v833 = vpack.c.b16 %v743, %v738
          %v834 = vpack.c.b16 %v749, %v744
          %v835 = vpack.c.b16 %v750, %v745
          %v836 = vpack.c.b16 %v751, %v746
          %v837 = vpack.c.b16 %v752, %v747
          %v838 = vpack.c.b16 %v753, %v748
          %v839 = vpack.c.b16 %v759, %v754
          %v840 = vpack.c.b16 %v760, %v755
          %v841 = vpack.c.b16 %v761, %v756
          %v842 = vpack.c.b16 %v762, %v757
          %v843 = vpack.c.b16 %v763, %v758
          %v844 = vpack.c.b16 %v769, %v764
          %v845 = vpack.c.b16 %v770, %v765
          %v846 = vpack.c.b16 %v771, %v766
          %v847 = vpack.c.b16 %v772, %v767
          %v848 = vpack.c.b16 %v773, %v768
          %v849 = vpack.c.b16 %v779, %v774
          %v850 = vpack.c.b16 %v780, %v775
          %v851 = vpack.c.b16 %v781, %v776
          %v852 = vpack.c.b16 %v782, %v777
          %v853 = vpack.c.b16 %v783, %v778
          %v854 = vpack.c.b16 %v789, %v784
          %v855 = vpack.c.b16 %v790, %v785
          %v856 = vpack.c.b16 %v791, %v786
          %v857 = vpack.c.b16 %v792, %v787
          %v858 = vpack.c.b16 %v793, %v788
          %v859 = vpack.c.b16 %v799, %v794
          %v860 = vpack.c.b16 %v800, %v795
          %v861 = vpack.c.b16 %v801, %v796
          %v862 = vpack.c.b16 %v802, %v797
          %v863 = vpack.c.b16 %v803, %v798
          %v864 = vpack.c.b16 %v809, %v804
          %v865 = vpack.c.b16 %v810, %v805
          %v866 = vpack.c.b16 %v811, %v806
          %v867 = vpack.c.b16 %v812, %v807
          %v868 = vpack.c.b16 %v813, %v808
          %v869 = vpack.c.b16 %v814, %v814
          %v870 = vpack.c.b16 %v815, %v815
          %v871 = vpack.c.b16 %v816, %v816
          %v872 = vpack.c.b16 %v817, %v817
          %v873 = vpack.c.b16 %v818, %v818
          %vm924 = vcmask 269312
          %v926 = vsel %vm924, %v575, 0
          %vm928 = vcmask 1040384
          %v929 = vsel 0, 4294967295, 65535
          %v930 = vsel %vm928, %v929, 0
          %v932 = vand.u32 %v869, %v930
          %v935 = vand.u32 %v870, %v930
          %v938 = vand.u32 %v871, %v930
          %v941 = vand.u32 %v872, %v930
          %v944 = vand.u32 %v873, %v930
          %946 = vmatpush.bf16.msra.mxu0 %v854
          %947 = vmatpush.bf16.msra.mxu0 %v849
          %948 = vmatpush.bf16.msra.mxu0 %v844
          %949 = vmatpush.bf16.msra.mxu0 %v839
          %950 = vmatpush.bf16.msra.mxu0 %v834
          %951 = vmatpush.bf16.msra.mxu0 %v829
          %952 = vmatpush.bf16.msra.mxu0 %v824
          %953 = vmatpush.bf16.msra.mxu0 %v819
          %954 = vmatmul.bf16.gmra.mxu0 %v574
          %v955 = vpop.f32.mrf.mxu0
          %v956 = vadd.f32 %v641, %v955
          %v957 = vpop.f32.mrf.mxu0
          %958 = vdwg.mxu0
          %959 = vmatpush.bf16.msra.mxu0 0
          %960 = vmatpush.bf16.msra.mxu0 0
          %961 = vmatpush.bf16.msra.mxu0 0
          %962 = vmatpush.bf16.msra.mxu0 0
          %963 = vmatpush.bf16.msra.mxu0 0
          %964 = vmatpush.bf16.msra.mxu0 %v932
          %965 = vmatpush.bf16.msra.mxu0 %v864
          %966 = vmatpush.bf16.msra.mxu0 %v859
          %967 = vmatmul.bf16.gmra.mxu0 %v926
          %v968 = vpop.f32.mrf.mxu0
          %v969 = vadd.f32 %v956, %v968
          %v970 = vpop.f32.mrf.mxu0
          %971 = vdwg.mxu0
          %972 = vmatpush.bf16.msra.mxu0 %v855
          %973 = vmatpush.bf16.msra.mxu0 %v850
          %974 = vmatpush.bf16.msra.mxu0 %v845
          %975 = vmatpush.bf16.msra.mxu0 %v840
          %976 = vmatpush.bf16.msra.mxu0 %v835
          %977 = vmatpush.bf16.msra.mxu0 %v830
          %978 = vmatpush.bf16.msra.mxu0 %v825
          %979 = vmatpush.bf16.msra.mxu0 %v820
          %980 = vmatmul.bf16.gmra.mxu0 %v574
          %v981 = vpop.f32.mrf.mxu0
          %v982 = vadd.f32 %v642, %v981
          %v983 = vpop.f32.mrf.mxu0
          %984 = vdwg.mxu0
          %985 = vmatpush.bf16.msra.mxu0 0
          %986 = vmatpush.bf16.msra.mxu0 0
          %987 = vmatpush.bf16.msra.mxu0 0
          %988 = vmatpush.bf16.msra.mxu0 0
          %989 = vmatpush.bf16.msra.mxu0 0
          %990 = vmatpush.bf16.msra.mxu0 %v935
          %991 = vmatpush.bf16.msra.mxu0 %v865
          %992 = vmatpush.bf16.msra.mxu0 %v860
          %993 = vmatmul.bf16.gmra.mxu0 %v926
          %v994 = vpop.f32.mrf.mxu0
          %v995 = vadd.f32 %v982, %v994
          %v996 = vpop.f32.mrf.mxu0
          %997 = vdwg.mxu0
          %998 = vmatpush.bf16.msra.mxu0 %v856
          %999 = vmatpush.bf16.msra.mxu0 %v851
          %1000 = vmatpush.bf16.msra.mxu0 %v846
          %1001 = vmatpush.bf16.msra.mxu0 %v841
          %1002 = vmatpush.bf16.msra.mxu0 %v836
          %1003 = vmatpush.bf16.msra.mxu0 %v831
          %1004 = vmatpush.bf16.msra.mxu0 %v826
          %1005 = vmatpush.bf16.msra.mxu0 %v821
          %1006 = vmatmul.bf16.gmra.mxu0 %v574
          %v1007 = vpop.f32.mrf.mxu0
          %v1008 = vadd.f32 %v643, %v1007
          %v1009 = vpop.f32.mrf.mxu0
          %1010 = vdwg.mxu0
          %1011 = vmatpush.bf16.msra.mxu0 0
          %1012 = vmatpush.bf16.msra.mxu0 0
          %1013 = vmatpush.bf16.msra.mxu0 0
          %1014 = vmatpush.bf16.msra.mxu0 0
          %1015 = vmatpush.bf16.msra.mxu0 0
          %1016 = vmatpush.bf16.msra.mxu0 %v938
          %1017 = vmatpush.bf16.msra.mxu0 %v866
          %1018 = vmatpush.bf16.msra.mxu0 %v861
          %1019 = vmatmul.bf16.gmra.mxu0 %v926
          %v1020 = vpop.f32.mrf.mxu0
          %v1021 = vadd.f32 %v1008, %v1020
          %v1022 = vpop.f32.mrf.mxu0
          %1023 = vdwg.mxu0
          %1024 = vmatpush.bf16.msra.mxu0 %v857
          %1025 = vmatpush.bf16.msra.mxu0 %v852
          %1026 = vmatpush.bf16.msra.mxu0 %v847
          %1027 = vmatpush.bf16.msra.mxu0 %v842
          %1028 = vmatpush.bf16.msra.mxu0 %v837
          %1029 = vmatpush.bf16.msra.mxu0 %v832
          %1030 = vmatpush.bf16.msra.mxu0 %v827
          %1031 = vmatpush.bf16.msra.mxu0 %v822
          %1032 = vmatmul.bf16.gmra.mxu0 %v574
          %v1033 = vpop.f32.mrf.mxu0
          %v1034 = vadd.f32 %v644, %v1033
          %v1035 = vpop.f32.mrf.mxu0
          %1036 = vdwg.mxu0
          %1037 = vmatpush.bf16.msra.mxu0 0
          %1038 = vmatpush.bf16.msra.mxu0 0
          %1039 = vmatpush.bf16.msra.mxu0 0
          %1040 = vmatpush.bf16.msra.mxu0 0
          %1041 = vmatpush.bf16.msra.mxu0 0
          %1042 = vmatpush.bf16.msra.mxu0 %v941
          %1043 = vmatpush.bf16.msra.mxu0 %v867
          %1044 = vmatpush.bf16.msra.mxu0 %v862
          %1045 = vmatmul.bf16.gmra.mxu0 %v926
          %v1046 = vpop.f32.mrf.mxu0
          %v1047 = vadd.f32 %v1034, %v1046
          %v1048 = vpop.f32.mrf.mxu0
          %1049 = vdwg.mxu0
          %1050 = vmatpush.bf16.msra.mxu0 %v858
          %1051 = vmatpush.bf16.msra.mxu0 %v853
          %1052 = vmatpush.bf16.msra.mxu0 %v848
          %1053 = vmatpush.bf16.msra.mxu0 %v843
          %1054 = vmatpush.bf16.msra.mxu0 %v838
          %1055 = vmatpush.bf16.msra.mxu0 %v833
          %1056 = vmatpush.bf16.msra.mxu0 %v828
          %1057 = vmatpush.bf16.msra.mxu0 %v823
          %1058 = vmatmul.bf16.gmra.mxu0 %v574
          %v1059 = vpop.f32.mrf.mxu0
          %v1060 = vadd.f32 %v645, %v1059
          %v1061 = vpop.f32.mrf.mxu0
          %1062 = vdwg.mxu0
          %1063 = vmatpush.bf16.msra.mxu0 0
          %1064 = vmatpush.bf16.msra.mxu0 0
          %1065 = vmatpush.bf16.msra.mxu0 0
          %1066 = vmatpush.bf16.msra.mxu0 0
          %1067 = vmatpush.bf16.msra.mxu0 0
          %1068 = vmatpush.bf16.msra.mxu0 %v944
          %1069 = vmatpush.bf16.msra.mxu0 %v868
          %1070 = vmatpush.bf16.msra.mxu0 %v863
          %1071 = vmatmul.bf16.gmra.mxu0 %v926
          %v1072 = vpop.f32.mrf.mxu0
          %v1073 = vadd.f32 %v1060, %v1072
          %v1074 = vpop.f32.mrf.mxu0
          %1075 = vdwg.mxu0
          %v1076 = vmax.f32 %v969, 0.0
          %v1077 = vmax.f32 %v995, 0.0
          %v1078 = vmax.f32 %v1021, 0.0
          %v1079 = vmax.f32 %v1047, 0.0
          %v1080 = vmax.f32 %v1073, 0.0
          %v1081 = vpack.c.bf16 %v1077, %v1076
          %v1082 = vpack.c.bf16 %v1079, %v1078
          %v1083 = vpack.c.bf16 %v1080, %v1080
          %v1084 = vld [vmem:[#allocation9] sm:$0xff]
          %v1085 = vld [vmem:[#allocation9 + $0x8] sm:$0xf]
          %v1086 = vld [vmem:[#allocation9 + $0xc] sm:$0xff]
          %v1087 = vld [vmem:[#allocation9 + $0x14] sm:$0xf]
          %v1088 = vld [vmem:[#allocation9 + $0x18] sm:$0xff]
          %v1089 = vld [vmem:[#allocation9 + $0x20] sm:$0xf]
          %v1090 = vld [vmem:[#allocation9 + $0x24] sm:$0xff]
          %v1091 = vld [vmem:[#allocation9 + $0x2c] sm:$0xf]
          %v1092 = vld [vmem:[#allocation9 + $0x30] sm:$0xff]
          %v1093 = vld [vmem:[#allocation9 + $0x38] sm:$0xf]
          %v1094 = vld [vmem:[#allocation9 + $0x3c] sm:$0xff]
          %v1095 = vld [vmem:[#allocation9 + $0x44] sm:$0xf]
          %v1096 = vld [vmem:[#allocation9 + $0x48] sm:$0xff]
          %v1097 = vld [vmem:[#allocation9 + $0x50] sm:$0xf]
          %v1098 = vld [vmem:[#allocation9 + $0x54] sm:$0xff]
          %v1099 = vld [vmem:[#allocation9 + $0x5c] sm:$0xf]
          %v1100 = vld [vmem:[#allocation10] sm:$0x1]
          %v1101 = vld [vmem:[#allocation12] sm:$0xf]
          %v1102 = vld [vmem:[#allocation12 + $0x4] sm:$0xf]
          %v1103 = vld [vmem:[#allocation12 + $0x8] sm:$0xf]
          %v1104 = vld [vmem:[#allocation12 + $0xc] sm:$0xf]
          %v1105 = vld [vmem:[#allocation13] sm:$0x1]
          %v1122 = vunpack.c.l.b16 %v1084
          %v1123 = vunpack.c.h.b16 %v1084
          %v1124 = vunpack.c.l.b16 %v1085
          %v1125 = vunpack.c.l.b16 %v1086
          %v1126 = vunpack.c.h.b16 %v1086
          %v1127 = vunpack.c.l.b16 %v1087
          %v1128 = vunpack.c.l.b16 %v1088
          %v1129 = vunpack.c.h.b16 %v1088
          %v1130 = vunpack.c.l.b16 %v1089
          %v1131 = vunpack.c.l.b16 %v1090
          %v1132 = vunpack.c.h.b16 %v1090
          %v1133 = vunpack.c.l.b16 %v1091
          %v1134 = vunpack.c.l.b16 %v1092
          %v1135 = vunpack.c.h.b16 %v1092
          %v1136 = vunpack.c.l.b16 %v1093
          %v1137 = vunpack.c.l.b16 %v1094
          %v1138 = vunpack.c.h.b16 %v1094
          %v1139 = vunpack.c.l.b16 %v1095
          %v1140 = vunpack.c.l.b16 %v1096
          %v1141 = vunpack.c.h.b16 %v1096
          %v1142 = vunpack.c.l.b16 %v1097
          %v1143 = vunpack.c.l.b16 %v1098
          %v1144 = vunpack.c.h.b16 %v1098
          %v1145 = vunpack.c.l.b16 %v1099
          %v1146 = vpack.c.b16 %v1125, %v1122
          %v1147 = vpack.c.b16 %v1126, %v1123
          %v1148 = vpack.c.b16 %v1127, %v1124
          %v1149 = vpack.c.b16 %v1131, %v1128
          %v1150 = vpack.c.b16 %v1132, %v1129
          %v1151 = vpack.c.b16 %v1133, %v1130
          %v1152 = vpack.c.b16 %v1137, %v1134
          %v1153 = vpack.c.b16 %v1138, %v1135
          %v1154 = vpack.c.b16 %v1139, %v1136
          %v1155 = vpack.c.b16 %v1143, %v1140
          %v1156 = vpack.c.b16 %v1144, %v1141
          %v1157 = vpack.c.b16 %v1145, %v1142
          %vm1170 = vcmask 523264
          %v1172 = vsel %vm1170, %v1081, 0
          %1174 = vmatpush.bf16.msra.mxu0 0
          %1175 = vmatpush.bf16.msra.mxu0 0
          %1176 = vmatpush.bf16.msra.mxu0 0
          %1177 = vmatpush.bf16.msra.mxu0 0
          %1178 = vmatpush.bf16.msra.mxu0 %v1155
          %1179 = vmatpush.bf16.msra.mxu0 %v1152
          %1180 = vmatpush.bf16.msra.mxu0 %v1149
          %1181 = vmatpush.bf16.msra.mxu0 %v1146
          %1182 = vmatmul.bf16.gmra.mxu0 %v1172
          %v1183 = vpop.f32.mrf.mxu0
          %v1184 = vadd.f32 0.0, %v1183
          %v1185 = vpop.f32.mrf.mxu0
          %1186 = vdwg.mxu0
          %1187 = vmatpush.bf16.msra.mxu0 0
          %1188 = vmatpush.bf16.msra.mxu0 0
          %1189 = vmatpush.bf16.msra.mxu0 0
          %1190 = vmatpush.bf16.msra.mxu0 0
          %1191 = vmatpush.bf16.msra.mxu0 %v1156
          %1192 = vmatpush.bf16.msra.mxu0 %v1153
          %1193 = vmatpush.bf16.msra.mxu0 %v1150
          %1194 = vmatpush.bf16.msra.mxu0 %v1147
          %1195 = vmatmul.bf16.gmra.mxu0 %v1172
          %v1196 = vpop.f32.mrf.mxu0
          %v1197 = vadd.f32 0.0, %v1196
          %v1198 = vpop.f32.mrf.mxu0
          %1199 = vdwg.mxu0
          %1200 = vmatpush.bf16.msra.mxu0 0
          %1201 = vmatpush.bf16.msra.mxu0 0
          %1202 = vmatpush.bf16.msra.mxu0 0
          %1203 = vmatpush.bf16.msra.mxu0 0
          %1204 = vmatpush.bf16.msra.mxu0 %v1157
          %1205 = vmatpush.bf16.msra.mxu0 %v1154
          %1206 = vmatpush.bf16.msra.mxu0 %v1151
          %1207 = vmatpush.bf16.msra.mxu0 %v1148
          %1208 = vmatmul.bf16.gmra.mxu0 %v1172
          %v1209 = vpop.f32.mrf.mxu0
          %v1210 = vadd.f32 0.0, %v1209
          %v1211 = vpop.f32.mrf.mxu0
          %1212 = vdwg.mxu0
          %v1214 = vunpack.c.l.b16 %v1081
          %v1215 = vpack.c.b16 %v1214, %v1214
          %1216 = vrot.lane.b32.xlu0 %v1215, 64
          %v1217 = vpop.permute.xlu0 %1216
          %v1219 = vsel %vm1170, %v1217, 0
          %1221 = vmatpush.bf16.msra.mxu0 0
          %1222 = vmatpush.bf16.msra.mxu0 0
          %1223 = vmatpush.bf16.msra.mxu0 0
          %1224 = vmatpush.bf16.msra.mxu0 0
          %1225 = vmatpush.bf16.msra.mxu0 %v1155
          %1226 = vmatpush.bf16.msra.mxu0 %v1152
          %1227 = vmatpush.bf16.msra.mxu0 %v1149
          %1228 = vmatpush.bf16.msra.mxu0 %v1146
          %1229 = vmatmul.bf16.gmra.mxu0 %v1219
          %v1230 = vpop.f32.mrf.mxu0
          %v1231 = vadd.f32 0.0, %v1230
          %v1232 = vpop.f32.mrf.mxu0
          %1233 = vdwg.mxu0
          %1234 = vmatpush.bf16.msra.mxu0 0
          %1235 = vmatpush.bf16.msra.mxu0 0
          %1236 = vmatpush.bf16.msra.mxu0 0
          %1237 = vmatpush.bf16.msra.mxu0 0
          %1238 = vmatpush.bf16.msra.mxu0 %v1156
          %1239 = vmatpush.bf16.msra.mxu0 %v1153
          %1240 = vmatpush.bf16.msra.mxu0 %v1150
          %1241 = vmatpush.bf16.msra.mxu0 %v1147
          %1242 = vmatmul.bf16.gmra.mxu0 %v1219
          %v1243 = vpop.f32.mrf.mxu0
          %v1244 = vadd.f32 0.0, %v1243
          %v1245 = vpop.f32.mrf.mxu0
          %1246 = vdwg.mxu0
          %1247 = vmatpush.bf16.msra.mxu0 0
          %1248 = vmatpush.bf16.msra.mxu0 0
          %1249 = vmatpush.bf16.msra.mxu0 0
          %1250 = vmatpush.bf16.msra.mxu0 0
          %1251 = vmatpush.bf16.msra.mxu0 %v1157
          %1252 = vmatpush.bf16.msra.mxu0 %v1154
          %1253 = vmatpush.bf16.msra.mxu0 %v1151
          %1254 = vmatpush.bf16.msra.mxu0 %v1148
          %1255 = vmatmul.bf16.gmra.mxu0 %v1219
          %v1256 = vpop.f32.mrf.mxu0
          %v1257 = vadd.f32 0.0, %v1256
          %v1258 = vpop.f32.mrf.mxu0
          %1259 = vdwg.mxu0
          %v1260 = vunpack.c.h.b16 %v1081
          %v1261 = vpack.c.b16 %v1260, %v1260
          %v1263 = vsel %vm1170, %v1261, 0
          %1265 = vmatpush.bf16.msra.mxu0 0
          %1266 = vmatpush.bf16.msra.mxu0 0
          %1267 = vmatpush.bf16.msra.mxu0 0
          %1268 = vmatpush.bf16.msra.mxu0 0
          %1269 = vmatpush.bf16.msra.mxu0 %v1155
          %1270 = vmatpush.bf16.msra.mxu0 %v1152
          %1271 = vmatpush.bf16.msra.mxu0 %v1149
          %1272 = vmatpush.bf16.msra.mxu0 %v1146
          %1273 = vmatmul.bf16.gmra.mxu0 %v1263
          %v1274 = vpop.f32.mrf.mxu0
          %v1275 = vadd.f32 0.0, %v1274
          %v1276 = vpop.f32.mrf.mxu0
          %1277 = vdwg.mxu0
          %1278 = vmatpush.bf16.msra.mxu0 0
          %1279 = vmatpush.bf16.msra.mxu0 0
          %1280 = vmatpush.bf16.msra.mxu0 0
          %1281 = vmatpush.bf16.msra.mxu0 0
          %1282 = vmatpush.bf16.msra.mxu0 %v1156
          %1283 = vmatpush.bf16.msra.mxu0 %v1153
          %1284 = vmatpush.bf16.msra.mxu0 %v1150
          %1285 = vmatpush.bf16.msra.mxu0 %v1147
          %1286 = vmatmul.bf16.gmra.mxu0 %v1263
          %v1287 = vpop.f32.mrf.mxu0
          %v1288 = vadd.f32 0.0, %v1287
          %v1289 = vpop.f32.mrf.mxu0
          %1290 = vdwg.mxu0
          %1291 = vmatpush.bf16.msra.mxu0 0
          %1292 = vmatpush.bf16.msra.mxu0 0
          %1293 = vmatpush.bf16.msra.mxu0 0
          %1294 = vmatpush.bf16.msra.mxu0 0
          %1295 = vmatpush.bf16.msra.mxu0 %v1157
          %1296 = vmatpush.bf16.msra.mxu0 %v1154
          %1297 = vmatpush.bf16.msra.mxu0 %v1151
          %1298 = vmatpush.bf16.msra.mxu0 %v1148
          %1299 = vmatmul.bf16.gmra.mxu0 %v1263
          %v1300 = vpop.f32.mrf.mxu0
          %v1301 = vadd.f32 0.0, %v1300
          %v1302 = vpop.f32.mrf.mxu0
          %1303 = vdwg.mxu0
          %1304 = vrot.lane.b32.xlu0 %v1261, 64
          %v1305 = vpop.permute.xlu0 %1304
          %v1307 = vsel %vm1170, %v1305, 0
          %1309 = vmatpush.bf16.msra.mxu0 0
          %1310 = vmatpush.bf16.msra.mxu0 0
          %1311 = vmatpush.bf16.msra.mxu0 0
          %1312 = vmatpush.bf16.msra.mxu0 0
          %1313 = vmatpush.bf16.msra.mxu0 %v1155
          %1314 = vmatpush.bf16.msra.mxu0 %v1152
          %1315 = vmatpush.bf16.msra.mxu0 %v1149
          %1316 = vmatpush.bf16.msra.mxu0 %v1146
          %1317 = vmatmul.bf16.gmra.mxu0 %v1307
          %v1318 = vpop.f32.mrf.mxu0
          %v1319 = vadd.f32 0.0, %v1318
          %v1320 = vpop.f32.mrf.mxu0
          %1321 = vdwg.mxu0
          %1322 = vmatpush.bf16.msra.mxu0 0
          %1323 = vmatpush.bf16.msra.mxu0 0
          %1324 = vmatpush.bf16.msra.mxu0 0
          %1325 = vmatpush.bf16.msra.mxu0 0
          %1326 = vmatpush.bf16.msra.mxu0 %v1156
          %1327 = vmatpush.bf16.msra.mxu0 %v1153
          %1328 = vmatpush.bf16.msra.mxu0 %v1150
          %1329 = vmatpush.bf16.msra.mxu0 %v1147
          %1330 = vmatmul.bf16.gmra.mxu0 %v1307
          %v1331 = vpop.f32.mrf.mxu0
          %v1332 = vadd.f32 0.0, %v1331
          %v1333 = vpop.f32.mrf.mxu0
          %1334 = vdwg.mxu0
          %1335 = vmatpush.bf16.msra.mxu0 0
          %1336 = vmatpush.bf16.msra.mxu0 0
          %1337 = vmatpush.bf16.msra.mxu0 0
          %1338 = vmatpush.bf16.msra.mxu0 0
          %1339 = vmatpush.bf16.msra.mxu0 %v1157
          %1340 = vmatpush.bf16.msra.mxu0 %v1154
          %1341 = vmatpush.bf16.msra.mxu0 %v1151
          %1342 = vmatpush.bf16.msra.mxu0 %v1148
          %1343 = vmatmul.bf16.gmra.mxu0 %v1307
          %v1344 = vpop.f32.mrf.mxu0
          %v1345 = vadd.f32 0.0, %v1344
          %v1346 = vpop.f32.mrf.mxu0
          %1347 = vdwg.mxu0
          %v1349 = vsel %vm1170, %v1082, 0
          %1351 = vmatpush.bf16.msra.mxu0 0
          %1352 = vmatpush.bf16.msra.mxu0 0
          %1353 = vmatpush.bf16.msra.mxu0 0
          %1354 = vmatpush.bf16.msra.mxu0 0
          %1355 = vmatpush.bf16.msra.mxu0 %v1155
          %1356 = vmatpush.bf16.msra.mxu0 %v1152
          %1357 = vmatpush.bf16.msra.mxu0 %v1149
          %1358 = vmatpush.bf16.msra.mxu0 %v1146
          %1359 = vmatmul.bf16.gmra.mxu0 %v1349
          %v1360 = vpop.f32.mrf.mxu0
          %v1361 = vadd.f32 0.0, %v1360
          %v1362 = vpop.f32.mrf.mxu0
          %1363 = vdwg.mxu0
          %1364 = vmatpush.bf16.msra.mxu0 0
          %1365 = vmatpush.bf16.msra.mxu0 0
          %1366 = vmatpush.bf16.msra.mxu0 0
          %1367 = vmatpush.bf16.msra.mxu0 0
          %1368 = vmatpush.bf16.msra.mxu0 %v1156
          %1369 = vmatpush.bf16.msra.mxu0 %v1153
          %1370 = vmatpush.bf16.msra.mxu0 %v1150
          %1371 = vmatpush.bf16.msra.mxu0 %v1147
          %1372 = vmatmul.bf16.gmra.mxu0 %v1349
          %v1373 = vpop.f32.mrf.mxu0
          %v1374 = vadd.f32 0.0, %v1373
          %v1375 = vpop.f32.mrf.mxu0
          %1376 = vdwg.mxu0
          %1377 = vmatpush.bf16.msra.mxu0 0
          %1378 = vmatpush.bf16.msra.mxu0 0
          %1379 = vmatpush.bf16.msra.mxu0 0
          %1380 = vmatpush.bf16.msra.mxu0 0
          %1381 = vmatpush.bf16.msra.mxu0 %v1157
          %1382 = vmatpush.bf16.msra.mxu0 %v1154
          %1383 = vmatpush.bf16.msra.mxu0 %v1151
          %1384 = vmatpush.bf16.msra.mxu0 %v1148
          %1385 = vmatmul.bf16.gmra.mxu0 %v1349
          %v1386 = vpop.f32.mrf.mxu0
          %v1387 = vadd.f32 0.0, %v1386
          %v1388 = vpop.f32.mrf.mxu0
          %1389 = vdwg.mxu0
          %v1391 = vunpack.c.l.b16 %v1082
          %v1392 = vpack.c.b16 %v1391, %v1391
          %1393 = vrot.lane.b32.xlu0 %v1392, 64
          %v1394 = vpop.permute.xlu0 %1393
          %v1396 = vsel %vm1170, %v1394, 0
          %1398 = vmatpush.bf16.msra.mxu0 0
          %1399 = vmatpush.bf16.msra.mxu0 0
          %1400 = vmatpush.bf16.msra.mxu0 0
          %1401 = vmatpush.bf16.msra.mxu0 0
          %1402 = vmatpush.bf16.msra.mxu0 %v1155
          %1403 = vmatpush.bf16.msra.mxu0 %v1152
          %1404 = vmatpush.bf16.msra.mxu0 %v1149
          %1405 = vmatpush.bf16.msra.mxu0 %v1146
          %1406 = vmatmul.bf16.gmra.mxu0 %v1396
          %v1407 = vpop.f32.mrf.mxu0
          %v1408 = vadd.f32 0.0, %v1407
          %v1409 = vpop.f32.mrf.mxu0
          %1410 = vdwg.mxu0
          %1411 = vmatpush.bf16.msra.mxu0 0
          %1412 = vmatpush.bf16.msra.mxu0 0
          %1413 = vmatpush.bf16.msra.mxu0 0
          %1414 = vmatpush.bf16.msra.mxu0 0
          %1415 = vmatpush.bf16.msra.mxu0 %v1156
          %1416 = vmatpush.bf16.msra.mxu0 %v1153
          %1417 = vmatpush.bf16.msra.mxu0 %v1150
          %1418 = vmatpush.bf16.msra.mxu0 %v1147
          %1419 = vmatmul.bf16.gmra.mxu0 %v1396
          %v1420 = vpop.f32.mrf.mxu0
          %v1421 = vadd.f32 0.0, %v1420
          %v1422 = vpop.f32.mrf.mxu0
          %1423 = vdwg.mxu0
          %1424 = vmatpush.bf16.msra.mxu0 0
          %1425 = vmatpush.bf16.msra.mxu0 0
          %1426 = vmatpush.bf16.msra.mxu0 0
          %1427 = vmatpush.bf16.msra.mxu0 0
          %1428 = vmatpush.bf16.msra.mxu0 %v1157
          %1429 = vmatpush.bf16.msra.mxu0 %v1154
          %1430 = vmatpush.bf16.msra.mxu0 %v1151
          %1431 = vmatpush.bf16.msra.mxu0 %v1148
          %1432 = vmatmul.bf16.gmra.mxu0 %v1396
          %v1433 = vpop.f32.mrf.mxu0
          %v1434 = vadd.f32 0.0, %v1433
          %v1435 = vpop.f32.mrf.mxu0
          %1436 = vdwg.mxu0
          %v1437 = vunpack.c.h.b16 %v1082
          %v1438 = vpack.c.b16 %v1437, %v1437
          %v1440 = vsel %vm1170, %v1438, 0
          %1442 = vmatpush.bf16.msra.mxu0 0
          %1443 = vmatpush.bf16.msra.mxu0 0
          %1444 = vmatpush.bf16.msra.mxu0 0
          %1445 = vmatpush.bf16.msra.mxu0 0
          %1446 = vmatpush.bf16.msra.mxu0 %v1155
          %1447 = vmatpush.bf16.msra.mxu0 %v1152
          %1448 = vmatpush.bf16.msra.mxu0 %v1149
          %1449 = vmatpush.bf16.msra.mxu0 %v1146
          %1450 = vmatmul.bf16.gmra.mxu0 %v1440
          %v1451 = vpop.f32.mrf.mxu0
          %v1452 = vadd.f32 0.0, %v1451
          %v1453 = vpop.f32.mrf.mxu0
          %1454 = vdwg.mxu0
          %1455 = vmatpush.bf16.msra.mxu0 0
          %1456 = vmatpush.bf16.msra.mxu0 0
          %1457 = vmatpush.bf16.msra.mxu0 0
          %1458 = vmatpush.bf16.msra.mxu0 0
          %1459 = vmatpush.bf16.msra.mxu0 %v1156
          %1460 = vmatpush.bf16.msra.mxu0 %v1153
          %1461 = vmatpush.bf16.msra.mxu0 %v1150
          %1462 = vmatpush.bf16.msra.mxu0 %v1147
          %1463 = vmatmul.bf16.gmra.mxu0 %v1440
          %v1464 = vpop.f32.mrf.mxu0
          %v1465 = vadd.f32 0.0, %v1464
          %v1466 = vpop.f32.mrf.mxu0
          %1467 = vdwg.mxu0
          %1468 = vmatpush.bf16.msra.mxu0 0
          %1469 = vmatpush.bf16.msra.mxu0 0
          %1470 = vmatpush.bf16.msra.mxu0 0
          %1471 = vmatpush.bf16.msra.mxu0 0
          %1472 = vmatpush.bf16.msra.mxu0 %v1157
          %1473 = vmatpush.bf16.msra.mxu0 %v1154
          %1474 = vmatpush.bf16.msra.mxu0 %v1151
          %1475 = vmatpush.bf16.msra.mxu0 %v1148
          %1476 = vmatmul.bf16.gmra.mxu0 %v1440
          %v1477 = vpop.f32.mrf.mxu0
          %v1478 = vadd.f32 0.0, %v1477
          %v1479 = vpop.f32.mrf.mxu0
          %1480 = vdwg.mxu0
          %1481 = vrot.lane.b32.xlu0 %v1438, 64
          %v1482 = vpop.permute.xlu0 %1481
          %v1484 = vsel %vm1170, %v1482, 0
          %1486 = vmatpush.bf16.msra.mxu0 0
          %1487 = vmatpush.bf16.msra.mxu0 0
          %1488 = vmatpush.bf16.msra.mxu0 0
          %1489 = vmatpush.bf16.msra.mxu0 0
          %1490 = vmatpush.bf16.msra.mxu0 %v1155
          %1491 = vmatpush.bf16.msra.mxu0 %v1152
          %1492 = vmatpush.bf16.msra.mxu0 %v1149
          %1493 = vmatpush.bf16.msra.mxu0 %v1146
          %1494 = vmatmul.bf16.gmra.mxu0 %v1484
          %v1495 = vpop.f32.mrf.mxu0
          %v1496 = vadd.f32 0.0, %v1495
          %v1497 = vpop.f32.mrf.mxu0
          %1498 = vdwg.mxu0
          %1499 = vmatpush.bf16.msra.mxu0 0
          %1500 = vmatpush.bf16.msra.mxu0 0
          %1501 = vmatpush.bf16.msra.mxu0 0
          %1502 = vmatpush.bf16.msra.mxu0 0
          %1503 = vmatpush.bf16.msra.mxu0 %v1156
          %1504 = vmatpush.bf16.msra.mxu0 %v1153
          %1505 = vmatpush.bf16.msra.mxu0 %v1150
          %1506 = vmatpush.bf16.msra.mxu0 %v1147
          %1507 = vmatmul.bf16.gmra.mxu0 %v1484
          %v1508 = vpop.f32.mrf.mxu0
          %v1509 = vadd.f32 0.0, %v1508
          %v1510 = vpop.f32.mrf.mxu0
          %1511 = vdwg.mxu0
          %1512 = vmatpush.bf16.msra.mxu0 0
          %1513 = vmatpush.bf16.msra.mxu0 0
          %1514 = vmatpush.bf16.msra.mxu0 0
          %1515 = vmatpush.bf16.msra.mxu0 0
          %1516 = vmatpush.bf16.msra.mxu0 %v1157
          %1517 = vmatpush.bf16.msra.mxu0 %v1154
          %1518 = vmatpush.bf16.msra.mxu0 %v1151
          %1519 = vmatpush.bf16.msra.mxu0 %v1148
          %1520 = vmatmul.bf16.gmra.mxu0 %v1484
          %v1521 = vpop.f32.mrf.mxu0
          %v1522 = vadd.f32 0.0, %v1521
          %v1523 = vpop.f32.mrf.mxu0
          %1524 = vdwg.mxu0
          %v1526 = vsel %vm1170, %v1083, 0
          %1528 = vmatpush.bf16.msra.mxu0 0
          %1529 = vmatpush.bf16.msra.mxu0 0
          %1530 = vmatpush.bf16.msra.mxu0 0
          %1531 = vmatpush.bf16.msra.mxu0 0
          %1532 = vmatpush.bf16.msra.mxu0 %v1155
          %1533 = vmatpush.bf16.msra.mxu0 %v1152
          %1534 = vmatpush.bf16.msra.mxu0 %v1149
          %1535 = vmatpush.bf16.msra.mxu0 %v1146
          %1536 = vmatmul.bf16.gmra.mxu0 %v1526
          %v1537 = vpop.f32.mrf.mxu0
          %v1538 = vadd.f32 0.0, %v1537
          %v1539 = vpop.f32.mrf.mxu0
          %1540 = vdwg.mxu0
          %1541 = vmatpush.bf16.msra.mxu0 0
          %1542 = vmatpush.bf16.msra.mxu0 0
          %1543 = vmatpush.bf16.msra.mxu0 0
          %1544 = vmatpush.bf16.msra.mxu0 0
          %1545 = vmatpush.bf16.msra.mxu0 %v1156
          %1546 = vmatpush.bf16.msra.mxu0 %v1153
          %1547 = vmatpush.bf16.msra.mxu0 %v1150
          %1548 = vmatpush.bf16.msra.mxu0 %v1147
          %1549 = vmatmul.bf16.gmra.mxu0 %v1526
          %v1550 = vpop.f32.mrf.mxu0
          %v1551 = vadd.f32 0.0, %v1550
          %v1552 = vpop.f32.mrf.mxu0
          %1553 = vdwg.mxu0
          %1554 = vmatpush.bf16.msra.mxu0 0
          %1555 = vmatpush.bf16.msra.mxu0 0
          %1556 = vmatpush.bf16.msra.mxu0 0
          %1557 = vmatpush.bf16.msra.mxu0 0
          %1558 = vmatpush.bf16.msra.mxu0 %v1157
          %1559 = vmatpush.bf16.msra.mxu0 %v1154
          %1560 = vmatpush.bf16.msra.mxu0 %v1151
          %1561 = vmatpush.bf16.msra.mxu0 %v1148
          %1562 = vmatmul.bf16.gmra.mxu0 %v1526
          %v1563 = vpop.f32.mrf.mxu0
          %v1564 = vadd.f32 0.0, %v1563
          %v1565 = vpop.f32.mrf.mxu0
          %1566 = vdwg.mxu0
          %v1568 = vperm.slane %v1100, 0
          %v1570 = vadd.f32 %v1568, %v1210
          %v1571 = vmax.f32 %v1570, 0.0
          %v1572 = vpack.c.bf16 %v1571, %v1571
          %v1574 = vperm.slane %v1105, 0
          %v1580 = vunpack.c.l.b16 %v1101
          %v1581 = vunpack.c.l.b16 %v1102
          %v1582 = vunpack.c.l.b16 %v1103
          %v1583 = vunpack.c.l.b16 %v1104
          %v1584 = vpack.c.b16 %v1581, %v1580
          %v1585 = vpack.c.b16 %v1583, %v1582
          %vm1588 = vcmask 261120
          %v1590 = vsel %vm1588, %v1572, 0
          %1592 = vmatpush.bf16.msra.mxu0 0
          %1593 = vmatpush.bf16.msra.mxu0 0
          %1594 = vmatpush.bf16.msra.mxu0 0
          %1595 = vmatpush.bf16.msra.mxu0 0
          %1596 = vmatpush.bf16.msra.mxu0 0
          %1597 = vmatpush.bf16.msra.mxu0 0
          %1598 = vmatpush.bf16.msra.mxu0 %v1585
          %1599 = vmatpush.bf16.msra.mxu0 %v1584
          %1600 = vmatmul.bf16.gmra.mxu0 %v1590
          %v1601 = vpop.f32.mrf.mxu0
          %v1602 = vadd.f32 %v1574, %v1601
          %v1603 = vpop.f32.mrf.mxu0
          %1604 = vdwg.mxu0
          %v1605 = vmax.f32 %v1602, 0.0
          %vm1606 = vcmask 517120
          %1607 = vst.msk [vmem:[#allocation2] sm:$0x3] %vm1606, %v1605
          %1609 = vrot.lane.b32.xlu0 %v1197, 32
          %v1610 = vpop.permute.xlu0 %1609
          %v1612 = vadd.f32 %v1568, %v1610
          %v1613 = vadd.f32 %v1612, %v1257
          %v1614 = vmax.f32 %v1613, 0.0
          %v1615 = vpack.c.bf16 %v1614, %v1614
          %v1617 = vsel %vm1588, %v1615, 0
          %1619 = vmatpush.bf16.msra.mxu0 0
          %1620 = vmatpush.bf16.msra.mxu0 0
          %1621 = vmatpush.bf16.msra.mxu0 0
          %1622 = vmatpush.bf16.msra.mxu0 0
          %1623 = vmatpush.bf16.msra.mxu0 0
          %1624 = vmatpush.bf16.msra.mxu0 0
          %1625 = vmatpush.bf16.msra.mxu0 %v1585
          %1626 = vmatpush.bf16.msra.mxu0 %v1584
          %1627 = vmatmul.bf16.gmra.mxu0 %v1617
          %v1628 = vpop.f32.mrf.mxu0
          %v1629 = vadd.f32 %v1574, %v1628
          %v1630 = vpop.f32.mrf.mxu0
          %1631 = vdwg.mxu0
          %v1632 = vmax.f32 %v1629, 0.0
          %1634 = vrot.lane.b32.xlu0 %v1632, 64
          %v1635 = vpop.permute.xlu0 %1634
          %vm1637 = vcmask 1041920
          %1638 = vst.msk [vmem:[#allocation2] sm:$0x3] %vm1637, %v1635
          %1639 = vrot.lane.b32.xlu0 %v1197, 64
          %v1640 = vpop.permute.xlu0 %1639
          %v1642 = vadd.f32 %v1568, %v1640
          %1644 = vrot.lane.b32.xlu0 %v1244, 32
          %v1645 = vpop.permute.xlu0 %1644
          %v1647 = vadd.f32 %v1642, %v1645
          %v1648 = vadd.f32 %v1647, %v1301
          %v1649 = vmax.f32 %v1648, 0.0
          %v1650 = vpack.c.bf16 %v1649, %v1649
          %v1652 = vsel %vm1588, %v1650, 0
          %1654 = vmatpush.bf16.msra.mxu0 0
          %1655 = vmatpush.bf16.msra.mxu0 0
          %1656 = vmatpush.bf16.msra.mxu0 0
          %1657 = vmatpush.bf16.msra.mxu0 0
          %1658 = vmatpush.bf16.msra.mxu0 0
          %1659 = vmatpush.bf16.msra.mxu0 0
          %1660 = vmatpush.bf16.msra.mxu0 %v1585
          %1661 = vmatpush.bf16.msra.mxu0 %v1584
          %1662 = vmatmul.bf16.gmra.mxu0 %v1652
          %v1663 = vpop.f32.mrf.mxu0
          %v1664 = vadd.f32 %v1574, %v1663
          %v1665 = vpop.f32.mrf.mxu0
          %1666 = vdwg.mxu0
          %v1667 = vmax.f32 %v1664, 0.0
          %1668 = vst.msk [vmem:[#allocation2 + $0x2] sm:$0x3] %vm1606, %v1667
          %1669 = vrot.lane.b32.xlu0 %v1244, 64
          %v1670 = vpop.permute.xlu0 %1669
          %v1672 = vadd.f32 %v1568, %v1670
          %1674 = vrot.lane.b32.xlu0 %v1288, 32
          %v1675 = vpop.permute.xlu0 %1674
          %v1677 = vadd.f32 %v1672, %v1675
          %v1678 = vmax.f32 %v1677, 0.0
          %v1679 = vpack.c.bf16 %v1678, %v1678
          %v1681 = vsel %vm1588, %v1679, 0
          %1683 = vmatpush.bf16.msra.mxu0 0
          %1684 = vmatpush.bf16.msra.mxu0 0
          %1685 = vmatpush.bf16.msra.mxu0 0
          %1686 = vmatpush.bf16.msra.mxu0 0
          %1687 = vmatpush.bf16.msra.mxu0 0
          %1688 = vmatpush.bf16.msra.mxu0 0
          %1689 = vmatpush.bf16.msra.mxu0 %v1585
          %1690 = vmatpush.bf16.msra.mxu0 %v1584
          %1691 = vmatmul.bf16.gmra.mxu0 %v1681
          %v1692 = vpop.f32.mrf.mxu0
          %v1693 = vadd.f32 %v1574, %v1692
          %v1694 = vpop.f32.mrf.mxu0
          %1695 = vdwg.mxu0
          %v1696 = vmax.f32 %v1693, 0.0
          %1698 = vrot.lane.b32.xlu0 %v1696, 64
          %v1699 = vpop.permute.xlu0 %1698
          %1701 = vst.msk [vmem:[#allocation2 + $0x2] sm:$0x3] %vm1637, %v1699
          %1702 = vrot.lane.b32.xlu0 %v1288, 64
          %v1703 = vpop.permute.xlu0 %1702
          %v1705 = vadd.f32 %v1568, %v1703
          %v1706 = vmax.f32 %v1705, 0.0
          %v1707 = vpack.c.bf16 %v1706, %v1706
          %v1709 = vsel %vm1588, %v1707, 0
          %1711 = vmatpush.bf16.msra.mxu0 0
          %1712 = vmatpush.bf16.msra.mxu0 0
          %1713 = vmatpush.bf16.msra.mxu0 0
          %1714 = vmatpush.bf16.msra.mxu0 0
          %1715 = vmatpush.bf16.msra.mxu0 0
          %1716 = vmatpush.bf16.msra.mxu0 0
          %1717 = vmatpush.bf16.msra.mxu0 %v1585
          %1718 = vmatpush.bf16.msra.mxu0 %v1584
          %1719 = vmatmul.bf16.gmra.mxu0 %v1709
          %v1720 = vpop.f32.mrf.mxu0
          %v1721 = vadd.f32 %v1574, %v1720
          %v1722 = vpop.f32.mrf.mxu0
          %1723 = vdwg.mxu0
          %v1724 = vmax.f32 %v1721, 0.0
          %1725 = vst.msk [vmem:[#allocation2 + $0x4] sm:$0x3] %vm1606, %v1724
          %1726 = vrot.lane.b32.xlu0 %v1197, 96
          %v1727 = vpop.permute.xlu0 %1726
          %v1729 = vadd.f32 %v1568, %v1727
          %v1730 = vadd.f32 %v1729, %v1345
          %v1731 = vmax.f32 %v1730, 0.0
          %v1732 = vpack.c.bf16 %v1731, %v1731
          %v1734 = vsel %vm1588, %v1732, 0
          %1736 = vmatpush.bf16.msra.mxu0 0
          %1737 = vmatpush.bf16.msra.mxu0 0
          %1738 = vmatpush.bf16.msra.mxu0 0
          %1739 = vmatpush.bf16.msra.mxu0 0
          %1740 = vmatpush.bf16.msra.mxu0 0
          %1741 = vmatpush.bf16.msra.mxu0 0
          %1742 = vmatpush.bf16.msra.mxu0 %v1585
          %1743 = vmatpush.bf16.msra.mxu0 %v1584
          %1744 = vmatmul.bf16.gmra.mxu0 %v1734
          %v1745 = vpop.f32.mrf.mxu0
          %v1746 = vadd.f32 %v1574, %v1745
          %v1747 = vpop.f32.mrf.mxu0
          %1748 = vdwg.mxu0
          %v1749 = vmax.f32 %v1746, 0.0
          %1751 = vrot.lane.b32.xlu0 %v1749, 64
          %v1752 = vpop.permute.xlu0 %1751
          %1754 = vst.msk [vmem:[#allocation2 + $0x4] sm:$0x3] %vm1637, %v1752
          %v1755 = vadd.f32 %v1568, %v1197
          %1756 = vrot.lane.b32.xlu0 %v1244, 96
          %v1757 = vpop.permute.xlu0 %1756
          %v1759 = vadd.f32 %v1755, %v1757
          %1761 = vrot.lane.b32.xlu0 %v1332, 32
          %v1762 = vpop.permute.xlu0 %1761
          %v1764 = vadd.f32 %v1759, %v1762
          %v1765 = vadd.f32 %v1764, %v1387
          %v1766 = vmax.f32 %v1765, 0.0
          %v1767 = vpack.c.bf16 %v1766, %v1766
          %v1769 = vsel %vm1588, %v1767, 0
          %1771 = vmatpush.bf16.msra.mxu0 0
          %1772 = vmatpush.bf16.msra.mxu0 0
          %1773 = vmatpush.bf16.msra.mxu0 0
          %1774 = vmatpush.bf16.msra.mxu0 0
          %1775 = vmatpush.bf16.msra.mxu0 0
          %1776 = vmatpush.bf16.msra.mxu0 0
          %1777 = vmatpush.bf16.msra.mxu0 %v1585
          %1778 = vmatpush.bf16.msra.mxu0 %v1584
          %1779 = vmatmul.bf16.gmra.mxu0 %v1769
          %v1780 = vpop.f32.mrf.mxu0
          %v1781 = vadd.f32 %v1574, %v1780
          %v1782 = vpop.f32.mrf.mxu0
          %1783 = vdwg.mxu0
          %v1784 = vmax.f32 %v1781, 0.0
          %1785 = vst.msk [vmem:[#allocation2 + $0x6] sm:$0x3] %vm1606, %v1784
          %1787 = vrot.lane.b32.xlu0 %v1184, 32
          %v1788 = vpop.permute.xlu0 %1787
          %v1790 = vadd.f32 %v1568, %v1788
          %v1791 = vadd.f32 %v1790, %v1244
          %1792 = vrot.lane.b32.xlu0 %v1288, 96
          %v1793 = vpop.permute.xlu0 %1792
          %v1795 = vadd.f32 %v1791, %v1793
          %1796 = vrot.lane.b32.xlu0 %v1332, 64
          %v1797 = vpop.permute.xlu0 %1796
          %v1799 = vadd.f32 %v1795, %v1797
          %1801 = vrot.lane.b32.xlu0 %v1374, 32
          %v1802 = vpop.permute.xlu0 %1801
          %v1804 = vadd.f32 %v1799, %v1802
          %v1805 = vadd.f32 %v1804, %v1434
          %v1806 = vmax.f32 %v1805, 0.0
          %v1807 = vpack.c.bf16 %v1806, %v1806
          %v1809 = vsel %vm1588, %v1807, 0
          %1811 = vmatpush.bf16.msra.mxu0 0
          %1812 = vmatpush.bf16.msra.mxu0 0
          %1813 = vmatpush.bf16.msra.mxu0 0
          %1814 = vmatpush.bf16.msra.mxu0 0
          %1815 = vmatpush.bf16.msra.mxu0 0
          %1816 = vmatpush.bf16.msra.mxu0 0
          %1817 = vmatpush.bf16.msra.mxu0 %v1585
          %1818 = vmatpush.bf16.msra.mxu0 %v1584
          %1819 = vmatmul.bf16.gmra.mxu0 %v1809
          %v1820 = vpop.f32.mrf.mxu0
          %v1821 = vadd.f32 %v1574, %v1820
          %v1822 = vpop.f32.mrf.mxu0
          %1823 = vdwg.mxu0
          %v1824 = vmax.f32 %v1821, 0.0
          %1826 = vrot.lane.b32.xlu0 %v1824, 64
          %v1827 = vpop.permute.xlu0 %1826
          %1829 = vst.msk [vmem:[#allocation2 + $0x6] sm:$0x3] %vm1637, %v1827
          %1831 = vrot.lane.b32.xlu0 %v1231, 32
          %v1832 = vpop.permute.xlu0 %1831
          %v1834 = vadd.f32 %v1568, %v1832
          %v1835 = vadd.f32 %v1834, %v1288
          %1836 = vrot.lane.b32.xlu0 %v1374, 64
          %v1837 = vpop.permute.xlu0 %1836
          %v1839 = vadd.f32 %v1835, %v1837
          %1841 = vrot.lane.b32.xlu0 %v1421, 32
          %v1842 = vpop.permute.xlu0 %1841
          %v1844 = vadd.f32 %v1839, %v1842
          %v1845 = vmax.f32 %v1844, 0.0
          %v1846 = vpack.c.bf16 %v1845, %v1845
          %v1848 = vsel %vm1588, %v1846, 0
          %1850 = vmatpush.bf16.msra.mxu0 0
          %1851 = vmatpush.bf16.msra.mxu0 0
          %1852 = vmatpush.bf16.msra.mxu0 0
          %1853 = vmatpush.bf16.msra.mxu0 0
          %1854 = vmatpush.bf16.msra.mxu0 0
          %1855 = vmatpush.bf16.msra.mxu0 0
          %1856 = vmatpush.bf16.msra.mxu0 %v1585
          %1857 = vmatpush.bf16.msra.mxu0 %v1584
          %1858 = vmatmul.bf16.gmra.mxu0 %v1848
          %v1859 = vpop.f32.mrf.mxu0
          %v1860 = vadd.f32 %v1574, %v1859
          %v1861 = vpop.f32.mrf.mxu0
          %1862 = vdwg.mxu0
          %v1863 = vmax.f32 %v1860, 0.0
          %1864 = vst.msk [vmem:[#allocation2 + $0x8] sm:$0x3] %vm1606, %v1863
          %1866 = vrot.lane.b32.xlu0 %v1275, 32
          %v1867 = vpop.permute.xlu0 %1866
          %v1869 = vadd.f32 %v1568, %v1867
          %1870 = vrot.lane.b32.xlu0 %v1421, 64
          %v1871 = vpop.permute.xlu0 %1870
          %v1873 = vadd.f32 %v1869, %v1871
          %v1874 = vmax.f32 %v1873, 0.0
          %v1875 = vpack.c.bf16 %v1874, %v1874
          %v1877 = vsel %vm1588, %v1875, 0
          %1879 = vmatpush.bf16.msra.mxu0 0
          %1880 = vmatpush.bf16.msra.mxu0 0
          %1881 = vmatpush.bf16.msra.mxu0 0
          %1882 = vmatpush.bf16.msra.mxu0 0
          %1883 = vmatpush.bf16.msra.mxu0 0
          %1884 = vmatpush.bf16.msra.mxu0 0
          %1885 = vmatpush.bf16.msra.mxu0 %v1585
          %1886 = vmatpush.bf16.msra.mxu0 %v1584
          %1887 = vmatmul.bf16.gmra.mxu0 %v1877
          %v1888 = vpop.f32.mrf.mxu0
          %v1889 = vadd.f32 %v1574, %v1888
          %v1890 = vpop.f32.mrf.mxu0
          %1891 = vdwg.mxu0
          %v1892 = vmax.f32 %v1889, 0.0
          %1894 = vrot.lane.b32.xlu0 %v1892, 64
          %v1895 = vpop.permute.xlu0 %1894
          %1897 = vst.msk [vmem:[#allocation2 + $0x8] sm:$0x3] %vm1637, %v1895
          %1898 = vrot.lane.b32.xlu0 %v1184, 64
          %v1899 = vpop.permute.xlu0 %1898
          %v1901 = vadd.f32 %v1568, %v1899
          %1902 = vrot.lane.b32.xlu0 %v1332, 96
          %v1903 = vpop.permute.xlu0 %1902
          %v1905 = vadd.f32 %v1901, %v1903
          %v1906 = vadd.f32 %v1905, %v1478
          %v1907 = vmax.f32 %v1906, 0.0
          %v1908 = vpack.c.bf16 %v1907, %v1907
          %v1910 = vsel %vm1588, %v1908, 0
          %1912 = vmatpush.bf16.msra.mxu0 0
          %1913 = vmatpush.bf16.msra.mxu0 0
          %1914 = vmatpush.bf16.msra.mxu0 0
          %1915 = vmatpush.bf16.msra.mxu0 0
          %1916 = vmatpush.bf16.msra.mxu0 0
          %1917 = vmatpush.bf16.msra.mxu0 0
          %1918 = vmatpush.bf16.msra.mxu0 %v1585
          %1919 = vmatpush.bf16.msra.mxu0 %v1584
          %1920 = vmatmul.bf16.gmra.mxu0 %v1910
          %v1921 = vpop.f32.mrf.mxu0
          %v1922 = vadd.f32 %v1574, %v1921
          %v1923 = vpop.f32.mrf.mxu0
          %1924 = vdwg.mxu0
          %v1925 = vmax.f32 %v1922, 0.0
          %1926 = vst.msk [vmem:[#allocation2 + $0xa] sm:$0x3] %vm1606, %v1925
          %1927 = vrot.lane.b32.xlu0 %v1184, 96
          %v1928 = vpop.permute.xlu0 %1927
          %v1930 = vadd.f32 %v1568, %v1928
          %1931 = vrot.lane.b32.xlu0 %v1231, 64
          %v1932 = vpop.permute.xlu0 %1931
          %v1934 = vadd.f32 %v1930, %v1932
          %v1935 = vadd.f32 %v1934, %v1332
          %1936 = vrot.lane.b32.xlu0 %v1374, 96
          %v1937 = vpop.permute.xlu0 %1936
          %v1939 = vadd.f32 %v1935, %v1937
          %1941 = vrot.lane.b32.xlu0 %v1465, 32
          %v1942 = vpop.permute.xlu0 %1941
          %v1944 = vadd.f32 %v1939, %v1942
          %v1945 = vadd.f32 %v1944, %v1522
          %v1946 = vmax.f32 %v1945, 0.0
          %v1947 = vpack.c.bf16 %v1946, %v1946
          %v1949 = vsel %vm1588, %v1947, 0
          %1951 = vmatpush.bf16.msra.mxu0 0
          %1952 = vmatpush.bf16.msra.mxu0 0
          %1953 = vmatpush.bf16.msra.mxu0 0
          %1954 = vmatpush.bf16.msra.mxu0 0
          %1955 = vmatpush.bf16.msra.mxu0 0
          %1956 = vmatpush.bf16.msra.mxu0 0
          %1957 = vmatpush.bf16.msra.mxu0 %v1585
          %1958 = vmatpush.bf16.msra.mxu0 %v1584
          %1959 = vmatmul.bf16.gmra.mxu0 %v1949
          %v1960 = vpop.f32.mrf.mxu0
          %v1961 = vadd.f32 %v1574, %v1960
          %v1962 = vpop.f32.mrf.mxu0
          %1963 = vdwg.mxu0
          %v1964 = vmax.f32 %v1961, 0.0
          %1966 = vrot.lane.b32.xlu0 %v1964, 64
          %v1967 = vpop.permute.xlu0 %1966
          %1969 = vst.msk [vmem:[#allocation2 + $0xa] sm:$0x3] %vm1637, %v1967
          %v1970 = vadd.f32 %v1568, %v1184
          %1971 = vrot.lane.b32.xlu0 %v1231, 96
          %v1972 = vpop.permute.xlu0 %1971
          %v1974 = vadd.f32 %v1970, %v1972
          %1975 = vrot.lane.b32.xlu0 %v1275, 64
          %v1976 = vpop.permute.xlu0 %1975
          %v1978 = vadd.f32 %v1974, %v1976
          %1980 = vrot.lane.b32.xlu0 %v1319, 32
          %v1981 = vpop.permute.xlu0 %1980
          %v1983 = vadd.f32 %v1978, %v1981
          %v1984 = vadd.f32 %v1983, %v1374
          %1985 = vrot.lane.b32.xlu0 %v1421, 96
          %v1986 = vpop.permute.xlu0 %1985
          %v1988 = vadd.f32 %v1984, %v1986
          %1989 = vrot.lane.b32.xlu0 %v1465, 64
          %v1990 = vpop.permute.xlu0 %1989
          %v1992 = vadd.f32 %v1988, %v1990
          %1994 = vrot.lane.b32.xlu0 %v1509, 32
          %v1995 = vpop.permute.xlu0 %1994
          %v1997 = vadd.f32 %v1992, %v1995
          %v1998 = vadd.f32 %v1997, %v1564
          %v1999 = vmax.f32 %v1998, 0.0
          %v2000 = vpack.c.bf16 %v1999, %v1999
          %v2002 = vsel %vm1588, %v2000, 0
          %2004 = vmatpush.bf16.msra.mxu0 0
          %2005 = vmatpush.bf16.msra.mxu0 0
          %2006 = vmatpush.bf16.msra.mxu0 0
          %2007 = vmatpush.bf16.msra.mxu0 0
          %2008 = vmatpush.bf16.msra.mxu0 0
          %2009 = vmatpush.bf16.msra.mxu0 0
          %2010 = vmatpush.bf16.msra.mxu0 %v1585
          %2011 = vmatpush.bf16.msra.mxu0 %v1584
          %2012 = vmatmul.bf16.gmra.mxu0 %v2002
          %v2013 = vpop.f32.mrf.mxu0
          %v2014 = vadd.f32 %v1574, %v2013
          %v2015 = vpop.f32.mrf.mxu0
          %2016 = vdwg.mxu0
          %v2017 = vmax.f32 %v2014, 0.0
          %2018 = vst.msk [vmem:[#allocation2 + $0xc] sm:$0x3] %vm1606, %v2017
          %v2019 = vadd.f32 %v1568, %v1231
          %2020 = vrot.lane.b32.xlu0 %v1275, 96
          %v2021 = vpop.permute.xlu0 %2020
          %v2023 = vadd.f32 %v2019, %v2021
          %2025 = vrot.lane.b32.xlu0 %v1361, 32
          %v2026 = vpop.permute.xlu0 %2025
          %v2028 = vadd.f32 %v2023, %v2026
          %v2029 = vadd.f32 %v2028, %v1421
          %2030 = vrot.lane.b32.xlu0 %v1509, 64
          %v2031 = vpop.permute.xlu0 %2030
          %v2033 = vadd.f32 %v2029, %v2031
          %2035 = vrot.lane.b32.xlu0 %v1551, 32
          %v2036 = vpop.permute.xlu0 %2035
          %v2038 = vadd.f32 %v2033, %v2036
          %v2039 = vmax.f32 %v2038, 0.0
          %v2040 = vpack.c.bf16 %v2039, %v2039
          %v2042 = vsel %vm1588, %v2040, 0
          %2044 = vmatpush.bf16.msra.mxu0 0
          %2045 = vmatpush.bf16.msra.mxu0 0
          %2046 = vmatpush.bf16.msra.mxu0 0
          %2047 = vmatpush.bf16.msra.mxu0 0
          %2048 = vmatpush.bf16.msra.mxu0 0
          %2049 = vmatpush.bf16.msra.mxu0 0
          %2050 = vmatpush.bf16.msra.mxu0 %v1585
          %2051 = vmatpush.bf16.msra.mxu0 %v1584
          %2052 = vmatmul.bf16.gmra.mxu0 %v2042
          %v2053 = vpop.f32.mrf.mxu0
          %v2054 = vadd.f32 %v1574, %v2053
          %v2055 = vpop.f32.mrf.mxu0
          %2056 = vdwg.mxu0
          %v2057 = vmax.f32 %v2054, 0.0
          %2059 = vrot.lane.b32.xlu0 %v2057, 64
          %v2060 = vpop.permute.xlu0 %2059
          %2062 = vst.msk [vmem:[#allocation2 + $0xc] sm:$0x3] %vm1637, %v2060
          %v2063 = vadd.f32 %v1568, %v1275
          %2065 = vrot.lane.b32.xlu0 %v1408, 32
          %v2066 = vpop.permute.xlu0 %2065
          %v2068 = vadd.f32 %v2063, %v2066
          %2069 = vrot.lane.b32.xlu0 %v1551, 64
          %v2070 = vpop.permute.xlu0 %2069
          %v2072 = vadd.f32 %v2068, %v2070
          %v2073 = vmax.f32 %v2072, 0.0
          %v2074 = vpack.c.bf16 %v2073, %v2073
          %v2076 = vsel %vm1588, %v2074, 0
          %2078 = vmatpush.bf16.msra.mxu0 0
          %2079 = vmatpush.bf16.msra.mxu0 0
          %2080 = vmatpush.bf16.msra.mxu0 0
          %2081 = vmatpush.bf16.msra.mxu0 0
          %2082 = vmatpush.bf16.msra.mxu0 0
          %2083 = vmatpush.bf16.msra.mxu0 0
          %2084 = vmatpush.bf16.msra.mxu0 %v1585
          %2085 = vmatpush.bf16.msra.mxu0 %v1584
          %2086 = vmatmul.bf16.gmra.mxu0 %v2076
          %v2087 = vpop.f32.mrf.mxu0
          %v2088 = vadd.f32 %v1574, %v2087
          %v2089 = vpop.f32.mrf.mxu0
          %2090 = vdwg.mxu0
          %v2091 = vmax.f32 %v2088, 0.0
          %2092 = vst.msk [vmem:[#allocation2 + $0xe] sm:$0x3] %vm1606, %v2091
          %2093 = vrot.lane.b32.xlu0 %v1319, 64
          %v2094 = vpop.permute.xlu0 %2093
          %v2096 = vadd.f32 %v1568, %v2094
          %2097 = vrot.lane.b32.xlu0 %v1465, 96
          %v2098 = vpop.permute.xlu0 %2097
          %v2100 = vadd.f32 %v2096, %v2098
          %v2101 = vmax.f32 %v2100, 0.0
          %v2102 = vpack.c.bf16 %v2101, %v2101
          %v2104 = vsel %vm1588, %v2102, 0
          %2106 = vmatpush.bf16.msra.mxu0 0
          %2107 = vmatpush.bf16.msra.mxu0 0
          %2108 = vmatpush.bf16.msra.mxu0 0
          %2109 = vmatpush.bf16.msra.mxu0 0
          %2110 = vmatpush.bf16.msra.mxu0 0
          %2111 = vmatpush.bf16.msra.mxu0 0
          %2112 = vmatpush.bf16.msra.mxu0 %v1585
          %2113 = vmatpush.bf16.msra.mxu0 %v1584
          %2114 = vmatmul.bf16.gmra.mxu0 %v2104
          %v2115 = vpop.f32.mrf.mxu0
          %v2116 = vadd.f32 %v1574, %v2115
          %v2117 = vpop.f32.mrf.mxu0
          %2118 = vdwg.mxu0
          %v2119 = vmax.f32 %v2116, 0.0
          %2121 = vrot.lane.b32.xlu0 %v2119, 64
          %v2122 = vpop.permute.xlu0 %2121
          %2124 = vst.msk [vmem:[#allocation2 + $0xe] sm:$0x3] %vm1637, %v2122
          %2125 = vrot.lane.b32.xlu0 %v1319, 96
          %v2126 = vpop.permute.xlu0 %2125
          %v2128 = vadd.f32 %v1568, %v2126
          %2129 = vrot.lane.b32.xlu0 %v1361, 64
          %v2130 = vpop.permute.xlu0 %2129
          %v2132 = vadd.f32 %v2128, %v2130
          %v2133 = vadd.f32 %v2132, %v1465
          %2134 = vrot.lane.b32.xlu0 %v1509, 96
          %v2135 = vpop.permute.xlu0 %2134
          %v2137 = vadd.f32 %v2133, %v2135
          %v2138 = vmax.f32 %v2137, 0.0
          %v2139 = vpack.c.bf16 %v2138, %v2138
          %v2141 = vsel %vm1588, %v2139, 0
          %2143 = vmatpush.bf16.msra.mxu0 0
          %2144 = vmatpush.bf16.msra.mxu0 0
          %2145 = vmatpush.bf16.msra.mxu0 0
          %2146 = vmatpush.bf16.msra.mxu0 0
          %2147 = vmatpush.bf16.msra.mxu0 0
          %2148 = vmatpush.bf16.msra.mxu0 0
          %2149 = vmatpush.bf16.msra.mxu0 %v1585
          %2150 = vmatpush.bf16.msra.mxu0 %v1584
          %2151 = vmatmul.bf16.gmra.mxu0 %v2141
          %v2152 = vpop.f32.mrf.mxu0
          %v2153 = vadd.f32 %v1574, %v2152
          %v2154 = vpop.f32.mrf.mxu0
          %2155 = vdwg.mxu0
          %v2156 = vmax.f32 %v2153, 0.0
          %2157 = vst.msk [vmem:[#allocation2 + $0x10] sm:$0x3] %vm1606, %v2156
          %v2158 = vadd.f32 %v1568, %v1319
          %2159 = vrot.lane.b32.xlu0 %v1361, 96
          %v2160 = vpop.permute.xlu0 %2159
          %v2162 = vadd.f32 %v2158, %v2160
          %2163 = vrot.lane.b32.xlu0 %v1408, 64
          %v2164 = vpop.permute.xlu0 %2163
          %v2166 = vadd.f32 %v2162, %v2164
          %2168 = vrot.lane.b32.xlu0 %v1452, 32
          %v2169 = vpop.permute.xlu0 %2168
          %v2171 = vadd.f32 %v2166, %v2169
          %v2172 = vadd.f32 %v2171, %v1509
          %2173 = vrot.lane.b32.xlu0 %v1551, 96
          %v2174 = vpop.permute.xlu0 %2173
          %v2176 = vadd.f32 %v2172, %v2174
          %v2177 = vmax.f32 %v2176, 0.0
          %v2178 = vpack.c.bf16 %v2177, %v2177
          %v2180 = vsel %vm1588, %v2178, 0
          %2182 = vmatpush.bf16.msra.mxu0 0
          %2183 = vmatpush.bf16.msra.mxu0 0
          %2184 = vmatpush.bf16.msra.mxu0 0
          %2185 = vmatpush.bf16.msra.mxu0 0
          %2186 = vmatpush.bf16.msra.mxu0 0
          %2187 = vmatpush.bf16.msra.mxu0 0
          %2188 = vmatpush.bf16.msra.mxu0 %v1585
          %2189 = vmatpush.bf16.msra.mxu0 %v1584
          %2190 = vmatmul.bf16.gmra.mxu0 %v2180
          %v2191 = vpop.f32.mrf.mxu0
          %v2192 = vadd.f32 %v1574, %v2191
          %v2193 = vpop.f32.mrf.mxu0
          %2194 = vdwg.mxu0
          %v2195 = vmax.f32 %v2192, 0.0
          %2197 = vrot.lane.b32.xlu0 %v2195, 64
          %v2198 = vpop.permute.xlu0 %2197
          %2200 = vst.msk [vmem:[#allocation2 + $0x10] sm:$0x3] %vm1637, %v2198
          %v2201 = vadd.f32 %v1568, %v1361
          %2202 = vrot.lane.b32.xlu0 %v1408, 96
          %v2203 = vpop.permute.xlu0 %2202
          %v2205 = vadd.f32 %v2201, %v2203
          %2207 = vrot.lane.b32.xlu0 %v1496, 32
          %v2208 = vpop.permute.xlu0 %2207
          %v2210 = vadd.f32 %v2205, %v2208
          %v2211 = vadd.f32 %v2210, %v1551
          %v2212 = vmax.f32 %v2211, 0.0
          %v2213 = vpack.c.bf16 %v2212, %v2212
          %v2215 = vsel %vm1588, %v2213, 0
          %2217 = vmatpush.bf16.msra.mxu0 0
          %2218 = vmatpush.bf16.msra.mxu0 0
          %2219 = vmatpush.bf16.msra.mxu0 0
          %2220 = vmatpush.bf16.msra.mxu0 0
          %2221 = vmatpush.bf16.msra.mxu0 0
          %2222 = vmatpush.bf16.msra.mxu0 0
          %2223 = vmatpush.bf16.msra.mxu0 %v1585
          %2224 = vmatpush.bf16.msra.mxu0 %v1584
          %2225 = vmatmul.bf16.gmra.mxu0 %v2215
          %v2226 = vpop.f32.mrf.mxu0
          %v2227 = vadd.f32 %v1574, %v2226
          %v2228 = vpop.f32.mrf.mxu0
          %2229 = vdwg.mxu0
          %v2230 = vmax.f32 %v2227, 0.0
          %2231 = vst.msk [vmem:[#allocation2 + $0x12] sm:$0x3] %vm1606, %v2230
          %v2232 = vadd.f32 %v1568, %v1408
          %2234 = vrot.lane.b32.xlu0 %v1538, 32
          %v2235 = vpop.permute.xlu0 %2234
          %v2237 = vadd.f32 %v2232, %v2235
          %v2238 = vmax.f32 %v2237, 0.0
          %v2239 = vpack.c.bf16 %v2238, %v2238
          %v2241 = vsel %vm1588, %v2239, 0
          %2243 = vmatpush.bf16.msra.mxu0 0
          %2244 = vmatpush.bf16.msra.mxu0 0
          %2245 = vmatpush.bf16.msra.mxu0 0
          %2246 = vmatpush.bf16.msra.mxu0 0
          %2247 = vmatpush.bf16.msra.mxu0 0
          %2248 = vmatpush.bf16.msra.mxu0 0
          %2249 = vmatpush.bf16.msra.mxu0 %v1585
          %2250 = vmatpush.bf16.msra.mxu0 %v1584
          %2251 = vmatmul.bf16.gmra.mxu0 %v2241
          %v2252 = vpop.f32.mrf.mxu0
          %v2253 = vadd.f32 %v1574, %v2252
          %v2254 = vpop.f32.mrf.mxu0
          %2255 = vdwg.mxu0
          %v2256 = vmax.f32 %v2253, 0.0
          %2258 = vrot.lane.b32.xlu0 %v2256, 64
          %v2259 = vpop.permute.xlu0 %2258
          %2261 = vst.msk [vmem:[#allocation2 + $0x12] sm:$0x3] %vm1637, %v2259
          %2262 = vrot.lane.b32.xlu0 %v1452, 64
          %v2263 = vpop.permute.xlu0 %2262
          %v2265 = vadd.f32 %v1568, %v2263
          %v2266 = vmax.f32 %v2265, 0.0
          %v2267 = vpack.c.bf16 %v2266, %v2266
          %v2269 = vsel %vm1588, %v2267, 0
          %2271 = vmatpush.bf16.msra.mxu0 0
          %2272 = vmatpush.bf16.msra.mxu0 0
          %2273 = vmatpush.bf16.msra.mxu0 0
          %2274 = vmatpush.bf16.msra.mxu0 0
          %2275 = vmatpush.bf16.msra.mxu0 0
          %2276 = vmatpush.bf16.msra.mxu0 0
          %2277 = vmatpush.bf16.msra.mxu0 %v1585
          %2278 = vmatpush.bf16.msra.mxu0 %v1584
          %2279 = vmatmul.bf16.gmra.mxu0 %v2269
          %v2280 = vpop.f32.mrf.mxu0
          %v2281 = vadd.f32 %v1574, %v2280
          %v2282 = vpop.f32.mrf.mxu0
          %2283 = vdwg.mxu0
          %v2284 = vmax.f32 %v2281, 0.0
          %2285 = vst.msk [vmem:[#allocation2 + $0x14] sm:$0x3] %vm1606, %v2284
          %2286 = vrot.lane.b32.xlu0 %v1452, 96
          %v2287 = vpop.permute.xlu0 %2286
          %v2289 = vadd.f32 %v1568, %v2287
          %2290 = vrot.lane.b32.xlu0 %v1496, 64
          %v2291 = vpop.permute.xlu0 %2290
          %v2293 = vadd.f32 %v2289, %v2291
          %v2294 = vmax.f32 %v2293, 0.0
          %v2295 = vpack.c.bf16 %v2294, %v2294
          %v2297 = vsel %vm1588, %v2295, 0
          %2299 = vmatpush.bf16.msra.mxu0 0
          %2300 = vmatpush.bf16.msra.mxu0 0
          %2301 = vmatpush.bf16.msra.mxu0 0
          %2302 = vmatpush.bf16.msra.mxu0 0
          %2303 = vmatpush.bf16.msra.mxu0 0
          %2304 = vmatpush.bf16.msra.mxu0 0
          %2305 = vmatpush.bf16.msra.mxu0 %v1585
          %2306 = vmatpush.bf16.msra.mxu0 %v1584
          %2307 = vmatmul.bf16.gmra.mxu0 %v2297
          %v2308 = vpop.f32.mrf.mxu0
          %v2309 = vadd.f32 %v1574, %v2308
          %v2310 = vpop.f32.mrf.mxu0
          %2311 = vdwg.mxu0
          %v2312 = vmax.f32 %v2309, 0.0
          %2314 = vrot.lane.b32.xlu0 %v2312, 64
          %v2315 = vpop.permute.xlu0 %2314
          %2317 = vst.msk [vmem:[#allocation2 + $0x14] sm:$0x3] %vm1637, %v2315
          %v2318 = vadd.f32 %v1568, %v1452
          %2319 = vrot.lane.b32.xlu0 %v1496, 96
          %v2320 = vpop.permute.xlu0 %2319
          %v2322 = vadd.f32 %v2318, %v2320
          %2323 = vrot.lane.b32.xlu0 %v1538, 64
          %v2324 = vpop.permute.xlu0 %2323
          %v2326 = vadd.f32 %v2322, %v2324
          %v2327 = vmax.f32 %v2326, 0.0
          %v2328 = vpack.c.bf16 %v2327, %v2327
          %v2330 = vsel %vm1588, %v2328, 0
          %2332 = vmatpush.bf16.msra.mxu0 0
          %2333 = vmatpush.bf16.msra.mxu0 0
          %2334 = vmatpush.bf16.msra.mxu0 0
          %2335 = vmatpush.bf16.msra.mxu0 0
          %2336 = vmatpush.bf16.msra.mxu0 0
          %2337 = vmatpush.bf16.msra.mxu0 0
          %2338 = vmatpush.bf16.msra.mxu0 %v1585
          %2339 = vmatpush.bf16.msra.mxu0 %v1584
          %2340 = vmatmul.bf16.gmra.mxu0 %v2330
          %v2341 = vpop.f32.mrf.mxu0
          %v2342 = vadd.f32 %v1574, %v2341
          %v2343 = vpop.f32.mrf.mxu0
          %2344 = vdwg.mxu0
          %v2345 = vmax.f32 %v2342, 0.0
          %2346 = vst.msk [vmem:[#allocation2 + $0x16] sm:$0x3] %vm1606, %v2345
          %v2347 = vadd.f32 %v1568, %v1496
          %2348 = vrot.lane.b32.xlu0 %v1538, 96
          %v2349 = vpop.permute.xlu0 %2348
          %v2351 = vadd.f32 %v2347, %v2349
          %v2352 = vmax.f32 %v2351, 0.0
          %v2353 = vpack.c.bf16 %v2352, %v2352
          %v2355 = vsel %vm1588, %v2353, 0
          %2357 = vmatpush.bf16.msra.mxu0 0
          %2358 = vmatpush.bf16.msra.mxu0 0
          %2359 = vmatpush.bf16.msra.mxu0 0
          %2360 = vmatpush.bf16.msra.mxu0 0
          %2361 = vmatpush.bf16.msra.mxu0 0
          %2362 = vmatpush.bf16.msra.mxu0 0
          %2363 = vmatpush.bf16.msra.mxu0 %v1585
          %2364 = vmatpush.bf16.msra.mxu0 %v1584
          %2365 = vmatmul.bf16.gmra.mxu0 %v2355
          %v2366 = vpop.f32.mrf.mxu0
          %v2367 = vadd.f32 %v1574, %v2366
          %v2368 = vpop.f32.mrf.mxu0
          %2369 = vdwg.mxu0
          %v2370 = vmax.f32 %v2367, 0.0
          %2372 = vrot.lane.b32.xlu0 %v2370, 64
          %v2373 = vpop.permute.xlu0 %2372
          %2375 = vst.msk [vmem:[#allocation2 + $0x16] sm:$0x3] %vm1637, %v2373
          %v2376 = vadd.f32 %v1568, %v1538
          %v2377 = vmax.f32 %v2376, 0.0
          %v2378 = vpack.c.bf16 %v2377, %v2377
          %v2380 = vsel %vm1588, %v2378, 0
          %2382 = vmatpush.bf16.msra.mxu0 0
          %2383 = vmatpush.bf16.msra.mxu0 0
          %2384 = vmatpush.bf16.msra.mxu0 0
          %2385 = vmatpush.bf16.msra.mxu0 0
          %2386 = vmatpush.bf16.msra.mxu0 0
          %2387 = vmatpush.bf16.msra.mxu0 0
          %2388 = vmatpush.bf16.msra.mxu0 %v1585
          %2389 = vmatpush.bf16.msra.mxu0 %v1584
          %2390 = vmatmul.bf16.gmra.mxu0 %v2380
          %v2391 = vpop.f32.mrf.mxu0
          %v2392 = vadd.f32 %v1574, %v2391
          %v2393 = vpop.f32.mrf.mxu0
          %2394 = vdwg.mxu0
          %v2395 = vmax.f32 %v2392, 0.0
          %2396 = vst.msk [vmem:[#allocation2 + $0x18] sm:$0x3] %vm1606, %v2395
        $region104: #{binary_coding_forward.1} parent=63 // pred_fallthru
          _
        %v2397 = vld [vmem:[#allocation2] sm:$0xff]
        %v2398 = vld [vmem:[#allocation2 + $0x8] sm:$0xff]
        %v2399 = vld [vmem:[#allocation2 + $0x10] sm:$0xff]
        %v2400 = vld [vmem:[#allocation2 + $0x18] sm:$0x3]
        %2405 = vst [vmem:[#allocation1] ss:$4 sm:$0xff] %v2397
        %s2406 = scalar_lea.vmem [#allocation1], 32
        %2407 = vst [vmem:[%s2406] ss:$4 sm:$0xff] %v2398
        %v2408 = vld.sshfl [vmem:[#allocation1] sm:$0xff pattern:$0x73625140]
        %v2409 = vld.sshfl [vmem:[#allocation1 + $0x8] sm:$0xff pattern:$0x73625140]
        %v2410 = vld.sshfl [vmem:[#allocation1 + $0x10] sm:$0xff pattern:$0x73625140]
        %v2411 = vld.sshfl [vmem:[#allocation1 + $0x18] sm:$0xff pattern:$0x73625140]
        %v2412 = vld.sshfl [vmem:[#allocation1 + $0x20] sm:$0xff pattern:$0x73625140]
        %v2413 = vld.sshfl [vmem:[#allocation1 + $0x28] sm:$0xff pattern:$0x73625140]
        %v2414 = vld.sshfl [vmem:[#allocation1 + $0x30] sm:$0xff pattern:$0x73625140]
        %v2415 = vld.sshfl [vmem:[#allocation1 + $0x38] sm:$0xff pattern:$0x73625140]
        %2416 = vst [vmem:[#allocation1] ss:$4 sm:$0xff] %v2399
        %2417 = vst [vmem:[%s2406] ss:$4 sm:$0xff] %v2400
        %v2418 = vld.sshfl [vmem:[#allocation1] sm:$0xff pattern:$0x73625140]
        %v2419 = vld.sshfl [vmem:[#allocation1 + $0x8] sm:$0xff pattern:$0x73625140]
        %v2420 = vld.sshfl [vmem:[#allocation1 + $0x10] sm:$0xff pattern:$0x73625140]
        %v2421 = vld.sshfl [vmem:[#allocation1 + $0x18] sm:$0xff pattern:$0x73625140]
        %v2422 = vld.sshfl [vmem:[#allocation1 + $0x20] sm:$0xff pattern:$0x73625140]
        %v2436 = vpack.c.bf16 %v2408, %v2408
        %v2437 = vpack.c.bf16 %v2409, %v2409
        %v2438 = vpack.c.bf16 %v2410, %v2410
        %v2439 = vpack.c.bf16 %v2411, %v2411
        %v2440 = vpack.c.bf16 %v2412, %v2412
        %v2441 = vpack.c.bf16 %v2413, %v2413
        %v2442 = vpack.c.bf16 %v2414, %v2414
        %v2443 = vpack.c.bf16 %v2415, %v2415
        %v2444 = vpack.c.bf16 %v2418, %v2418
        %v2445 = vpack.c.bf16 %v2419, %v2419
        %v2446 = vpack.c.bf16 %v2420, %v2420
        %v2447 = vpack.c.bf16 %v2421, %v2421
        %v2448 = vpack.c.bf16 %v2422, %v2422
        %v2449 = vld [vmem:[%s492] sm:$0xff]
        %v2450 = vld [vmem:[%s492 + $0x8] sm:$0xff]
        %v2451 = vld [vmem:[%s492 + $0x10] sm:$0xff]
        %v2452 = vld [vmem:[%s492 + $0x18] sm:$0xff]
        %v2453 = vld [vmem:[%s492 + $0x20] sm:$0xff]
        %v2454 = vld [vmem:[%s492 + $0x28] sm:$0xff]
        %v2455 = vld [vmem:[%s492 + $0x30] sm:$0xff]
        %v2456 = vld [vmem:[%s492 + $0x38] sm:$0xff]
        %v2457 = vld [vmem:[%s492 + $0x40] sm:$0xff]
        %v2458 = vld [vmem:[%s492 + $0x48] sm:$0xff]
        %v2459 = vld [vmem:[%s492 + $0x50] sm:$0xff]
        %v2460 = vld [vmem:[%s492 + $0x58] sm:$0xff]
        %v2461 = vld [vmem:[%s492 + $0x60] sm:$0xff]
        %v2462 = vld [vmem:[%s492 + $0x68] sm:$0xff]
        %v2463 = vld [vmem:[%s492 + $0x70] sm:$0xff]
        %v2464 = vld [vmem:[%s492 + $0x78] sm:$0xff]
        %v2465 = vld [vmem:[%s492 + $0x80] sm:$0xff]
        %v2466 = vld [vmem:[%s492 + $0x88] sm:$0xff]
        %v2467 = vld [vmem:[%s492 + $0x90] sm:$0xff]
        %v2468 = vld [vmem:[%s492 + $0x98] sm:$0xff]
        %v2469 = vld [vmem:[%s492 + $0xa0] sm:$0xff]
        %v2470 = vld [vmem:[%s492 + $0xa8] sm:$0xff]
        %v2471 = vld [vmem:[%s492 + $0xb0] sm:$0xff]
        %v2472 = vld [vmem:[%s492 + $0xb8] sm:$0xff]
        %v2473 = vld [vmem:[%s492 + $0xc0] sm:$0xff]
        %v2474 = vld [vmem:[%s492 + $0xc8] sm:$0xff]
        %v2475 = vld [vmem:[%s492 + $0xd0] sm:$0xff]
        %v2476 = vld [vmem:[%s492 + $0xd8] sm:$0xff]
        %v2477 = vld [vmem:[%s492 + $0xe0] sm:$0xff]
        %v2478 = vld [vmem:[%s492 + $0xe8] sm:$0xff]
        %v2479 = vld [vmem:[%s492 + $0xf0] sm:$0xff]
        %v2480 = vld [vmem:[%s492 + $0xf8] sm:$0xff]
        %v2481 = vld [vmem:[%s492 + $0x100] sm:$0xff]
        %v2482 = vld [vmem:[%s492 + $0x108] sm:$0xff]
        %v2483 = vld [vmem:[%s492 + $0x110] sm:$0xff]
        %v2484 = vld [vmem:[%s492 + $0x118] sm:$0xff]
        %v2485 = vld [vmem:[%s492 + $0x120] sm:$0xff]
        %v2486 = vld [vmem:[%s492 + $0x128] sm:$0xff]
        %v2487 = vld [vmem:[%s492 + $0x130] sm:$0xff]
        %v2488 = vld [vmem:[%s492 + $0x138] sm:$0xff]
        %v2489 = vld [vmem:[%s492 + $0x140] sm:$0xff]
        %v2490 = vld [vmem:[%s492 + $0x148] sm:$0xff]
        %v2491 = vld [vmem:[%s492 + $0x150] sm:$0xff]
        %v2492 = vld [vmem:[%s492 + $0x158] sm:$0xff]
        %v2493 = vld [vmem:[%s492 + $0x160] sm:$0xff]
        %v2494 = vld [vmem:[%s492 + $0x168] sm:$0xff]
        %v2495 = vld [vmem:[%s492 + $0x170] sm:$0xff]
        %v2496 = vld [vmem:[%s492 + $0x178] sm:$0xff]
        %v2497 = vld [vmem:[%s492 + $0x180] sm:$0xff]
        %v2498 = vld [vmem:[%s492 + $0x188] sm:$0xff]
        %v2499 = vld [vmem:[%s492 + $0x190] sm:$0xff]
        %v2500 = vld [vmem:[%s492 + $0x198] sm:$0xff]
        %v2501 = vld [vmem:[%s492 + $0x1a0] sm:$0xff]
        %v2502 = vld [vmem:[%s492 + $0x1a8] sm:$0xff]
        %v2503 = vld [vmem:[%s492 + $0x1b0] sm:$0xff]
        %v2504 = vld [vmem:[%s492 + $0x1b8] sm:$0xff]
        %v2505 = vld [vmem:[%s492 + $0x1c0] sm:$0xff]
        %v2506 = vld [vmem:[%s492 + $0x1c8] sm:$0xff]
        %v2507 = vld [vmem:[%s492 + $0x1d0] sm:$0xff]
        %v2508 = vld [vmem:[%s492 + $0x1d8] sm:$0xff]
        %v2509 = vld [vmem:[%s492 + $0x1e0] sm:$0xff]
        %v2510 = vld [vmem:[%s492 + $0x1e8] sm:$0xff]
        %v2511 = vld [vmem:[%s492 + $0x1f0] sm:$0xff]
        %v2512 = vld [vmem:[%s492 + $0x1f8] sm:$0xff]
        %v2513 = vld [vmem:[%s492 + $0x200] sm:$0xff]
        %v2514 = vld [vmem:[%s492 + $0x208] sm:$0xff]
        %v2515 = vld [vmem:[%s492 + $0x210] sm:$0xff]
        %v2516 = vld [vmem:[%s492 + $0x218] sm:$0xff]
        %v2517 = vld [vmem:[%s492 + $0x220] sm:$0xff]
        %v2518 = vld [vmem:[%s492 + $0x228] sm:$0xff]
        %v2519 = vld [vmem:[%s492 + $0x230] sm:$0xff]
        %v2520 = vld [vmem:[%s492 + $0x238] sm:$0xff]
        %v2521 = vld [vmem:[%s492 + $0x240] sm:$0xff]
        %v2522 = vld [vmem:[%s492 + $0x248] sm:$0xff]
        %v2523 = vld [vmem:[%s492 + $0x250] sm:$0xff]
        %v2524 = vld [vmem:[%s492 + $0x258] sm:$0xff]
        %v2525 = vld [vmem:[%s492 + $0x260] sm:$0xff]
        %v2526 = vld [vmem:[%s492 + $0x268] sm:$0xff]
        %v2527 = vld [vmem:[%s492 + $0x270] sm:$0xff]
        %v2528 = vld [vmem:[%s492 + $0x278] sm:$0xff]
        %v2529 = vld [vmem:[%s492 + $0x280] sm:$0xff]
        %v2530 = vld [vmem:[%s492 + $0x288] sm:$0xff]
        %v2531 = vld [vmem:[%s492 + $0x290] sm:$0xff]
        %v2532 = vld [vmem:[%s492 + $0x298] sm:$0xff]
        %v2533 = vld [vmem:[%s492 + $0x2a0] sm:$0xff]
        %v2534 = vld [vmem:[%s492 + $0x2a8] sm:$0xff]
        %v2535 = vld [vmem:[%s492 + $0x2b0] sm:$0xff]
        %v2536 = vld [vmem:[%s492 + $0x2b8] sm:$0xff]
        %v2537 = vld [vmem:[%s492 + $0x2c0] sm:$0xff]
        %v2538 = vld [vmem:[%s492 + $0x2c8] sm:$0xff]
        %v2539 = vld [vmem:[%s492 + $0x2d0] sm:$0xff]
        %v2540 = vld [vmem:[%s492 + $0x2d8] sm:$0xff]
        %v2541 = vld [vmem:[%s492 + $0x2e0] sm:$0xff]
        %v2542 = vld [vmem:[%s492 + $0x2e8] sm:$0xff]
        %v2543 = vld [vmem:[%s492 + $0x2f0] sm:$0xff]
        %v2544 = vld [vmem:[%s492 + $0x2f8] sm:$0xff]
        %v2545 = vld [vmem:[%s492 + $0x300] sm:$0xff]
        %v2546 = vld [vmem:[%s492 + $0x308] sm:$0xff]
        %v2547 = vld [vmem:[%s492 + $0x310] sm:$0xff]
        %v2548 = vld [vmem:[%s492 + $0x318] sm:$0xff]
        %v2549 = vld [vmem:[%s492 + $0x320] sm:$0xff]
        %v2550 = vld [vmem:[%s492 + $0x328] sm:$0xff]
        %v2551 = vld [vmem:[%s492 + $0x330] sm:$0xff]
        %v2552 = vld [vmem:[%s492 + $0x338] sm:$0xff]
        %v2553 = vld [vmem:[%s492 + $0x340] sm:$0xff]
        %v2554 = vld [vmem:[%s492 + $0x348] sm:$0xff]
        %v2555 = vld [vmem:[%s492 + $0x350] sm:$0xff]
        %v2556 = vld [vmem:[%s492 + $0x358] sm:$0xff]
        %v2557 = vld [vmem:[%s492 + $0x360] sm:$0xff]
        %v2558 = vld [vmem:[%s492 + $0x368] sm:$0xff]
        %v2559 = vld [vmem:[%s492 + $0x370] sm:$0xff]
        %v2560 = vld [vmem:[%s492 + $0x378] sm:$0xff]
        %v2561 = vld [vmem:[%s492 + $0x380] sm:$0xff]
        %v2562 = vld [vmem:[%s492 + $0x388] sm:$0xff]
        %v2563 = vld [vmem:[%s492 + $0x390] sm:$0xff]
        %v2564 = vld [vmem:[%s492 + $0x398] sm:$0xff]
        %v2565 = vld [vmem:[%s492 + $0x3a0] sm:$0xff]
        %v2566 = vld [vmem:[%s492 + $0x3a8] sm:$0xff]
        %v2567 = vld [vmem:[%s492 + $0x3b0] sm:$0xff]
        %v2568 = vld [vmem:[%s492 + $0x3b8] sm:$0xff]
        %v2569 = vld [vmem:[%s492 + $0x3c0] sm:$0xff]
        %v2570 = vld [vmem:[%s492 + $0x3c8] sm:$0xff]
        %v2571 = vld [vmem:[%s492 + $0x3d0] sm:$0xff]
        %v2572 = vld [vmem:[%s492 + $0x3d8] sm:$0xff]
        %v2573 = vld [vmem:[%s492 + $0x3e0] sm:$0xff]
        %v2574 = vld [vmem:[%s492 + $0x3e8] sm:$0xff]
        %v2575 = vld [vmem:[%s492 + $0x3f0] sm:$0xff]
        %v2576 = vld [vmem:[%s492 + $0x3f8] sm:$0xff]
        %v2577 = vld [vmem:[%s492 + $0x400] sm:$0xff]
        %v2578 = vld [vmem:[%s492 + $0x408] sm:$0xff]
        %v2579 = vld [vmem:[%s492 + $0x410] sm:$0xff]
        %v2580 = vld [vmem:[%s492 + $0x418] sm:$0xff]
        %v2581 = vld [vmem:[%s492 + $0x420] sm:$0xff]
        %v2582 = vld [vmem:[%s492 + $0x428] sm:$0xff]
        %v2583 = vld [vmem:[%s492 + $0x430] sm:$0xff]
        %v2584 = vld [vmem:[%s492 + $0x438] sm:$0xff]
        %v2585 = vld [vmem:[%s492 + $0x440] sm:$0xff]
        %v2586 = vld [vmem:[%s492 + $0x448] sm:$0xff]
        %v2587 = vld [vmem:[%s492 + $0x450] sm:$0xff]
        %v2588 = vld [vmem:[%s492 + $0x458] sm:$0xff]
        %v2589 = vld [vmem:[%s492 + $0x460] sm:$0xff]
        %v2590 = vld [vmem:[%s492 + $0x468] sm:$0xff]
        %v2591 = vld [vmem:[%s492 + $0x470] sm:$0xff]
        %v2592 = vld [vmem:[%s492 + $0x478] sm:$0xff]
        %v2593 = vld [vmem:[%s492 + $0x480] sm:$0xff]
        %v2594 = vld [vmem:[%s492 + $0x488] sm:$0xff]
        %v2595 = vld [vmem:[%s492 + $0x490] sm:$0xff]
        %v2596 = vld [vmem:[%s492 + $0x498] sm:$0xff]
        %v2597 = vld [vmem:[%s492 + $0x4a0] sm:$0xff]
        %v2598 = vld [vmem:[%s492 + $0x4a8] sm:$0xff]
        %v2599 = vld [vmem:[%s492 + $0x4b0] sm:$0xff]
        %v2600 = vld [vmem:[%s492 + $0x4b8] sm:$0xff]
        %v2601 = vld [vmem:[%s492 + $0x4c0] sm:$0xff]
        %v2602 = vld [vmem:[%s492 + $0x4c8] sm:$0xff]
        %v2603 = vld [vmem:[%s492 + $0x4d0] sm:$0xff]
        %v2604 = vld [vmem:[%s492 + $0x4d8] sm:$0xff]
        %v2605 = vld [vmem:[%s492 + $0x4e0] sm:$0xff]
        %v2606 = vld [vmem:[%s492 + $0x4e8] sm:$0xff]
        %v2607 = vld [vmem:[%s492 + $0x4f0] sm:$0xff]
        %v2608 = vld [vmem:[%s492 + $0x4f8] sm:$0xff]
        %v2609 = vld [vmem:[%s492 + $0x500] sm:$0xff]
        %v2610 = vld [vmem:[%s492 + $0x508] sm:$0xff]
        %v2611 = vld [vmem:[%s492 + $0x510] sm:$0xff]
        %v2612 = vld [vmem:[%s492 + $0x518] sm:$0xff]
        %v2613 = vld [vmem:[%s492 + $0x520] sm:$0xff]
        %v2614 = vld [vmem:[%s492 + $0x528] sm:$0xff]
        %v2615 = vld [vmem:[%s492 + $0x530] sm:$0xff]
        %v2616 = vld [vmem:[%s492 + $0x538] sm:$0xff]
        %v2617 = vld [vmem:[%s492 + $0x540] sm:$0xff]
        %v2618 = vld [vmem:[%s492 + $0x548] sm:$0xff]
        %v2619 = vld [vmem:[%s492 + $0x550] sm:$0xff]
        %v2620 = vld [vmem:[%s492 + $0x558] sm:$0xff]
        %v2621 = vld [vmem:[%s492 + $0x560] sm:$0xff]
        %v2622 = vld [vmem:[%s492 + $0x568] sm:$0xff]
        %v2623 = vld [vmem:[%s492 + $0x570] sm:$0xff]
        %v2624 = vld [vmem:[%s492 + $0x578] sm:$0xff]
        %v2625 = vld [vmem:[%s492 + $0x580] sm:$0xff]
        %v2626 = vld [vmem:[%s492 + $0x588] sm:$0xff]
        %v2627 = vld [vmem:[%s492 + $0x590] sm:$0xff]
        %v2628 = vld [vmem:[%s492 + $0x598] sm:$0xff]
        %v2629 = vld [vmem:[%s492 + $0x5a0] sm:$0xff]
        %v2630 = vld [vmem:[%s492 + $0x5a8] sm:$0xff]
        %v2631 = vld [vmem:[%s492 + $0x5b0] sm:$0xff]
        %v2632 = vld [vmem:[%s492 + $0x5b8] sm:$0xff]
        %v2633 = vld [vmem:[%s492 + $0x5c0] sm:$0xff]
        %v2634 = vld [vmem:[%s492 + $0x5c8] sm:$0xff]
        %v2635 = vld [vmem:[%s492 + $0x5d0] sm:$0xff]
        %v2636 = vld [vmem:[%s492 + $0x5d8] sm:$0xff]
        %v2637 = vld [vmem:[%s492 + $0x5e0] sm:$0xff]
        %v2638 = vld [vmem:[%s492 + $0x5e8] sm:$0xff]
        %v2639 = vld [vmem:[%s492 + $0x5f0] sm:$0xff]
        %v2640 = vld [vmem:[%s492 + $0x5f8] sm:$0xff]
        %v2641 = vld [vmem:[%s492 + $0x600] sm:$0xff]
        %v2642 = vld [vmem:[%s492 + $0x608] sm:$0xff]
        %v2643 = vld [vmem:[%s492 + $0x610] sm:$0xff]
        %v2644 = vld [vmem:[%s492 + $0x618] sm:$0xff]
        %v2645 = vld [vmem:[%s492 + $0x620] sm:$0xff]
        %v2646 = vld [vmem:[%s492 + $0x628] sm:$0xff]
        %v2647 = vld [vmem:[%s492 + $0x630] sm:$0xff]
        %v2648 = vld [vmem:[%s492 + $0x638] sm:$0xff]
        %v2649 = vld [vmem:[%s502] sm:$0x3]
        %v2651 = vperm.slane %v2649, 0
        %v2652 = vperm.slane %v2649, 1
        %v2855 = vunpack.c.l.b16 %v2449
        %v2856 = vunpack.c.h.b16 %v2449
        %v2857 = vunpack.c.l.b16 %v2450
        %v2858 = vunpack.c.h.b16 %v2450
        %v2859 = vunpack.c.l.b16 %v2451
        %v2860 = vunpack.c.h.b16 %v2451
        %v2861 = vunpack.c.l.b16 %v2452
        %v2862 = vunpack.c.h.b16 %v2452
        %v2863 = vunpack.c.l.b16 %v2453
        %v2864 = vunpack.c.h.b16 %v2453
        %v2865 = vunpack.c.l.b16 %v2454
        %v2866 = vunpack.c.h.b16 %v2454
        %v2867 = vunpack.c.l.b16 %v2455
        %v2868 = vunpack.c.h.b16 %v2455
        %v2869 = vunpack.c.l.b16 %v2456
        %v2870 = vunpack.c.h.b16 %v2456
        %v2871 = vunpack.c.l.b16 %v2457
        %v2872 = vunpack.c.h.b16 %v2457
        %v2873 = vunpack.c.l.b16 %v2458
        %v2874 = vunpack.c.h.b16 %v2458
        %v2875 = vunpack.c.l.b16 %v2459
        %v2876 = vunpack.c.h.b16 %v2459
        %v2877 = vunpack.c.l.b16 %v2460
        %v2878 = vunpack.c.h.b16 %v2460
        %v2879 = vunpack.c.l.b16 %v2461
        %v2880 = vunpack.c.h.b16 %v2461
        %v2881 = vunpack.c.l.b16 %v2462
        %v2882 = vunpack.c.h.b16 %v2462
        %v2883 = vunpack.c.l.b16 %v2463
        %v2884 = vunpack.c.h.b16 %v2463
        %v2885 = vunpack.c.l.b16 %v2464
        %v2886 = vunpack.c.h.b16 %v2464
        %v2887 = vunpack.c.l.b16 %v2465
        %v2888 = vunpack.c.h.b16 %v2465
        %v2889 = vunpack.c.l.b16 %v2466
        %v2890 = vunpack.c.h.b16 %v2466
        %v2891 = vunpack.c.l.b16 %v2467
        %v2892 = vunpack.c.h.b16 %v2467
        %v2893 = vunpack.c.l.b16 %v2468
        %v2894 = vunpack.c.h.b16 %v2468
        %v2895 = vunpack.c.l.b16 %v2469
        %v2896 = vunpack.c.h.b16 %v2469
        %v2897 = vunpack.c.l.b16 %v2470
        %v2898 = vunpack.c.h.b16 %v2470
        %v2899 = vunpack.c.l.b16 %v2471
        %v2900 = vunpack.c.h.b16 %v2471
        %v2901 = vunpack.c.l.b16 %v2472
        %v2902 = vunpack.c.h.b16 %v2472
        %v2903 = vunpack.c.l.b16 %v2473
        %v2904 = vunpack.c.h.b16 %v2473
        %v2905 = vunpack.c.l.b16 %v2474
        %v2906 = vunpack.c.h.b16 %v2474
        %v2907 = vunpack.c.l.b16 %v2475
        %v2908 = vunpack.c.h.b16 %v2475
        %v2909 = vunpack.c.l.b16 %v2476
        %v2910 = vunpack.c.h.b16 %v2476
        %v2911 = vunpack.c.l.b16 %v2477
        %v2912 = vunpack.c.h.b16 %v2477
        %v2913 = vunpack.c.l.b16 %v2478
        %v2914 = vunpack.c.h.b16 %v2478
        %v2915 = vunpack.c.l.b16 %v2479
        %v2916 = vunpack.c.h.b16 %v2479
        %v2917 = vunpack.c.l.b16 %v2480
        %v2918 = vunpack.c.h.b16 %v2480
        %v2919 = vunpack.c.l.b16 %v2481
        %v2920 = vunpack.c.h.b16 %v2481
        %v2921 = vunpack.c.l.b16 %v2482
        %v2922 = vunpack.c.h.b16 %v2482
        %v2923 = vunpack.c.l.b16 %v2483
        %v2924 = vunpack.c.h.b16 %v2483
        %v2925 = vunpack.c.l.b16 %v2484
        %v2926 = vunpack.c.h.b16 %v2484
        %v2927 = vunpack.c.l.b16 %v2485
        %v2928 = vunpack.c.h.b16 %v2485
        %v2929 = vunpack.c.l.b16 %v2486
        %v2930 = vunpack.c.h.b16 %v2486
        %v2931 = vunpack.c.l.b16 %v2487
        %v2932 = vunpack.c.h.b16 %v2487
        %v2933 = vunpack.c.l.b16 %v2488
        %v2934 = vunpack.c.h.b16 %v2488
        %v2935 = vunpack.c.l.b16 %v2489
        %v2936 = vunpack.c.h.b16 %v2489
        %v2937 = vunpack.c.l.b16 %v2490
        %v2938 = vunpack.c.h.b16 %v2490
        %v2939 = vunpack.c.l.b16 %v2491
        %v2940 = vunpack.c.h.b16 %v2491
        %v2941 = vunpack.c.l.b16 %v2492
        %v2942 = vunpack.c.h.b16 %v2492
        %v2943 = vunpack.c.l.b16 %v2493
        %v2944 = vunpack.c.h.b16 %v2493
        %v2945 = vunpack.c.l.b16 %v2494
        %v2946 = vunpack.c.h.b16 %v2494
        %v2947 = vunpack.c.l.b16 %v2495
        %v2948 = vunpack.c.h.b16 %v2495
        %v2949 = vunpack.c.l.b16 %v2496
        %v2950 = vunpack.c.h.b16 %v2496
        %v2951 = vunpack.c.l.b16 %v2497
        %v2952 = vunpack.c.h.b16 %v2497
        %v2953 = vunpack.c.l.b16 %v2498
        %v2954 = vunpack.c.h.b16 %v2498
        %v2955 = vunpack.c.l.b16 %v2499
        %v2956 = vunpack.c.h.b16 %v2499
        %v2957 = vunpack.c.l.b16 %v2500
        %v2958 = vunpack.c.h.b16 %v2500
        %v2959 = vunpack.c.l.b16 %v2501
        %v2960 = vunpack.c.h.b16 %v2501
        %v2961 = vunpack.c.l.b16 %v2502
        %v2962 = vunpack.c.h.b16 %v2502
        %v2963 = vunpack.c.l.b16 %v2503
        %v2964 = vunpack.c.h.b16 %v2503
        %v2965 = vunpack.c.l.b16 %v2504
        %v2966 = vunpack.c.h.b16 %v2504
        %v2967 = vunpack.c.l.b16 %v2505
        %v2968 = vunpack.c.h.b16 %v2505
        %v2969 = vunpack.c.l.b16 %v2506
        %v2970 = vunpack.c.h.b16 %v2506
        %v2971 = vunpack.c.l.b16 %v2507
        %v2972 = vunpack.c.h.b16 %v2507
        %v2973 = vunpack.c.l.b16 %v2508
        %v2974 = vunpack.c.h.b16 %v2508
        %v2975 = vunpack.c.l.b16 %v2509
        %v2976 = vunpack.c.h.b16 %v2509
        %v2977 = vunpack.c.l.b16 %v2510
        %v2978 = vunpack.c.h.b16 %v2510
        %v2979 = vunpack.c.l.b16 %v2511
        %v2980 = vunpack.c.h.b16 %v2511
        %v2981 = vunpack.c.l.b16 %v2512
        %v2982 = vunpack.c.h.b16 %v2512
        %v2983 = vunpack.c.l.b16 %v2513
        %v2984 = vunpack.c.h.b16 %v2513
        %v2985 = vunpack.c.l.b16 %v2514
        %v2986 = vunpack.c.h.b16 %v2514
        %v2987 = vunpack.c.l.b16 %v2515
        %v2988 = vunpack.c.h.b16 %v2515
        %v2989 = vunpack.c.l.b16 %v2516
        %v2990 = vunpack.c.h.b16 %v2516
        %v2991 = vunpack.c.l.b16 %v2517
        %v2992 = vunpack.c.h.b16 %v2517
        %v2993 = vunpack.c.l.b16 %v2518
        %v2994 = vunpack.c.h.b16 %v2518
        %v2995 = vunpack.c.l.b16 %v2519
        %v2996 = vunpack.c.h.b16 %v2519
        %v2997 = vunpack.c.l.b16 %v2520
        %v2998 = vunpack.c.h.b16 %v2520
        %v2999 = vunpack.c.l.b16 %v2521
        %v3000 = vunpack.c.h.b16 %v2521
        %v3001 = vunpack.c.l.b16 %v2522
        %v3002 = vunpack.c.h.b16 %v2522
        %v3003 = vunpack.c.l.b16 %v2523
        %v3004 = vunpack.c.h.b16 %v2523
        %v3005 = vunpack.c.l.b16 %v2524
        %v3006 = vunpack.c.h.b16 %v2524
        %v3007 = vunpack.c.l.b16 %v2525
        %v3008 = vunpack.c.h.b16 %v2525
        %v3009 = vunpack.c.l.b16 %v2526
        %v3010 = vunpack.c.h.b16 %v2526
        %v3011 = vunpack.c.l.b16 %v2527
        %v3012 = vunpack.c.h.b16 %v2527
        %v3013 = vunpack.c.l.b16 %v2528
        %v3014 = vunpack.c.h.b16 %v2528
        %v3015 = vunpack.c.l.b16 %v2529
        %v3016 = vunpack.c.h.b16 %v2529
        %v3017 = vunpack.c.l.b16 %v2530
        %v3018 = vunpack.c.h.b16 %v2530
        %v3019 = vunpack.c.l.b16 %v2531
        %v3020 = vunpack.c.h.b16 %v2531
        %v3021 = vunpack.c.l.b16 %v2532
        %v3022 = vunpack.c.h.b16 %v2532
        %v3023 = vunpack.c.l.b16 %v2533
        %v3024 = vunpack.c.h.b16 %v2533
        %v3025 = vunpack.c.l.b16 %v2534
        %v3026 = vunpack.c.h.b16 %v2534
        %v3027 = vunpack.c.l.b16 %v2535
        %v3028 = vunpack.c.h.b16 %v2535
        %v3029 = vunpack.c.l.b16 %v2536
        %v3030 = vunpack.c.h.b16 %v2536
        %v3031 = vunpack.c.l.b16 %v2537
        %v3032 = vunpack.c.h.b16 %v2537
        %v3033 = vunpack.c.l.b16 %v2538
        %v3034 = vunpack.c.h.b16 %v2538
        %v3035 = vunpack.c.l.b16 %v2539
        %v3036 = vunpack.c.h.b16 %v2539
        %v3037 = vunpack.c.l.b16 %v2540
        %v3038 = vunpack.c.h.b16 %v2540
        %v3039 = vunpack.c.l.b16 %v2541
        %v3040 = vunpack.c.h.b16 %v2541
        %v3041 = vunpack.c.l.b16 %v2542
        %v3042 = vunpack.c.h.b16 %v2542
        %v3043 = vunpack.c.l.b16 %v2543
        %v3044 = vunpack.c.h.b16 %v2543
        %v3045 = vunpack.c.l.b16 %v2544
        %v3046 = vunpack.c.h.b16 %v2544
        %v3047 = vunpack.c.l.b16 %v2545
        %v3048 = vunpack.c.h.b16 %v2545
        %v3049 = vunpack.c.l.b16 %v2546
        %v3050 = vunpack.c.h.b16 %v2546
        %v3051 = vunpack.c.l.b16 %v2547
        %v3052 = vunpack.c.h.b16 %v2547
        %v3053 = vunpack.c.l.b16 %v2548
        %v3054 = vunpack.c.h.b16 %v2548
        %v3055 = vunpack.c.l.b16 %v2549
        %v3056 = vunpack.c.h.b16 %v2549
        %v3057 = vunpack.c.l.b16 %v2550
        %v3058 = vunpack.c.h.b16 %v2550
        %v3059 = vunpack.c.l.b16 %v2551
        %v3060 = vunpack.c.h.b16 %v2551
        %v3061 = vunpack.c.l.b16 %v2552
        %v3062 = vunpack.c.h.b16 %v2552
        %v3063 = vunpack.c.l.b16 %v2553
        %v3064 = vunpack.c.h.b16 %v2553
        %v3065 = vunpack.c.l.b16 %v2554
        %v3066 = vunpack.c.h.b16 %v2554
        %v3067 = vunpack.c.l.b16 %v2555
        %v3068 = vunpack.c.h.b16 %v2555
        %v3069 = vunpack.c.l.b16 %v2556
        %v3070 = vunpack.c.h.b16 %v2556
        %v3071 = vunpack.c.l.b16 %v2557
        %v3072 = vunpack.c.h.b16 %v2557
        %v3073 = vunpack.c.l.b16 %v2558
        %v3074 = vunpack.c.h.b16 %v2558
        %v3075 = vunpack.c.l.b16 %v2559
        %v3076 = vunpack.c.h.b16 %v2559
        %v3077 = vunpack.c.l.b16 %v2560
        %v3078 = vunpack.c.h.b16 %v2560
        %v3079 = vunpack.c.l.b16 %v2561
        %v3080 = vunpack.c.h.b16 %v2561
        %v3081 = vunpack.c.l.b16 %v2562
        %v3082 = vunpack.c.h.b16 %v2562
        %v3083 = vunpack.c.l.b16 %v2563
        %v3084 = vunpack.c.h.b16 %v2563
        %v3085 = vunpack.c.l.b16 %v2564
        %v3086 = vunpack.c.h.b16 %v2564
        %v3087 = vunpack.c.l.b16 %v2565
        %v3088 = vunpack.c.h.b16 %v2565
        %v3089 = vunpack.c.l.b16 %v2566
        %v3090 = vunpack.c.h.b16 %v2566
        %v3091 = vunpack.c.l.b16 %v2567
        %v3092 = vunpack.c.h.b16 %v2567
        %v3093 = vunpack.c.l.b16 %v2568
        %v3094 = vunpack.c.h.b16 %v2568
        %v3095 = vunpack.c.l.b16 %v2569
        %v3096 = vunpack.c.h.b16 %v2569
        %v3097 = vunpack.c.l.b16 %v2570
        %v3098 = vunpack.c.h.b16 %v2570
        %v3099 = vunpack.c.l.b16 %v2571
        %v3100 = vunpack.c.h.b16 %v2571
        %v3101 = vunpack.c.l.b16 %v2572
        %v3102 = vunpack.c.h.b16 %v2572
        %v3103 = vunpack.c.l.b16 %v2573
        %v3104 = vunpack.c.h.b16 %v2573
        %v3105 = vunpack.c.l.b16 %v2574
        %v3106 = vunpack.c.h.b16 %v2574
        %v3107 = vunpack.c.l.b16 %v2575
        %v3108 = vunpack.c.h.b16 %v2575
        %v3109 = vunpack.c.l.b16 %v2576
        %v3110 = vunpack.c.h.b16 %v2576
        %v3111 = vunpack.c.l.b16 %v2577
        %v3112 = vunpack.c.h.b16 %v2577
        %v3113 = vunpack.c.l.b16 %v2578
        %v3114 = vunpack.c.h.b16 %v2578
        %v3115 = vunpack.c.l.b16 %v2579
        %v3116 = vunpack.c.h.b16 %v2579
        %v3117 = vunpack.c.l.b16 %v2580
        %v3118 = vunpack.c.h.b16 %v2580
        %v3119 = vunpack.c.l.b16 %v2581
        %v3120 = vunpack.c.h.b16 %v2581
        %v3121 = vunpack.c.l.b16 %v2582
        %v3122 = vunpack.c.h.b16 %v2582
        %v3123 = vunpack.c.l.b16 %v2583
        %v3124 = vunpack.c.h.b16 %v2583
        %v3125 = vunpack.c.l.b16 %v2584
        %v3126 = vunpack.c.h.b16 %v2584
        %v3127 = vunpack.c.l.b16 %v2585
        %v3128 = vunpack.c.h.b16 %v2585
        %v3129 = vunpack.c.l.b16 %v2586
        %v3130 = vunpack.c.h.b16 %v2586
        %v3131 = vunpack.c.l.b16 %v2587
        %v3132 = vunpack.c.h.b16 %v2587
        %v3133 = vunpack.c.l.b16 %v2588
        %v3134 = vunpack.c.h.b16 %v2588
        %v3135 = vunpack.c.l.b16 %v2589
        %v3136 = vunpack.c.h.b16 %v2589
        %v3137 = vunpack.c.l.b16 %v2590
        %v3138 = vunpack.c.h.b16 %v2590
        %v3139 = vunpack.c.l.b16 %v2591
        %v3140 = vunpack.c.h.b16 %v2591
        %v3141 = vunpack.c.l.b16 %v2592
        %v3142 = vunpack.c.h.b16 %v2592
        %v3143 = vunpack.c.l.b16 %v2593
        %v3144 = vunpack.c.h.b16 %v2593
        %v3145 = vunpack.c.l.b16 %v2594
        %v3146 = vunpack.c.h.b16 %v2594
        %v3147 = vunpack.c.l.b16 %v2595
        %v3148 = vunpack.c.h.b16 %v2595
        %v3149 = vunpack.c.l.b16 %v2596
        %v3150 = vunpack.c.h.b16 %v2596
        %v3151 = vunpack.c.l.b16 %v2597
        %v3152 = vunpack.c.h.b16 %v2597
        %v3153 = vunpack.c.l.b16 %v2598
        %v3154 = vunpack.c.h.b16 %v2598
        %v3155 = vunpack.c.l.b16 %v2599
        %v3156 = vunpack.c.h.b16 %v2599
        %v3157 = vunpack.c.l.b16 %v2600
        %v3158 = vunpack.c.h.b16 %v2600
        %v3159 = vunpack.c.l.b16 %v2601
        %v3160 = vunpack.c.h.b16 %v2601
        %v3161 = vunpack.c.l.b16 %v2602
        %v3162 = vunpack.c.h.b16 %v2602
        %v3163 = vunpack.c.l.b16 %v2603
        %v3164 = vunpack.c.h.b16 %v2603
        %v3165 = vunpack.c.l.b16 %v2604
        %v3166 = vunpack.c.h.b16 %v2604
        %v3167 = vunpack.c.l.b16 %v2605
        %v3168 = vunpack.c.h.b16 %v2605
        %v3169 = vunpack.c.l.b16 %v2606
        %v3170 = vunpack.c.h.b16 %v2606
        %v3171 = vunpack.c.l.b16 %v2607
        %v3172 = vunpack.c.h.b16 %v2607
        %v3173 = vunpack.c.l.b16 %v2608
        %v3174 = vunpack.c.h.b16 %v2608
        %v3175 = vunpack.c.l.b16 %v2609
        %v3176 = vunpack.c.h.b16 %v2609
        %v3177 = vunpack.c.l.b16 %v2610
        %v3178 = vunpack.c.h.b16 %v2610
        %v3179 = vunpack.c.l.b16 %v2611
        %v3180 = vunpack.c.h.b16 %v2611
        %v3181 = vunpack.c.l.b16 %v2612
        %v3182 = vunpack.c.h.b16 %v2612
        %v3183 = vunpack.c.l.b16 %v2613
        %v3184 = vunpack.c.h.b16 %v2613
        %v3185 = vunpack.c.l.b16 %v2614
        %v3186 = vunpack.c.h.b16 %v2614
        %v3187 = vunpack.c.l.b16 %v2615
        %v3188 = vunpack.c.h.b16 %v2615
        %v3189 = vunpack.c.l.b16 %v2616
        %v3190 = vunpack.c.h.b16 %v2616
        %v3191 = vunpack.c.l.b16 %v2617
        %v3192 = vunpack.c.h.b16 %v2617
        %v3193 = vunpack.c.l.b16 %v2618
        %v3194 = vunpack.c.h.b16 %v2618
        %v3195 = vunpack.c.l.b16 %v2619
        %v3196 = vunpack.c.h.b16 %v2619
        %v3197 = vunpack.c.l.b16 %v2620
        %v3198 = vunpack.c.h.b16 %v2620
        %v3199 = vunpack.c.l.b16 %v2621
        %v3200 = vunpack.c.h.b16 %v2621
        %v3201 = vunpack.c.l.b16 %v2622
        %v3202 = vunpack.c.h.b16 %v2622
        %v3203 = vunpack.c.l.b16 %v2623
        %v3204 = vunpack.c.h.b16 %v2623
        %v3205 = vunpack.c.l.b16 %v2624
        %v3206 = vunpack.c.h.b16 %v2624
        %v3207 = vunpack.c.l.b16 %v2625
        %v3208 = vunpack.c.h.b16 %v2625
        %v3209 = vunpack.c.l.b16 %v2626
        %v3210 = vunpack.c.h.b16 %v2626
        %v3211 = vunpack.c.l.b16 %v2627
        %v3212 = vunpack.c.h.b16 %v2627
        %v3213 = vunpack.c.l.b16 %v2628
        %v3214 = vunpack.c.h.b16 %v2628
        %v3215 = vunpack.c.l.b16 %v2629
        %v3216 = vunpack.c.h.b16 %v2629
        %v3217 = vunpack.c.l.b16 %v2630
        %v3218 = vunpack.c.h.b16 %v2630
        %v3219 = vunpack.c.l.b16 %v2631
        %v3220 = vunpack.c.h.b16 %v2631
        %v3221 = vunpack.c.l.b16 %v2632
        %v3222 = vunpack.c.h.b16 %v2632
        %v3223 = vunpack.c.l.b16 %v2633
        %v3224 = vunpack.c.h.b16 %v2633
        %v3225 = vunpack.c.l.b16 %v2634
        %v3226 = vunpack.c.h.b16 %v2634
        %v3227 = vunpack.c.l.b16 %v2635
        %v3228 = vunpack.c.h.b16 %v2635
        %v3229 = vunpack.c.l.b16 %v2636
        %v3230 = vunpack.c.h.b16 %v2636
        %v3231 = vunpack.c.l.b16 %v2637
        %v3232 = vunpack.c.h.b16 %v2637
        %v3233 = vunpack.c.l.b16 %v2638
        %v3234 = vunpack.c.h.b16 %v2638
        %v3235 = vunpack.c.l.b16 %v2639
        %v3236 = vunpack.c.h.b16 %v2639
        %v3237 = vunpack.c.l.b16 %v2640
        %v3238 = vunpack.c.h.b16 %v2640
        %v3239 = vunpack.c.l.b16 %v2641
        %v3240 = vunpack.c.h.b16 %v2641
        %v3241 = vunpack.c.l.b16 %v2642
        %v3242 = vunpack.c.h.b16 %v2642
        %v3243 = vunpack.c.l.b16 %v2643
        %v3244 = vunpack.c.h.b16 %v2643
        %v3245 = vunpack.c.l.b16 %v2644
        %v3246 = vunpack.c.h.b16 %v2644
        %v3247 = vunpack.c.l.b16 %v2645
        %v3248 = vunpack.c.h.b16 %v2645
        %v3249 = vunpack.c.l.b16 %v2646
        %v3250 = vunpack.c.h.b16 %v2646
        %v3251 = vunpack.c.l.b16 %v2647
        %v3252 = vunpack.c.h.b16 %v2647
        %v3253 = vunpack.c.l.b16 %v2648
        %v3254 = vunpack.c.h.b16 %v2648
        %v3255 = vpack.c.b16 %v2857, %v2855
        %v3256 = vpack.c.b16 %v2858, %v2856
        %v3257 = vpack.c.b16 %v2861, %v2859
        %v3258 = vpack.c.b16 %v2862, %v2860
        %v3259 = vpack.c.b16 %v2865, %v2863
        %v3260 = vpack.c.b16 %v2866, %v2864
        %v3261 = vpack.c.b16 %v2869, %v2867
        %v3262 = vpack.c.b16 %v2870, %v2868
        %v3263 = vpack.c.b16 %v2873, %v2871
        %v3264 = vpack.c.b16 %v2874, %v2872
        %v3265 = vpack.c.b16 %v2877, %v2875
        %v3266 = vpack.c.b16 %v2878, %v2876
        %v3267 = vpack.c.b16 %v2881, %v2879
        %v3268 = vpack.c.b16 %v2882, %v2880
        %v3269 = vpack.c.b16 %v2885, %v2883
        %v3270 = vpack.c.b16 %v2886, %v2884
        %v3271 = vpack.c.b16 %v2889, %v2887
        %v3272 = vpack.c.b16 %v2890, %v2888
        %v3273 = vpack.c.b16 %v2893, %v2891
        %v3274 = vpack.c.b16 %v2894, %v2892
        %v3275 = vpack.c.b16 %v2897, %v2895
        %v3276 = vpack.c.b16 %v2898, %v2896
        %v3277 = vpack.c.b16 %v2901, %v2899
        %v3278 = vpack.c.b16 %v2902, %v2900
        %v3279 = vpack.c.b16 %v2905, %v2903
        %v3280 = vpack.c.b16 %v2906, %v2904
        %v3281 = vpack.c.b16 %v2909, %v2907
        %v3282 = vpack.c.b16 %v2910, %v2908
        %v3283 = vpack.c.b16 %v2913, %v2911
        %v3284 = vpack.c.b16 %v2914, %v2912
        %v3285 = vpack.c.b16 %v2917, %v2915
        %v3286 = vpack.c.b16 %v2918, %v2916
        %v3287 = vpack.c.b16 %v2921, %v2919
        %v3288 = vpack.c.b16 %v2922, %v2920
        %v3289 = vpack.c.b16 %v2925, %v2923
        %v3290 = vpack.c.b16 %v2926, %v2924
        %v3291 = vpack.c.b16 %v2929, %v2927
        %v3292 = vpack.c.b16 %v2930, %v2928
        %v3293 = vpack.c.b16 %v2933, %v2931
        %v3294 = vpack.c.b16 %v2934, %v2932
        %v3295 = vpack.c.b16 %v2937, %v2935
        %v3296 = vpack.c.b16 %v2938, %v2936
        %v3297 = vpack.c.b16 %v2941, %v2939
        %v3298 = vpack.c.b16 %v2942, %v2940
        %v3299 = vpack.c.b16 %v2945, %v2943
        %v3300 = vpack.c.b16 %v2946, %v2944
        %v3301 = vpack.c.b16 %v2949, %v2947
        %v3302 = vpack.c.b16 %v2950, %v2948
        %v3303 = vpack.c.b16 %v2953, %v2951
        %v3304 = vpack.c.b16 %v2954, %v2952
        %v3305 = vpack.c.b16 %v2957, %v2955
        %v3306 = vpack.c.b16 %v2958, %v2956
        %v3307 = vpack.c.b16 %v2961, %v2959
        %v3308 = vpack.c.b16 %v2962, %v2960
        %v3309 = vpack.c.b16 %v2965, %v2963
        %v3310 = vpack.c.b16 %v2966, %v2964
        %v3311 = vpack.c.b16 %v2969, %v2967
        %v3312 = vpack.c.b16 %v2970, %v2968
        %v3313 = vpack.c.b16 %v2973, %v2971
        %v3314 = vpack.c.b16 %v2974, %v2972
        %v3315 = vpack.c.b16 %v2977, %v2975
        %v3316 = vpack.c.b16 %v2978, %v2976
        %v3317 = vpack.c.b16 %v2981, %v2979
        %v3318 = vpack.c.b16 %v2982, %v2980
        %v3319 = vpack.c.b16 %v2985, %v2983
        %v3320 = vpack.c.b16 %v2986, %v2984
        %v3321 = vpack.c.b16 %v2989, %v2987
        %v3322 = vpack.c.b16 %v2990, %v2988
        %v3323 = vpack.c.b16 %v2993, %v2991
        %v3324 = vpack.c.b16 %v2994, %v2992
        %v3325 = vpack.c.b16 %v2997, %v2995
        %v3326 = vpack.c.b16 %v2998, %v2996
        %v3327 = vpack.c.b16 %v3001, %v2999
        %v3328 = vpack.c.b16 %v3002, %v3000
        %v3329 = vpack.c.b16 %v3005, %v3003
        %v3330 = vpack.c.b16 %v3006, %v3004
        %v3331 = vpack.c.b16 %v3009, %v3007
        %v3332 = vpack.c.b16 %v3010, %v3008
        %v3333 = vpack.c.b16 %v3013, %v3011
        %v3334 = vpack.c.b16 %v3014, %v3012
        %v3335 = vpack.c.b16 %v3017, %v3015
        %v3336 = vpack.c.b16 %v3018, %v3016
        %v3337 = vpack.c.b16 %v3021, %v3019
        %v3338 = vpack.c.b16 %v3022, %v3020
        %v3339 = vpack.c.b16 %v3025, %v3023
        %v3340 = vpack.c.b16 %v3026, %v3024
        %v3341 = vpack.c.b16 %v3029, %v3027
        %v3342 = vpack.c.b16 %v3030, %v3028
        %v3343 = vpack.c.b16 %v3033, %v3031
        %v3344 = vpack.c.b16 %v3034, %v3032
        %v3345 = vpack.c.b16 %v3037, %v3035
        %v3346 = vpack.c.b16 %v3038, %v3036
        %v3347 = vpack.c.b16 %v3041, %v3039
        %v3348 = vpack.c.b16 %v3042, %v3040
        %v3349 = vpack.c.b16 %v3045, %v3043
        %v3350 = vpack.c.b16 %v3046, %v3044
        %v3351 = vpack.c.b16 %v3049, %v3047
        %v3352 = vpack.c.b16 %v3050, %v3048
        %v3353 = vpack.c.b16 %v3053, %v3051
        %v3354 = vpack.c.b16 %v3054, %v3052
        %v3355 = vpack.c.b16 %v3057, %v3055
        %v3356 = vpack.c.b16 %v3058, %v3056
        %v3357 = vpack.c.b16 %v3061, %v3059
        %v3358 = vpack.c.b16 %v3062, %v3060
        %v3359 = vpack.c.b16 %v3065, %v3063
        %v3360 = vpack.c.b16 %v3066, %v3064
        %v3361 = vpack.c.b16 %v3069, %v3067
        %v3362 = vpack.c.b16 %v3070, %v3068
        %v3363 = vpack.c.b16 %v3073, %v3071
        %v3364 = vpack.c.b16 %v3074, %v3072
        %v3365 = vpack.c.b16 %v3077, %v3075
        %v3366 = vpack.c.b16 %v3078, %v3076
        %v3367 = vpack.c.b16 %v3081, %v3079
        %v3368 = vpack.c.b16 %v3082, %v3080
        %v3369 = vpack.c.b16 %v3085, %v3083
        %v3370 = vpack.c.b16 %v3086, %v3084
        %v3371 = vpack.c.b16 %v3089, %v3087
        %v3372 = vpack.c.b16 %v3090, %v3088
        %v3373 = vpack.c.b16 %v3093, %v3091
        %v3374 = vpack.c.b16 %v3094, %v3092
        %v3375 = vpack.c.b16 %v3097, %v3095
        %v3376 = vpack.c.b16 %v3098, %v3096
        %v3377 = vpack.c.b16 %v3101, %v3099
        %v3378 = vpack.c.b16 %v3102, %v3100
        %v3379 = vpack.c.b16 %v3105, %v3103
        %v3380 = vpack.c.b16 %v3106, %v3104
        %v3381 = vpack.c.b16 %v3109, %v3107
        %v3382 = vpack.c.b16 %v3110, %v3108
        %v3383 = vpack.c.b16 %v3113, %v3111
        %v3384 = vpack.c.b16 %v3114, %v3112
        %v3385 = vpack.c.b16 %v3117, %v3115
        %v3386 = vpack.c.b16 %v3118, %v3116
        %v3387 = vpack.c.b16 %v3121, %v3119
        %v3388 = vpack.c.b16 %v3122, %v3120
        %v3389 = vpack.c.b16 %v3125, %v3123
        %v3390 = vpack.c.b16 %v3126, %v3124
        %v3391 = vpack.c.b16 %v3129, %v3127
        %v3392 = vpack.c.b16 %v3130, %v3128
        %v3393 = vpack.c.b16 %v3133, %v3131
        %v3394 = vpack.c.b16 %v3134, %v3132
        %v3395 = vpack.c.b16 %v3137, %v3135
        %v3396 = vpack.c.b16 %v3138, %v3136
        %v3397 = vpack.c.b16 %v3141, %v3139
        %v3398 = vpack.c.b16 %v3142, %v3140
        %v3399 = vpack.c.b16 %v3145, %v3143
        %v3400 = vpack.c.b16 %v3146, %v3144
        %v3401 = vpack.c.b16 %v3149, %v3147
        %v3402 = vpack.c.b16 %v3150, %v3148
        %v3403 = vpack.c.b16 %v3153, %v3151
        %v3404 = vpack.c.b16 %v3154, %v3152
        %v3405 = vpack.c.b16 %v3157, %v3155
        %v3406 = vpack.c.b16 %v3158, %v3156
        %v3407 = vpack.c.b16 %v3161, %v3159
        %v3408 = vpack.c.b16 %v3162, %v3160
        %v3409 = vpack.c.b16 %v3165, %v3163
        %v3410 = vpack.c.b16 %v3166, %v3164
        %v3411 = vpack.c.b16 %v3169, %v3167
        %v3412 = vpack.c.b16 %v3170, %v3168
        %v3413 = vpack.c.b16 %v3173, %v3171
        %v3414 = vpack.c.b16 %v3174, %v3172
        %v3415 = vpack.c.b16 %v3177, %v3175
        %v3416 = vpack.c.b16 %v3178, %v3176
        %v3417 = vpack.c.b16 %v3181, %v3179
        %v3418 = vpack.c.b16 %v3182, %v3180
        %v3419 = vpack.c.b16 %v3185, %v3183
        %v3420 = vpack.c.b16 %v3186, %v3184
        %v3421 = vpack.c.b16 %v3189, %v3187
        %v3422 = vpack.c.b16 %v3190, %v3188
        %v3423 = vpack.c.b16 %v3193, %v3191
        %v3424 = vpack.c.b16 %v3194, %v3192
        %v3425 = vpack.c.b16 %v3197, %v3195
        %v3426 = vpack.c.b16 %v3198, %v3196
        %v3427 = vpack.c.b16 %v3201, %v3199
        %v3428 = vpack.c.b16 %v3202, %v3200
        %v3429 = vpack.c.b16 %v3205, %v3203
        %v3430 = vpack.c.b16 %v3206, %v3204
        %v3431 = vpack.c.b16 %v3209, %v3207
        %v3432 = vpack.c.b16 %v3210, %v3208
        %v3433 = vpack.c.b16 %v3213, %v3211
        %v3434 = vpack.c.b16 %v3214, %v3212
        %v3435 = vpack.c.b16 %v3217, %v3215
        %v3436 = vpack.c.b16 %v3218, %v3216
        %v3437 = vpack.c.b16 %v3221, %v3219
        %v3438 = vpack.c.b16 %v3222, %v3220
        %v3439 = vpack.c.b16 %v3225, %v3223
        %v3440 = vpack.c.b16 %v3226, %v3224
        %v3441 = vpack.c.b16 %v3229, %v3227
        %v3442 = vpack.c.b16 %v3230, %v3228
        %v3443 = vpack.c.b16 %v3233, %v3231
        %v3444 = vpack.c.b16 %v3234, %v3232
        %v3445 = vpack.c.b16 %v3237, %v3235
        %v3446 = vpack.c.b16 %v3238, %v3236
        %v3447 = vpack.c.b16 %v3241, %v3239
        %v3448 = vpack.c.b16 %v3242, %v3240
        %v3449 = vpack.c.b16 %v3245, %v3243
        %v3450 = vpack.c.b16 %v3246, %v3244
        %v3451 = vpack.c.b16 %v3249, %v3247
        %v3452 = vpack.c.b16 %v3250, %v3248
        %v3453 = vpack.c.b16 %v3253, %v3251
        %v3454 = vpack.c.b16 %v3254, %v3252
        %vm3655 = vcmask 523264
        %v3657 = vsel %vm3655, %v2448, 0
        %3659 = vmatpush.bf16.msra.mxu0 %v3269
        %3660 = vmatpush.bf16.msra.mxu0 %v3267
        %3661 = vmatpush.bf16.msra.mxu0 %v3265
        %3662 = vmatpush.bf16.msra.mxu0 %v3263
        %3663 = vmatpush.bf16.msra.mxu0 %v3261
        %3664 = vmatpush.bf16.msra.mxu0 %v3259
        %3665 = vmatpush.bf16.msra.mxu0 %v3257
        %3666 = vmatpush.bf16.msra.mxu0 %v3255
        %3667 = vmatmul.bf16.gmra.mxu0 %v2436
        %v3668 = vpop.f32.mrf.mxu0
        %v3669 = vadd.f32 %v2651, %v3668
        %v3670 = vpop.f32.mrf.mxu0
        %3671 = vdwg.mxu0
        %3672 = vmatpush.bf16.msra.mxu0 %v3285
        %3673 = vmatpush.bf16.msra.mxu0 %v3283
        %3674 = vmatpush.bf16.msra.mxu0 %v3281
        %3675 = vmatpush.bf16.msra.mxu0 %v3279
        %3676 = vmatpush.bf16.msra.mxu0 %v3277
        %3677 = vmatpush.bf16.msra.mxu0 %v3275
        %3678 = vmatpush.bf16.msra.mxu0 %v3273
        %3679 = vmatpush.bf16.msra.mxu0 %v3271
        %3680 = vmatmul.bf16.gmra.mxu0 %v2437
        %v3681 = vpop.f32.mrf.mxu0
        %v3682 = vadd.f32 %v3669, %v3681
        %v3683 = vpop.f32.mrf.mxu0
        %3684 = vdwg.mxu0
        %3685 = vmatpush.bf16.msra.mxu0 %v3301
        %3686 = vmatpush.bf16.msra.mxu0 %v3299
        %3687 = vmatpush.bf16.msra.mxu0 %v3297
        %3688 = vmatpush.bf16.msra.mxu0 %v3295
        %3689 = vmatpush.bf16.msra.mxu0 %v3293
        %3690 = vmatpush.bf16.msra.mxu0 %v3291
        %3691 = vmatpush.bf16.msra.mxu0 %v3289
        %3692 = vmatpush.bf16.msra.mxu0 %v3287
        %3693 = vmatmul.bf16.gmra.mxu0 %v2438
        %v3694 = vpop.f32.mrf.mxu0
        %v3695 = vadd.f32 %v3682, %v3694
        %v3696 = vpop.f32.mrf.mxu0
        %3697 = vdwg.mxu0
        %3698 = vmatpush.bf16.msra.mxu0 %v3317
        %3699 = vmatpush.bf16.msra.mxu0 %v3315
        %3700 = vmatpush.bf16.msra.mxu0 %v3313
        %3701 = vmatpush.bf16.msra.mxu0 %v3311
        %3702 = vmatpush.bf16.msra.mxu0 %v3309
        %3703 = vmatpush.bf16.msra.mxu0 %v3307
        %3704 = vmatpush.bf16.msra.mxu0 %v3305
        %3705 = vmatpush.bf16.msra.mxu0 %v3303
        %3706 = vmatmul.bf16.gmra.mxu0 %v2439
        %v3707 = vpop.f32.mrf.mxu0
        %v3708 = vadd.f32 %v3695, %v3707
        %v3709 = vpop.f32.mrf.mxu0
        %3710 = vdwg.mxu0
        %3711 = vmatpush.bf16.msra.mxu0 %v3333
        %3712 = vmatpush.bf16.msra.mxu0 %v3331
        %3713 = vmatpush.bf16.msra.mxu0 %v3329
        %3714 = vmatpush.bf16.msra.mxu0 %v3327
        %3715 = vmatpush.bf16.msra.mxu0 %v3325
        %3716 = vmatpush.bf16.msra.mxu0 %v3323
        %3717 = vmatpush.bf16.msra.mxu0 %v3321
        %3718 = vmatpush.bf16.msra.mxu0 %v3319
        %3719 = vmatmul.bf16.gmra.mxu0 %v2440
        %v3720 = vpop.f32.mrf.mxu0
        %v3721 = vadd.f32 %v3708, %v3720
        %v3722 = vpop.f32.mrf.mxu0
        %3723 = vdwg.mxu0
        %3724 = vmatpush.bf16.msra.mxu0 %v3349
        %3725 = vmatpush.bf16.msra.mxu0 %v3347
        %3726 = vmatpush.bf16.msra.mxu0 %v3345
        %3727 = vmatpush.bf16.msra.mxu0 %v3343
        %3728 = vmatpush.bf16.msra.mxu0 %v3341
        %3729 = vmatpush.bf16.msra.mxu0 %v3339
        %3730 = vmatpush.bf16.msra.mxu0 %v3337
        %3731 = vmatpush.bf16.msra.mxu0 %v3335
        %3732 = vmatmul.bf16.gmra.mxu0 %v2441
        %v3733 = vpop.f32.mrf.mxu0
        %v3734 = vadd.f32 %v3721, %v3733
        %v3735 = vpop.f32.mrf.mxu0
        %3736 = vdwg.mxu0
        %3737 = vmatpush.bf16.msra.mxu0 %v3365
        %3738 = vmatpush.bf16.msra.mxu0 %v3363
        %3739 = vmatpush.bf16.msra.mxu0 %v3361
        %3740 = vmatpush.bf16.msra.mxu0 %v3359
        %3741 = vmatpush.bf16.msra.mxu0 %v3357
        %3742 = vmatpush.bf16.msra.mxu0 %v3355
        %3743 = vmatpush.bf16.msra.mxu0 %v3353
        %3744 = vmatpush.bf16.msra.mxu0 %v3351
        %3745 = vmatmul.bf16.gmra.mxu0 %v2442
        %v3746 = vpop.f32.mrf.mxu0
        %v3747 = vadd.f32 %v3734, %v3746
        %v3748 = vpop.f32.mrf.mxu0
        %3749 = vdwg.mxu0
        %3750 = vmatpush.bf16.msra.mxu0 %v3381
        %3751 = vmatpush.bf16.msra.mxu0 %v3379
        %3752 = vmatpush.bf16.msra.mxu0 %v3377
        %3753 = vmatpush.bf16.msra.mxu0 %v3375
        %3754 = vmatpush.bf16.msra.mxu0 %v3373
        %3755 = vmatpush.bf16.msra.mxu0 %v3371
        %3756 = vmatpush.bf16.msra.mxu0 %v3369
        %3757 = vmatpush.bf16.msra.mxu0 %v3367
        %3758 = vmatmul.bf16.gmra.mxu0 %v2443
        %v3759 = vpop.f32.mrf.mxu0
        %v3760 = vadd.f32 %v3747, %v3759
        %v3761 = vpop.f32.mrf.mxu0
        %3762 = vdwg.mxu0
        %3763 = vmatpush.bf16.msra.mxu0 %v3397
        %3764 = vmatpush.bf16.msra.mxu0 %v3395
        %3765 = vmatpush.bf16.msra.mxu0 %v3393
        %3766 = vmatpush.bf16.msra.mxu0 %v3391
        %3767 = vmatpush.bf16.msra.mxu0 %v3389
        %3768 = vmatpush.bf16.msra.mxu0 %v3387
        %3769 = vmatpush.bf16.msra.mxu0 %v3385
        %3770 = vmatpush.bf16.msra.mxu0 %v3383
        %3771 = vmatmul.bf16.gmra.mxu0 %v2444
        %v3772 = vpop.f32.mrf.mxu0
        %v3773 = vadd.f32 %v3760, %v3772
        %v3774 = vpop.f32.mrf.mxu0
        %3775 = vdwg.mxu0
        %3776 = vmatpush.bf16.msra.mxu0 %v3413
        %3777 = vmatpush.bf16.msra.mxu0 %v3411
        %3778 = vmatpush.bf16.msra.mxu0 %v3409
        %3779 = vmatpush.bf16.msra.mxu0 %v3407
        %3780 = vmatpush.bf16.msra.mxu0 %v3405
        %3781 = vmatpush.bf16.msra.mxu0 %v3403
        %3782 = vmatpush.bf16.msra.mxu0 %v3401
        %3783 = vmatpush.bf16.msra.mxu0 %v3399
        %3784 = vmatmul.bf16.gmra.mxu0 %v2445
        %v3785 = vpop.f32.mrf.mxu0
        %v3786 = vadd.f32 %v3773, %v3785
        %v3787 = vpop.f32.mrf.mxu0
        %3788 = vdwg.mxu0
        %3789 = vmatpush.bf16.msra.mxu0 %v3429
        %3790 = vmatpush.bf16.msra.mxu0 %v3427
        %3791 = vmatpush.bf16.msra.mxu0 %v3425
        %3792 = vmatpush.bf16.msra.mxu0 %v3423
        %3793 = vmatpush.bf16.msra.mxu0 %v3421
        %3794 = vmatpush.bf16.msra.mxu0 %v3419
        %3795 = vmatpush.bf16.msra.mxu0 %v3417
        %3796 = vmatpush.bf16.msra.mxu0 %v3415
        %3797 = vmatmul.bf16.gmra.mxu0 %v2446
        %v3798 = vpop.f32.mrf.mxu0
        %v3799 = vadd.f32 %v3786, %v3798
        %v3800 = vpop.f32.mrf.mxu0
        %3801 = vdwg.mxu0
        %3802 = vmatpush.bf16.msra.mxu0 %v3445
        %3803 = vmatpush.bf16.msra.mxu0 %v3443
        %3804 = vmatpush.bf16.msra.mxu0 %v3441
        %3805 = vmatpush.bf16.msra.mxu0 %v3439
        %3806 = vmatpush.bf16.msra.mxu0 %v3437
        %3807 = vmatpush.bf16.msra.mxu0 %v3435
        %3808 = vmatpush.bf16.msra.mxu0 %v3433
        %3809 = vmatpush.bf16.msra.mxu0 %v3431
        %3810 = vmatmul.bf16.gmra.mxu0 %v2447
        %v3811 = vpop.f32.mrf.mxu0
        %v3812 = vadd.f32 %v3799, %v3811
        %v3813 = vpop.f32.mrf.mxu0
        %3814 = vdwg.mxu0
        %3815 = vmatpush.bf16.msra.mxu0 0
        %3816 = vmatpush.bf16.msra.mxu0 0
        %3817 = vmatpush.bf16.msra.mxu0 0
        %3818 = vmatpush.bf16.msra.mxu0 0
        %3819 = vmatpush.bf16.msra.mxu0 %v3453
        %3820 = vmatpush.bf16.msra.mxu0 %v3451
        %3821 = vmatpush.bf16.msra.mxu0 %v3449
        %3822 = vmatpush.bf16.msra.mxu0 %v3447
        %3823 = vmatmul.bf16.gmra.mxu0 %v3657
        %v3824 = vpop.f32.mrf.mxu0
        %v3825 = vadd.f32 %v3812, %v3824
        %v3826 = vpop.f32.mrf.mxu0
        %3827 = vdwg.mxu0
        %3828 = vmatpush.bf16.msra.mxu0 %v3270
        %3829 = vmatpush.bf16.msra.mxu0 %v3268
        %3830 = vmatpush.bf16.msra.mxu0 %v3266
        %3831 = vmatpush.bf16.msra.mxu0 %v3264
        %3832 = vmatpush.bf16.msra.mxu0 %v3262
        %3833 = vmatpush.bf16.msra.mxu0 %v3260
        %3834 = vmatpush.bf16.msra.mxu0 %v3258
        %3835 = vmatpush.bf16.msra.mxu0 %v3256
        %3836 = vmatmul.bf16.gmra.mxu0 %v2436
        %v3837 = vpop.f32.mrf.mxu0
        %v3838 = vadd.f32 %v2652, %v3837
        %v3839 = vpop.f32.mrf.mxu0
        %3840 = vdwg.mxu0
        %3841 = vmatpush.bf16.msra.mxu0 %v3286
        %3842 = vmatpush.bf16.msra.mxu0 %v3284
        %3843 = vmatpush.bf16.msra.mxu0 %v3282
        %3844 = vmatpush.bf16.msra.mxu0 %v3280
        %3845 = vmatpush.bf16.msra.mxu0 %v3278
        %3846 = vmatpush.bf16.msra.mxu0 %v3276
        %3847 = vmatpush.bf16.msra.mxu0 %v3274
        %3848 = vmatpush.bf16.msra.mxu0 %v3272
        %3849 = vmatmul.bf16.gmra.mxu0 %v2437
        %v3850 = vpop.f32.mrf.mxu0
        %v3851 = vadd.f32 %v3838, %v3850
        %v3852 = vpop.f32.mrf.mxu0
        %3853 = vdwg.mxu0
        %3854 = vmatpush.bf16.msra.mxu0 %v3302
        %3855 = vmatpush.bf16.msra.mxu0 %v3300
        %3856 = vmatpush.bf16.msra.mxu0 %v3298
        %3857 = vmatpush.bf16.msra.mxu0 %v3296
        %3858 = vmatpush.bf16.msra.mxu0 %v3294
        %3859 = vmatpush.bf16.msra.mxu0 %v3292
        %3860 = vmatpush.bf16.msra.mxu0 %v3290
        %3861 = vmatpush.bf16.msra.mxu0 %v3288
        %3862 = vmatmul.bf16.gmra.mxu0 %v2438
        %v3863 = vpop.f32.mrf.mxu0
        %v3864 = vadd.f32 %v3851, %v3863
        %v3865 = vpop.f32.mrf.mxu0
        %3866 = vdwg.mxu0
        %3867 = vmatpush.bf16.msra.mxu0 %v3318
        %3868 = vmatpush.bf16.msra.mxu0 %v3316
        %3869 = vmatpush.bf16.msra.mxu0 %v3314
        %3870 = vmatpush.bf16.msra.mxu0 %v3312
        %3871 = vmatpush.bf16.msra.mxu0 %v3310
        %3872 = vmatpush.bf16.msra.mxu0 %v3308
        %3873 = vmatpush.bf16.msra.mxu0 %v3306
        %3874 = vmatpush.bf16.msra.mxu0 %v3304
        %3875 = vmatmul.bf16.gmra.mxu0 %v2439
        %v3876 = vpop.f32.mrf.mxu0
        %v3877 = vadd.f32 %v3864, %v3876
        %v3878 = vpop.f32.mrf.mxu0
        %3879 = vdwg.mxu0
        %3880 = vmatpush.bf16.msra.mxu0 %v3334
        %3881 = vmatpush.bf16.msra.mxu0 %v3332
        %3882 = vmatpush.bf16.msra.mxu0 %v3330
        %3883 = vmatpush.bf16.msra.mxu0 %v3328
        %3884 = vmatpush.bf16.msra.mxu0 %v3326
        %3885 = vmatpush.bf16.msra.mxu0 %v3324
        %3886 = vmatpush.bf16.msra.mxu0 %v3322
        %3887 = vmatpush.bf16.msra.mxu0 %v3320
        %3888 = vmatmul.bf16.gmra.mxu0 %v2440
        %v3889 = vpop.f32.mrf.mxu0
        %v3890 = vadd.f32 %v3877, %v3889
        %v3891 = vpop.f32.mrf.mxu0
        %3892 = vdwg.mxu0
        %3893 = vmatpush.bf16.msra.mxu0 %v3350
        %3894 = vmatpush.bf16.msra.mxu0 %v3348
        %3895 = vmatpush.bf16.msra.mxu0 %v3346
        %3896 = vmatpush.bf16.msra.mxu0 %v3344
        %3897 = vmatpush.bf16.msra.mxu0 %v3342
        %3898 = vmatpush.bf16.msra.mxu0 %v3340
        %3899 = vmatpush.bf16.msra.mxu0 %v3338
        %3900 = vmatpush.bf16.msra.mxu0 %v3336
        %3901 = vmatmul.bf16.gmra.mxu0 %v2441
        %v3902 = vpop.f32.mrf.mxu0
        %v3903 = vadd.f32 %v3890, %v3902
        %v3904 = vpop.f32.mrf.mxu0
        %3905 = vdwg.mxu0
        %3906 = vmatpush.bf16.msra.mxu0 %v3366
        %3907 = vmatpush.bf16.msra.mxu0 %v3364
        %3908 = vmatpush.bf16.msra.mxu0 %v3362
        %3909 = vmatpush.bf16.msra.mxu0 %v3360
        %3910 = vmatpush.bf16.msra.mxu0 %v3358
        %3911 = vmatpush.bf16.msra.mxu0 %v3356
        %3912 = vmatpush.bf16.msra.mxu0 %v3354
        %3913 = vmatpush.bf16.msra.mxu0 %v3352
        %3914 = vmatmul.bf16.gmra.mxu0 %v2442
        %v3915 = vpop.f32.mrf.mxu0
        %v3916 = vadd.f32 %v3903, %v3915
        %v3917 = vpop.f32.mrf.mxu0
        %3918 = vdwg.mxu0
        %3919 = vmatpush.bf16.msra.mxu0 %v3382
        %3920 = vmatpush.bf16.msra.mxu0 %v3380
        %3921 = vmatpush.bf16.msra.mxu0 %v3378
        %3922 = vmatpush.bf16.msra.mxu0 %v3376
        %3923 = vmatpush.bf16.msra.mxu0 %v3374
        %3924 = vmatpush.bf16.msra.mxu0 %v3372
        %3925 = vmatpush.bf16.msra.mxu0 %v3370
        %3926 = vmatpush.bf16.msra.mxu0 %v3368
        %3927 = vmatmul.bf16.gmra.mxu0 %v2443
        %v3928 = vpop.f32.mrf.mxu0
        %v3929 = vadd.f32 %v3916, %v3928
        %v3930 = vpop.f32.mrf.mxu0
        %3931 = vdwg.mxu0
        %3932 = vmatpush.bf16.msra.mxu0 %v3398
        %3933 = vmatpush.bf16.msra.mxu0 %v3396
        %3934 = vmatpush.bf16.msra.mxu0 %v3394
        %3935 = vmatpush.bf16.msra.mxu0 %v3392
        %3936 = vmatpush.bf16.msra.mxu0 %v3390
        %3937 = vmatpush.bf16.msra.mxu0 %v3388
        %3938 = vmatpush.bf16.msra.mxu0 %v3386
        %3939 = vmatpush.bf16.msra.mxu0 %v3384
        %3940 = vmatmul.bf16.gmra.mxu0 %v2444
        %v3941 = vpop.f32.mrf.mxu0
        %v3942 = vadd.f32 %v3929, %v3941
        %v3943 = vpop.f32.mrf.mxu0
        %3944 = vdwg.mxu0
        %3945 = vmatpush.bf16.msra.mxu0 %v3414
        %3946 = vmatpush.bf16.msra.mxu0 %v3412
        %3947 = vmatpush.bf16.msra.mxu0 %v3410
        %3948 = vmatpush.bf16.msra.mxu0 %v3408
        %3949 = vmatpush.bf16.msra.mxu0 %v3406
        %3950 = vmatpush.bf16.msra.mxu0 %v3404
        %3951 = vmatpush.bf16.msra.mxu0 %v3402
        %3952 = vmatpush.bf16.msra.mxu0 %v3400
        %3953 = vmatmul.bf16.gmra.mxu0 %v2445
        %v3954 = vpop.f32.mrf.mxu0
        %v3955 = vadd.f32 %v3942, %v3954
        %v3956 = vpop.f32.mrf.mxu0
        %3957 = vdwg.mxu0
        %3958 = vmatpush.bf16.msra.mxu0 %v3430
        %3959 = vmatpush.bf16.msra.mxu0 %v3428
        %3960 = vmatpush.bf16.msra.mxu0 %v3426
        %3961 = vmatpush.bf16.msra.mxu0 %v3424
        %3962 = vmatpush.bf16.msra.mxu0 %v3422
        %3963 = vmatpush.bf16.msra.mxu0 %v3420
        %3964 = vmatpush.bf16.msra.mxu0 %v3418
        %3965 = vmatpush.bf16.msra.mxu0 %v3416
        %3966 = vmatmul.bf16.gmra.mxu0 %v2446
        %v3967 = vpop.f32.mrf.mxu0
        %v3968 = vadd.f32 %v3955, %v3967
        %v3969 = vpop.f32.mrf.mxu0
        %3970 = vdwg.mxu0
        %3971 = vmatpush.bf16.msra.mxu0 %v3446
        %3972 = vmatpush.bf16.msra.mxu0 %v3444
        %3973 = vmatpush.bf16.msra.mxu0 %v3442
        %3974 = vmatpush.bf16.msra.mxu0 %v3440
        %3975 = vmatpush.bf16.msra.mxu0 %v3438
        %3976 = vmatpush.bf16.msra.mxu0 %v3436
        %3977 = vmatpush.bf16.msra.mxu0 %v3434
        %3978 = vmatpush.bf16.msra.mxu0 %v3432
        %3979 = vmatmul.bf16.gmra.mxu0 %v2447
        %v3980 = vpop.f32.mrf.mxu0
        %v3981 = vadd.f32 %v3968, %v3980
        %v3982 = vpop.f32.mrf.mxu0
        %3983 = vdwg.mxu0
        %3984 = vmatpush.bf16.msra.mxu0 0
        %3985 = vmatpush.bf16.msra.mxu0 0
        %3986 = vmatpush.bf16.msra.mxu0 0
        %3987 = vmatpush.bf16.msra.mxu0 0
        %3988 = vmatpush.bf16.msra.mxu0 %v3454
        %3989 = vmatpush.bf16.msra.mxu0 %v3452
        %3990 = vmatpush.bf16.msra.mxu0 %v3450
        %3991 = vmatpush.bf16.msra.mxu0 %v3448
        %3992 = vmatmul.bf16.gmra.mxu0 %v3657
        %v3993 = vpop.f32.mrf.mxu0
        %v3994 = vadd.f32 %v3981, %v3993
        %v3995 = vpop.f32.mrf.mxu0
        %3996 = vdwg.mxu0
        %v3997 = vmax.f32 %v3825, 0.0
        %v3998 = vmax.f32 %v3994, 0.0
        %v3999 = vld [vmem:[#allocation3] sm:$0x3]
        %v4000 = vpack.c.bf16 %v3997, %v3997
        %v4001 = vpack.c.bf16 %v3998, %v3998
        %v4002 = vld [vmem:[%s558] sm:$0xf]
        %v4003 = vld [vmem:[%s558 + $0x4] sm:$0xf]
        %v4004 = vld [vmem:[%s558 + $0x8] sm:$0xf]
        %v4005 = vld [vmem:[%s558 + $0xc] sm:$0xf]
        %v4006 = vld [vmem:[%s558 + $0x10] sm:$0xf]
        %v4007 = vld [vmem:[%s558 + $0x14] sm:$0xf]
        %v4008 = vld [vmem:[%s558 + $0x18] sm:$0xf]
        %v4009 = vld [vmem:[%s558 + $0x1c] sm:$0xf]
        %v4010 = vld [vmem:[%s558 + $0x20] sm:$0xf]
        %v4011 = vld [vmem:[%s558 + $0x24] sm:$0xf]
        %v4012 = vld [vmem:[%s558 + $0x28] sm:$0xf]
        %v4013 = vld [vmem:[%s558 + $0x2c] sm:$0xf]
        %v4014 = vld [vmem:[%s558 + $0x30] sm:$0xf]
        %v4015 = vld [vmem:[%s558 + $0x34] sm:$0xf]
        %v4016 = vld [vmem:[%s558 + $0x38] sm:$0xf]
        %v4017 = vld [vmem:[%s558 + $0x3c] sm:$0xf]
        %v4018 = vld [vmem:[%s558 + $0x40] sm:$0xf]
        %v4019 = vld [vmem:[%s558 + $0x44] sm:$0xf]
        %v4020 = vld [vmem:[%s558 + $0x48] sm:$0xf]
        %v4021 = vld [vmem:[%s558 + $0x4c] sm:$0xf]
        %v4022 = vld [vmem:[%s558 + $0x50] sm:$0xf]
        %v4023 = vld [vmem:[%s558 + $0x54] sm:$0xf]
        %v4024 = vld [vmem:[%s558 + $0x58] sm:$0xf]
        %v4025 = vld [vmem:[%s558 + $0x5c] sm:$0xf]
        %v4026 = vld [vmem:[%s558 + $0x60] sm:$0xf]
        %v4027 = vld [vmem:[%s558 + $0x64] sm:$0xf]
        %v4028 = vld [vmem:[%s558 + $0x68] sm:$0xf]
        %v4029 = vld [vmem:[%s558 + $0x6c] sm:$0xf]
        %v4030 = vld [vmem:[%s558 + $0x70] sm:$0xf]
        %v4031 = vld [vmem:[%s558 + $0x74] sm:$0xf]
        %v4032 = vld [vmem:[%s558 + $0x78] sm:$0xf]
        %v4033 = vld [vmem:[%s558 + $0x7c] sm:$0xf]
        %v4066 = vunpack.c.l.b16 %v4002
        %v4067 = vunpack.c.l.b16 %v4003
        %v4068 = vunpack.c.l.b16 %v4004
        %v4069 = vunpack.c.l.b16 %v4005
        %v4070 = vunpack.c.l.b16 %v4006
        %v4071 = vunpack.c.l.b16 %v4007
        %v4072 = vunpack.c.l.b16 %v4008
        %v4073 = vunpack.c.l.b16 %v4009
        %v4074 = vunpack.c.l.b16 %v4010
        %v4075 = vunpack.c.l.b16 %v4011
        %v4076 = vunpack.c.l.b16 %v4012
        %v4077 = vunpack.c.l.b16 %v4013
        %v4078 = vunpack.c.l.b16 %v4014
        %v4079 = vunpack.c.l.b16 %v4015
        %v4080 = vunpack.c.l.b16 %v4016
        %v4081 = vunpack.c.l.b16 %v4017
        %v4082 = vunpack.c.l.b16 %v4018
        %v4083 = vunpack.c.l.b16 %v4019
        %v4084 = vunpack.c.l.b16 %v4020
        %v4085 = vunpack.c.l.b16 %v4021
        %v4086 = vunpack.c.l.b16 %v4022
        %v4087 = vunpack.c.l.b16 %v4023
        %v4088 = vunpack.c.l.b16 %v4024
        %v4089 = vunpack.c.l.b16 %v4025
        %v4090 = vunpack.c.l.b16 %v4026
        %v4091 = vunpack.c.l.b16 %v4027
        %v4092 = vunpack.c.l.b16 %v4028
        %v4093 = vunpack.c.l.b16 %v4029
        %v4094 = vunpack.c.l.b16 %v4030
        %v4095 = vunpack.c.l.b16 %v4031
        %v4096 = vunpack.c.l.b16 %v4032
        %v4097 = vunpack.c.l.b16 %v4033
        %v4098 = vpack.c.b16 %v4067, %v4066
        %v4099 = vpack.c.b16 %v4069, %v4068
        %v4100 = vpack.c.b16 %v4071, %v4070
        %v4101 = vpack.c.b16 %v4073, %v4072
        %v4102 = vpack.c.b16 %v4075, %v4074
        %v4103 = vpack.c.b16 %v4077, %v4076
        %v4104 = vpack.c.b16 %v4079, %v4078
        %v4105 = vpack.c.b16 %v4081, %v4080
        %v4106 = vpack.c.b16 %v4083, %v4082
        %v4107 = vpack.c.b16 %v4085, %v4084
        %v4108 = vpack.c.b16 %v4087, %v4086
        %v4109 = vpack.c.b16 %v4089, %v4088
        %v4110 = vpack.c.b16 %v4091, %v4090
        %v4111 = vpack.c.b16 %v4093, %v4092
        %v4112 = vpack.c.b16 %v4095, %v4094
        %v4113 = vpack.c.b16 %v4097, %v4096
        %4130 = vmatpush.bf16.msra.mxu0 %v4105
        %4131 = vmatpush.bf16.msra.mxu0 %v4104
        %4132 = vmatpush.bf16.msra.mxu0 %v4103
        %4133 = vmatpush.bf16.msra.mxu0 %v4102
        %4134 = vmatpush.bf16.msra.mxu0 %v4101
        %4135 = vmatpush.bf16.msra.mxu0 %v4100
        %4136 = vmatpush.bf16.msra.mxu0 %v4099
        %4137 = vmatpush.bf16.msra.mxu0 %v4098
        %4138 = vmatmul.bf16.gmra.mxu0 %v4000
        %v4139 = vpop.f32.mrf.mxu0
        %v4140 = vadd.f32 0.0, %v4139
        %v4141 = vpop.f32.mrf.mxu0
        %4142 = vdwg.mxu0
        %4143 = vmatpush.bf16.msra.mxu0 %v4113
        %4144 = vmatpush.bf16.msra.mxu0 %v4112
        %4145 = vmatpush.bf16.msra.mxu0 %v4111
        %4146 = vmatpush.bf16.msra.mxu0 %v4110
        %4147 = vmatpush.bf16.msra.mxu0 %v4109
        %4148 = vmatpush.bf16.msra.mxu0 %v4108
        %4149 = vmatpush.bf16.msra.mxu0 %v4107
        %4150 = vmatpush.bf16.msra.mxu0 %v4106
        %4151 = vmatmul.bf16.gmra.mxu0 %v4001
        %v4152 = vpop.f32.mrf.mxu0
        %v4153 = vadd.f32 %v4140, %v4152
        %v4154 = vpop.f32.mrf.mxu0
        %4155 = vdwg.mxu0
        %v4156 = vadd.f32 %v3999, %v4153
        %vm4157 = vcmask 254976
        %4158 = vst.msk [vmem:[#allocation3] sm:$0x3] %vm4157, %v4156
        %p4159 = scmp.eq.s32.totalorder %s27, 1
        // Predicated region
        $region105: #{binary_coding_forward.1} parent=63 // pred_check
          %p4160 = pneg %p4159
        $region106: #{binary_coding_forward.1} parent=63 // pred_check_branch
          %4162 = sbr.rel (%p4160) target = $region108
        $region107: #{binary_coding_forward.1} parent=63 // pred_region
          %v4163 = vld [vmem:[#allocation3] sm:$0x3]
          %v4164 = vld [vmem:[#allocation17] sm:$0x1]
          %v4166 = vperm.slane %v4164, 0
          %v4168 = vadd.f32 %v4163, %v4166
          %4169 = vst.msk [vmem:[#allocation18] sm:$0x3] %vm4157, %v4168
        $region108: #{binary_coding_forward.1} parent=63 // pred_fallthru
          _
        // Predicated region
        $region109: #{binary_coding_forward.1} parent=63 // pred_check
          %p4170 = pneg %p286
        $region110: #{binary_coding_forward.1} parent=63 // pred_check_branch
          %4172 = sbr.rel (%p4170) target = $region112
        $region111: #{binary_coding_forward.1} parent=63 // pred_region
          %4174 = vsyncadd [#allocation6], 0
          %s4176 = sshll.u32 [#allocation18], 4
          %s4177 = int_to_ptr.vmem [resolvable:$true] %s4176
          %s4178 = sshll.u32 %s11, 4
          %s4179 = int_to_ptr.hbm [resolvable:$true] %s4178
          %4181 = dma.vmem_to_hbm [thread:$0]  %s4177, 32, %s4179, [#allocation6]
        $region112: #{binary_coding_forward.1} parent=63 // pred_fallthru
          _
        // Predicated region
        $region113: #{binary_coding_forward.1} parent=63 // pred_check
          %p4182 = pneg %p286
        $region114: #{binary_coding_forward.1} parent=63 // pred_check_branch
          %4184 = sbr.rel (%p4182) target = $region116
        $region115: #{binary_coding_forward.1} parent=63 // pred_region
          %4186 = dma.done [#allocation6], 32
        $region116: #{binary_coding_forward.1} parent=63 // pred_fallthru
          _
      $region64: #{binary_coding_forward.1} parent=5 // pred_fallthru
        _
      %p4187 = scmp.le.s32.totalorder 2, %s22
      // Predicated region
      $region117: #{binary_coding_forward.1} parent=5 // pred_check
        %p4188 = pneg %p4187
      $region118: #{binary_coding_forward.1} parent=5 // pred_check_branch
        %4190 = sbr.rel (%p4188) target = $region120
      $region119: #{binary_coding_forward.1} parent=5 // pred_region
        %s4191 = ssub.s32 %s22, 2
      $region120: #{binary_coding_forward.1} parent=5 // pred_fallthru
        _
    $region6: #{binary_coding_forward.1} parent=1 // loop_footer
      %s26 = sadd.s32 1, %s22
    $region7: #{binary_coding_forward.1} parent=1 // loop_footer_branch
      %21 = sbr.rel target = $region3
    $region8: #{binary_coding_forward.1} parent=1 // loop_exit
      _
    %4192 = vsyncpa [#allocation5], 1
    %s4193 = scalar_lea.sflag [#allocation5], 1
    %4194 = vsyncpa %s4193, 1
    %4195 = vsyncpa [#allocation8], 1
    %4196 = vsyncpa [#allocation11], 1
    %4197 = vsyncpa [#allocation14], 1
    %4198 = vsyncpa [#allocation6], 1
    %s4199 = scalar_lea.sflag [#allocation6], 1
    %4200 = vsyncpa %s4199, 1

</llo_original>
